<compile_context>
chip_gen: v7x
topology: tpu7x:2x2x1
jax: 0.10.0
libtpu: 0.0.40
codegen_flags: <defaults>
</compile_context>

<pallas_src>
import functools

import jax
import jax.numpy as jnp
from jax.experimental import pallas as pl
from jax.experimental.pallas import tpu as pltpu

NEG_SLOPE = 0.2  # GATv2Conv default negative_slope


# ---------------------------------------------------------------------------
# Fused kernel: projection + GATv2 attention (all heads batched) + aggregation
# + per-edge attention-weight gather, in ONE grid step.
# ---------------------------------------------------------------------------
def _gat_fused_kernel(x_ref, w_ref, b_ref, att_ref, adj_ref, bias_ref,
                      src_sel_ref, tgt_sel_ref, headmask_ref,
                      latent_ref, ae_ref, *, heads, c):
    n = x_ref.shape[0]
    e_pad = src_sel_ref.shape[1]
    hn = heads * n

    # (1) Merged lin_l | lin_r projection: one MXU matmul -> (N, 2*H*C).
    xp = (jnp.dot(x_ref[...], w_ref[...], preferred_element_type=jnp.float32)
          + b_ref[...])

    # (2) Head-stacked layouts, rows = (head, node).  Each per-head column slice of xp
    #     is exactly one aligned (8,128) tile, so the concat is pure vreg stacking.
    xls = jnp.concatenate([xp[:, h * c:(h + 1) * c] for h in range(heads)], axis=0)
    xrs = jnp.concatenate(
        [xp[:, (heads + h) * c:(heads + h + 1) * c] for h in range(heads)], axis=0)

    # (3) GATv2 scores, ALL heads in one batched broadcast + lane reduce:
    #     s[(h,i), j] = att[h] . LeakyReLU(x_r[i,h] + x_l[j,h])
    e = xrs.reshape(heads, n, 1, c) + xls.reshape(heads, 1, n, c)   # (H, N, N, C)
    e = jnp.where(e >= 0.0, e, NEG_SLOPE * e)                       # LeakyReLU(0.2)
    s = jnp.sum(e * att_ref[...][:, None, None, :], axis=-1)        # (H, N, N)
    s = s.reshape(hn, n)                                            # rows (h,i), lanes j

    # (4) Masked softmax over source nodes j, all heads / all targets at once.
    mask = jnp.tile(adj_ref[...], (heads, 1)) > 0.0                 # (H*N, N)
    s = jnp.where(mask, s, -1e30)
    m = jnp.max(s, axis=-1, keepdims=True)
    p = jnp.where(mask, jnp.exp(s - m), 0.0)
    denom = jnp.maximum(jnp.sum(p, axis=-1, keepdims=True), 1e-20)  # NaN guard
    alpha = p * pl.reciprocal(denom, approx=True)                   # (H*N, N), EUP

    # (5) Aggregation of ALL heads as ONE MXU matmul via block-diagonal alpha:
    #     alpha_bd[(h,i),(h',j)] = alpha[h,i,j] * [h == h']
    alpha_bd = jnp.tile(alpha, (1, heads)) * headmask_ref[...]      # (H*N, H*N)
    out_s = jnp.dot(alpha_bd, xls, preferred_element_type=jnp.float32)  # (H*N, C)
    agg = jnp.sum(out_s.reshape(heads, n, c), axis=0)               # head sum -> (N, C)
    latent_ref[...] = (agg * (1.0 / heads) + bias_ref[...]).astype(latent_ref.dtype)

    # (6) Per-edge attention weights for ALL heads with one MXU matmul:
    #     rows[(h,i), e] = alpha[h, i, src[e]];  ae[h, e] = alpha[h, tgt[e], src[e]]
    rows = jnp.dot(alpha, src_sel_ref[...], preferred_element_type=jnp.float32)
    rows = rows * jnp.tile(tgt_sel_ref[...], (heads, 1))            # (H*N, E_pad)
    ae_ref[...] = jnp.sum(rows.reshape(heads, n, e_pad), axis=1)    # (H, E_pad), lane-dense


# ---------------------------------------------------------------------------
# Static (per-topology) preprocessing — compute once and cache.
# ---------------------------------------------------------------------------
def prepare_graph(edge_index, num_nodes, heads):
    """Self-loop edge index, dense adjacency, edge one-hots and head block mask."""
    loops = jnp.stack([jnp.arange(num_nodes, dtype=edge_index.dtype)] * 2)
    edge_index_sl = jnp.concatenate([edge_index, loops], axis=1)   # [2, E + N]
    e_sl = int(edge_index_sl.shape[1])
    e_pad = max(128, ((e_sl + 127) // 128) * 128)                  # lane-dense width

    src, tgt = edge_index_sl[0], edge_index_sl[1]
    adj = jnp.zeros((num_nodes, num_nodes), jnp.float32).at[tgt, src].set(1.0)

    pad = e_pad - e_sl
    src_p = jnp.concatenate([src, jnp.full((pad,), -1, src.dtype)])
    tgt_p = jnp.concatenate([tgt, jnp.full((pad,), -1, tgt.dtype)])
    nodes = jnp.arange(num_nodes, dtype=src.dtype)[:, None]
    src_sel = (src_p[None, :] == nodes).astype(jnp.float32)        # (N, E_pad)
    tgt_sel = (tgt_p[None, :] == nodes).astype(jnp.float32)        # (N, E_pad)

    hn = heads * num_nodes
    hh = jnp.arange(hn) // num_nodes
    headmask = (hh[:, None] == hh[None, :]).astype(jnp.float32)    # (H*N, H*N)

    return dict(edge_index_sl=edge_index_sl, e_sl=e_sl, e_pad=e_pad, adj=adj,
                src_sel=src_sel, tgt_sel=tgt_sel, headmask=headmask)


def pack_params(params):
    """Merges lin_l / lin_r into a single weight slab (one projection matmul)."""
    w = jnp.concatenate([params["w_l"], params["w_r"]], axis=1)            # (D, 2*H*C)
    b = jnp.concatenate([params["b_l"], params["b_r"]]).reshape(1, -1)     # (1, 2*H*C)
    c = params["att"].shape[1]
    return dict(w=w, b=b, att=params["att"], bias=params["bias"].reshape(1, c))


# ---------------------------------------------------------------------------
# GATLayer.forward
# ---------------------------------------------------------------------------
def gat_layer_forward(x, graph, packed, *, heads):
    n, d = x.shape
    c = d  # out_channels == embedding_dim
    e_pad = graph["e_pad"]
    hn = heads * n

    kernel = functools.partial(_gat_fused_kernel, heads=heads, c=c)
    latent, ae = pl.pallas_call(
        kernel,
        out_shape=(
            jax.ShapeDtypeStruct((n, c), jnp.float32),          # latent features
            jax.ShapeDtypeStruct((heads, e_pad), jnp.float32),  # per-edge alpha (padded)
        ),
        grid_spec=pltpu.PrefetchScalarGridSpec(
            num_scalar_prefetch=0,
            grid=(1,),  # single grid step: whole layer in one kernel invocation
            in_specs=[
                pl.BlockSpec((n, d), lambda i: (0, 0)),                 # x
                pl.BlockSpec((d, 2 * heads * c), lambda i: (0, 0)),     # W_l | W_r
                pl.BlockSpec((1, 2 * heads * c), lambda i: (0, 0)),     # b_l | b_r
                pl.BlockSpec((heads, c), lambda i: (0, 0)),             # att
                pl.BlockSpec((n, n), lambda i: (0, 0)),                 # adjacency
                pl.BlockSpec((1, c), lambda i: (0, 0)),                 # output bias
                pl.BlockSpec((n, e_pad), lambda i: (0, 0)),             # src one-hot
                pl.BlockSpec((n, e_pad), lambda i: (0, 0)),             # tgt one-hot
                pl.BlockSpec((hn, hn), lambda i: (0, 0)),               # head block mask
            ],
            out_specs=[
                pl.BlockSpec((n, c), lambda i: (0, 0)),
                pl.BlockSpec((heads, e_pad), lambda i: (0, 0)),
            ],
        ),
        compiler_params=pltpu.CompilerParams(dimension_semantics=("arbitrary",)),
    )(x, packed["w"], packed["b"], packed["att"], graph["adj"], packed["bias"],
      graph["src_sel"], graph["tgt_sel"], graph["headmask"])

    att_edge = ae[:, :graph["e_sl"]].T        # [E + N, heads], PyG ordering
    return latent, (graph["edge_index_sl"], att_edge)


# ---------------------------------------------------------------------------
# Pure-JAX reference (for correctness check)
# ---------------------------------------------------------------------------
def gatv2_reference(x, edge_index, params, *, heads):
    n, d = x.shape
    c = d
    xl = (x @ params["w_l"] + params["b_l"]).reshape(n, heads, c).transpose(1, 0, 2)
    xr = (x @ params["w_r"] + params["b_r"]).reshape(n, heads, c).transpose(1, 0, 2)
    src, tgt = edge_index[0], edge_index[1]
    adj = jnp.zeros((n, n), jnp.float32).at[tgt, src].set(1.0)
    adj = adj.at[jnp.arange(n), jnp.arange(n)].set(1.0)

    e = xr[:, :, None, :] + xl[:, None, :, :]                    # (H, N, N, C)
    e = jnp.where(e >= 0.0, e, NEG_SLOPE * e)
    s = jnp.sum(e * params["att"][:, None, None, :], axis=-1)    # (H, N, N)
    mask = adj[None] > 0.0
    s = jnp.where(mask, s, -1e30)
    p = jnp.where(mask, jnp.exp(s - jnp.max(s, axis=-1, keepdims=True)), 0.0)
    alpha = p / jnp.sum(p, axis=-1, keepdims=True)
    out = jnp.einsum("hij,hjc->hic", alpha, xl).mean(axis=0) + params["bias"]
    return out, alpha


def init_params(key, embedding_dim, heads):
    d = embedding_dim
    c = embedding_dim
    hc = heads * c
    ks = jax.random.split(key, 3)

    def glorot(k, shape):
        lim = (6.0 / (shape[0] + shape[-1])) ** 0.5
        return jax.random.uniform(k, shape, jnp.float32, -lim, lim)

    return dict(
        w_l=glorot(ks[0], (d, hc)),
        b_l=jnp.zeros((hc,), jnp.float32),
        w_r=glorot(ks[1], (d, hc)),
        b_r=jnp.zeros((hc,), jnp.float32),
        att=glorot(ks[2], (heads, c)),
        bias=jnp.zeros((c,), jnp.float32),
    )


if __name__ == "__main__":
    N_AGENTS = 8
    EMB = 128     # GATLayer default embedding_dim
    HEADS = 8     # GATLayer default heads

    key = jax.random.PRNGKey(0)
    kx, kp = jax.random.split(key)
    x = jax.random.normal(kx, (N_AGENTS, EMB), jnp.float32)

    # Bidirectional ring communication topology: [2, E] (src row, tgt row).
    idx = jnp.arange(N_AGENTS, dtype=jnp.int32)
    src = jnp.concatenate([idx, (idx + 1) % N_AGENTS])
    tgt = jnp.concatenate([(idx + 1) % N_AGENTS, idx])
    edge_index = jnp.stack([src, tgt])

    params = init_params(kp, EMB, HEADS)

    # Static per-topology / per-parameter preprocessing (computed once, reused).
    graph = prepare_graph(edge_index, N_AGENTS, HEADS)
    packed = pack_params(params)

    latent, (edge_index_sl, att_w) = gat_layer_forward(x, graph, packed, heads=HEADS)
    latent = jax.block_until_ready(latent)
    att_w = jax.block_until_ready(att_w)

    # Correctness check against pure-JAX reference.
    ref_latent, ref_alpha = gatv2_reference(x, edge_index, params, heads=HEADS)
    ref_att_w = ref_alpha[:, edge_index_sl[1], edge_index_sl[0]].T
    assert jnp.max(jnp.abs(latent - ref_latent)) < 5e-2, "latent mismatch"
    assert jnp.max(jnp.abs(att_w - ref_att_w)) < 5e-2, "attention mismatch"

    print("KERNEL_OK")
</pallas_src>

<mosaic_0001>
module attributes {stable_mosaic.version = 11 : i64} {
  func.func @_gat_fused_kernel(%arg0: i32, %arg1: memref<8x128xf32, #tpu.memory_space<vmem>>, %arg2: memref<128x2048xf32, #tpu.memory_space<vmem>>, %arg3: memref<1x2048xf32, #tpu.memory_space<vmem>>, %arg4: memref<8x128xf32, #tpu.memory_space<vmem>>, %arg5: memref<8x8xf32, #tpu.memory_space<vmem>>, %arg6: memref<1x128xf32, #tpu.memory_space<vmem>>, %arg7: memref<8x128xf32, #tpu.memory_space<vmem>>, %arg8: memref<8x128xf32, #tpu.memory_space<vmem>>, %arg9: memref<64x64xf32, #tpu.memory_space<vmem>>, %arg10: memref<8x128xf32, #tpu.memory_space<vmem>>, %arg11: memref<8x128xf32, #tpu.memory_space<vmem>>) attributes {dimension_semantics = [#tpu.dimension_semantics<arbitrary>], iteration_bounds = array<i64: 1>, scalar_prefetch = 0 : i64, scratch_operands = 0 : i64, tpu.core_type = #tpu.core_type<tc>, window_params = [{pipeline_mode = #tpu.pipeline_mode<synchronous>, transform_indices = @transform_0, window_bounds = array<i64: 8, 128>}, {pipeline_mode = #tpu.pipeline_mode<synchronous>, transform_indices = @transform_1, window_bounds = array<i64: 128, 2048>}, {pipeline_mode = #tpu.pipeline_mode<synchronous>, transform_indices = @transform_2, window_bounds = array<i64: 1, 2048>}, {pipeline_mode = #tpu.pipeline_mode<synchronous>, transform_indices = @transform_3, window_bounds = array<i64: 8, 128>}, {pipeline_mode = #tpu.pipeline_mode<synchronous>, transform_indices = @transform_4, window_bounds = array<i64: 8, 8>}, {pipeline_mode = #tpu.pipeline_mode<synchronous>, transform_indices = @transform_5, window_bounds = array<i64: 1, 128>}, {pipeline_mode = #tpu.pipeline_mode<synchronous>, transform_indices = @transform_6, window_bounds = array<i64: 8, 128>}, {pipeline_mode = #tpu.pipeline_mode<synchronous>, transform_indices = @transform_7, window_bounds = array<i64: 8, 128>}, {pipeline_mode = #tpu.pipeline_mode<synchronous>, transform_indices = @transform_8, window_bounds = array<i64: 64, 64>}, {pipeline_mode = #tpu.pipeline_mode<synchronous>, transform_indices = @transform_9, window_bounds = array<i64: 8, 128>}, {pipeline_mode = #tpu.pipeline_mode<synchronous>, transform_indices = @transform_10, window_bounds = array<i64: 8, 128>}]} {
    %c0 = arith.constant 0 : index
    %c0_0 = arith.constant 0 : index
    %0 = vector.load %arg1[%c0, %c0_0] : memref<8x128xf32, #tpu.memory_space<vmem>>, vector<8x128xf32>
    %c0_1 = arith.constant 0 : index
    %c0_2 = arith.constant 0 : index
    %1 = vector.load %arg2[%c0_1, %c0_2] : memref<128x2048xf32, #tpu.memory_space<vmem>>, vector<128x2048xf32>
    %cst = arith.constant dense<0.000000e+00> : vector<8x2048xf32>
    %2 = tpu.matmul %0, %1, %cst {dimension_numbers = #tpu.dot_dimension_numbers<[1], [0], [0], [1], [0, 0, 1, 1], [], []>} : vector<8x128xf32>, vector<128x2048xf32>, vector<8x2048xf32> -> vector<8x2048xf32>
    %c0_3 = arith.constant 0 : index
    %c0_4 = arith.constant 0 : index
    %3 = vector.load %arg3[%c0_3, %c0_4] : memref<1x2048xf32, #tpu.memory_space<vmem>>, vector<1x2048xf32>
    %4 = vector.broadcast %3 : vector<1x2048xf32> to vector<8x2048xf32>
    %5 = arith.addf %2, %4 : vector<8x2048xf32>
    %6 = vector.extract_strided_slice %5 {offsets = [0, 0], sizes = [8, 128], strides = [1, 1]} : vector<8x2048xf32> to vector<8x128xf32>
    %7 = vector.extract_strided_slice %5 {offsets = [0, 128], sizes = [8, 128], strides = [1, 1]} : vector<8x2048xf32> to vector<8x128xf32>
    %8 = vector.extract_strided_slice %5 {offsets = [0, 256], sizes = [8, 128], strides = [1, 1]} : vector<8x2048xf32> to vector<8x128xf32>
    %9 = vector.extract_strided_slice %5 {offsets = [0, 384], sizes = [8, 128], strides = [1, 1]} : vector<8x2048xf32> to vector<8x128xf32>
    %10 = vector.extract_strided_slice %5 {offsets = [0, 512], sizes = [8, 128], strides = [1, 1]} : vector<8x2048xf32> to vector<8x128xf32>
    %11 = vector.extract_strided_slice %5 {offsets = [0, 640], sizes = [8, 128], strides = [1, 1]} : vector<8x2048xf32> to vector<8x128xf32>
    %12 = vector.extract_strided_slice %5 {offsets = [0, 768], sizes = [8, 128], strides = [1, 1]} : vector<8x2048xf32> to vector<8x128xf32>
    %13 = vector.extract_strided_slice %5 {offsets = [0, 896], sizes = [8, 128], strides = [1, 1]} : vector<8x2048xf32> to vector<8x128xf32>
    %14 = tpu.concatenate %6, %7, %8, %9, %10, %11, %12, %13 in 0 : vector<8x128xf32>, vector<8x128xf32>, vector<8x128xf32>, vector<8x128xf32>, vector<8x128xf32>, vector<8x128xf32>, vector<8x128xf32>, vector<8x128xf32> -> vector<64x128xf32>
    %15 = vector.extract_strided_slice %5 {offsets = [0, 1024], sizes = [8, 128], strides = [1, 1]} : vector<8x2048xf32> to vector<8x128xf32>
    %16 = vector.extract_strided_slice %5 {offsets = [0, 1152], sizes = [8, 128], strides = [1, 1]} : vector<8x2048xf32> to vector<8x128xf32>
    %17 = vector.extract_strided_slice %5 {offsets = [0, 1280], sizes = [8, 128], strides = [1, 1]} : vector<8x2048xf32> to vector<8x128xf32>
    %18 = vector.extract_strided_slice %5 {offsets = [0, 1408], sizes = [8, 128], strides = [1, 1]} : vector<8x2048xf32> to vector<8x128xf32>
    %19 = vector.extract_strided_slice %5 {offsets = [0, 1536], sizes = [8, 128], strides = [1, 1]} : vector<8x2048xf32> to vector<8x128xf32>
    %20 = vector.extract_strided_slice %5 {offsets = [0, 1664], sizes = [8, 128], strides = [1, 1]} : vector<8x2048xf32> to vector<8x128xf32>
    %21 = vector.extract_strided_slice %5 {offsets = [0, 1792], sizes = [8, 128], strides = [1, 1]} : vector<8x2048xf32> to vector<8x128xf32>
    %22 = vector.extract_strided_slice %5 {offsets = [0, 1920], sizes = [8, 128], strides = [1, 1]} : vector<8x2048xf32> to vector<8x128xf32>
    %23 = tpu.concatenate %15, %16, %17, %18, %19, %20, %21, %22 in 0 : vector<8x128xf32>, vector<8x128xf32>, vector<8x128xf32>, vector<8x128xf32>, vector<8x128xf32>, vector<8x128xf32>, vector<8x128xf32>, vector<8x128xf32> -> vector<64x128xf32>
    %24 = vector.shape_cast %23 : vector<64x128xf32> to vector<8x8x1x128xf32>
    %25 = vector.shape_cast %14 : vector<64x128xf32> to vector<8x1x8x128xf32>
    %26 = vector.broadcast %24 : vector<8x8x1x128xf32> to vector<8x8x8x128xf32>
    %27 = vector.broadcast %25 : vector<8x1x8x128xf32> to vector<8x8x8x128xf32>
    %28 = arith.addf %26, %27 : vector<8x8x8x128xf32>
    %cst_5 = arith.constant 0.000000e+00 : f32
    %29 = vector.broadcast %cst_5 : f32 to vector<8x8x8x128xf32>
    %30 = arith.cmpf oge, %28, %29 : vector<8x8x8x128xf32>
    %cst_6 = arith.constant 2.000000e-01 : f32
    %31 = vector.broadcast %cst_6 : f32 to vector<8x8x8x128xf32>
    %32 = arith.mulf %31, %28 : vector<8x8x8x128xf32>
    %33 = arith.select %30, %28, %32 : vector<8x8x8x128xi1>, vector<8x8x8x128xf32>
    %c0_7 = arith.constant 0 : index
    %c0_8 = arith.constant 0 : index
    %34 = vector.load %arg4[%c0_7, %c0_8] : memref<8x128xf32, #tpu.memory_space<vmem>>, vector<8x128xf32>
    %35 = vector.shape_cast %34 : vector<8x128xf32> to vector<8x1x1x128xf32>
    %36 = vector.broadcast %35 : vector<8x1x1x128xf32> to vector<8x8x8x128xf32>
    %37 = arith.mulf %33, %36 : vector<8x8x8x128xf32>
    %cst_9 = arith.constant dense<0.000000e+00> : vector<8x8x8xf32>
    %38 = vector.multi_reduction <add>, %37, %cst_9 [3] : vector<8x8x8x128xf32> to vector<8x8x8xf32>
    %39 = vector.shape_cast %38 : vector<8x8x8xf32> to vector<64x8xf32>
    %c0_10 = arith.constant 0 : index
    %c0_11 = arith.constant 0 : index
    %40 = vector.load %arg5[%c0_10, %c0_11] : memref<8x8xf32, #tpu.memory_space<vmem>>, vector<8x8xf32>
    %41 = tpu.concatenate %40, %40, %40, %40, %40, %40, %40, %40 in 0 : vector<8x8xf32>, vector<8x8xf32>, vector<8x8xf32>, vector<8x8xf32>, vector<8x8xf32>, vector<8x8xf32>, vector<8x8xf32>, vector<8x8xf32> -> vector<64x8xf32>
    %cst_12 = arith.constant 0.000000e+00 : f32
    %42 = vector.broadcast %cst_12 : f32 to vector<64x8xf32>
    %43 = arith.cmpf ogt, %41, %42 : vector<64x8xf32>
    %cst_13 = arith.constant -1.000000e+30 : f32
    %44 = vector.broadcast %cst_13 : f32 to vector<64x8xf32>
    %45 = arith.select %43, %39, %44 : vector<64x8xi1>, vector<64x8xf32>
    %cst_14 = arith.constant dense<0xFF800000> : vector<64xf32>
    %46 = vector.multi_reduction <maximumf>, %45, %cst_14 [1] : vector<64x8xf32> to vector<64xf32>
    %47 = vector.shape_cast %46 : vector<64xf32> to vector<64x1xf32>
    %48 = vector.broadcast %47 : vector<64x1xf32> to vector<64x8xf32>
    %49 = arith.subf %45, %48 : vector<64x8xf32>
    %50 = math.exp %49 : vector<64x8xf32>
    %cst_15 = arith.constant 0.000000e+00 : f32
    %51 = vector.broadcast %cst_15 : f32 to vector<64x8xf32>
    %52 = arith.select %43, %50, %51 : vector<64x8xi1>, vector<64x8xf32>
    %cst_16 = arith.constant dense<0.000000e+00> : vector<64xf32>
    %53 = vector.multi_reduction <add>, %52, %cst_16 [1] : vector<64x8xf32> to vector<64xf32>
    %54 = vector.shape_cast %53 : vector<64xf32> to vector<64x1xf32>
    %cst_17 = arith.constant 9.99999968E-21 : f32
    %55 = vector.broadcast %cst_17 : f32 to vector<64x1xf32>
    %56 = arith.maximumf %54, %55 : vector<64x1xf32>
    %57 = tpu.reciprocal %56 {approx = true} : vector<64x1xf32> -> vector<64x1xf32>
    %58 = vector.broadcast %57 : vector<64x1xf32> to vector<64x8xf32>
    %59 = arith.mulf %52, %58 : vector<64x8xf32>
    %60 = tpu.concatenate %59, %59, %59, %59, %59, %59, %59, %59 in 1 : vector<64x8xf32>, vector<64x8xf32>, vector<64x8xf32>, vector<64x8xf32>, vector<64x8xf32>, vector<64x8xf32>, vector<64x8xf32>, vector<64x8xf32> -> vector<64x64xf32>
    %c0_18 = arith.constant 0 : index
    %c0_19 = arith.constant 0 : index
    %61 = vector.load %arg9[%c0_18, %c0_19] : memref<64x64xf32, #tpu.memory_space<vmem>>, vector<64x64xf32>
    %62 = arith.mulf %60, %61 : vector<64x64xf32>
    %cst_20 = arith.constant dense<0.000000e+00> : vector<64x128xf32>
    %63 = tpu.matmul %62, %14, %cst_20 {dimension_numbers = #tpu.dot_dimension_numbers<[1], [0], [0], [1], [0, 0, 1, 1], [], []>} : vector<64x64xf32>, vector<64x128xf32>, vector<64x128xf32> -> vector<64x128xf32>
    %64 = vector.shape_cast %63 : vector<64x128xf32> to vector<8x8x128xf32>
    %cst_21 = arith.constant dense<0.000000e+00> : vector<8x128xf32>
    %65 = vector.multi_reduction <add>, %64, %cst_21 [0] : vector<8x8x128xf32> to vector<8x128xf32>
    %cst_22 = arith.constant 1.250000e-01 : f32
    %66 = vector.broadcast %cst_22 : f32 to vector<8x128xf32>
    %67 = arith.mulf %65, %66 : vector<8x128xf32>
    %c0_23 = arith.constant 0 : index
    %c0_24 = arith.constant 0 : index
    %68 = vector.load %arg6[%c0_23, %c0_24] : memref<1x128xf32, #tpu.memory_space<vmem>>, vector<1x128xf32>
    %69 = vector.broadcast %68 : vector<1x128xf32> to vector<8x128xf32>
    %70 = arith.addf %67, %69 : vector<8x128xf32>
    %c0_25 = arith.constant 0 : index
    %c0_26 = arith.constant 0 : index
    %71 = vector.load %arg10[%c0_25, %c0_26] : memref<8x128xf32, #tpu.memory_space<vmem>>, vector<8x128xf32>
    tpu.vector_store %arg10[%c0_25, %c0_26], %70 {strides = array<i32>} : memref<8x128xf32, #tpu.memory_space<vmem>>, vector<8x128xf32>,
    %c0_27 = arith.constant 0 : index
    %c0_28 = arith.constant 0 : index
    %72 = vector.load %arg7[%c0_27, %c0_28] : memref<8x128xf32, #tpu.memory_space<vmem>>, vector<8x128xf32>
    %cst_29 = arith.constant dense<0.000000e+00> : vector<64x128xf32>
    %73 = tpu.matmul %59, %72, %cst_29 {dimension_numbers = #tpu.dot_dimension_numbers<[1], [0], [0], [1], [0, 0, 1, 1], [], []>} : vector<64x8xf32>, vector<8x128xf32>, vector<64x128xf32> -> vector<64x128xf32>
    %c0_30 = arith.constant 0 : index
    %c0_31 = arith.constant 0 : index
    %74 = vector.load %arg8[%c0_30, %c0_31] : memref<8x128xf32, #tpu.memory_space<vmem>>, vector<8x128xf32>
    %75 = tpu.concatenate %74, %74, %74, %74, %74, %74, %74, %74 in 0 : vector<8x128xf32>, vector<8x128xf32>, vector<8x128xf32>, vector<8x128xf32>, vector<8x128xf32>, vector<8x128xf32>, vector<8x128xf32>, vector<8x128xf32> -> vector<64x128xf32>
    %76 = arith.mulf %73, %75 : vector<64x128xf32>
    %77 = vector.shape_cast %76 : vector<64x128xf32> to vector<8x8x128xf32>
    %cst_32 = arith.constant dense<0.000000e+00> : vector<8x128xf32>
    %78 = vector.multi_reduction <add>, %77, %cst_32 [1] : vector<8x8x128xf32> to vector<8x128xf32>
    %c0_33 = arith.constant 0 : index
    %c0_34 = arith.constant 0 : index
    %79 = vector.load %arg11[%c0_33, %c0_34] : memref<8x128xf32, #tpu.memory_space<vmem>>, vector<8x128xf32>
    tpu.vector_store %arg11[%c0_33, %c0_34], %78 {strides = array<i32>} : memref<8x128xf32, #tpu.memory_space<vmem>>, vector<8x128xf32>,
    return
  }
  func.func @transform_0(%arg0: i32) -> (i32, i32) {
    %c0_i32 = arith.constant 0 : i32
    %c0_i32_0 = arith.constant 0 : i32
    %c0_i32_1 = arith.constant 0 : i32
    return %c0_i32, %c0_i32_0 : i32, i32
  }
  func.func @transform_1(%arg0: i32) -> (i32, i32) {
    %c0_i32 = arith.constant 0 : i32
    %c0_i32_0 = arith.constant 0 : i32
    %c0_i32_1 = arith.constant 0 : i32
    return %c0_i32, %c0_i32_0 : i32, i32
  }
  func.func @transform_2(%arg0: i32) -> (i32, i32) {
    %c0_i32 = arith.constant 0 : i32
    %c0_i32_0 = arith.constant 0 : i32
    %c0_i32_1 = arith.constant 0 : i32
    return %c0_i32, %c0_i32_0 : i32, i32
  }
  func.func @transform_3(%arg0: i32) -> (i32, i32) {
    %c0_i32 = arith.constant 0 : i32
    %c0_i32_0 = arith.constant 0 : i32
    %c0_i32_1 = arith.constant 0 : i32
    return %c0_i32, %c0_i32_0 : i32, i32
  }
  func.func @transform_4(%arg0: i32) -> (i32, i32) {
    %c0_i32 = arith.constant 0 : i32
    %c0_i32_0 = arith.constant 0 : i32
    %c0_i32_1 = arith.constant 0 : i32
    return %c0_i32, %c0_i32_0 : i32, i32
  }
  func.func @transform_5(%arg0: i32) -> (i32, i32) {
    %c0_i32 = arith.constant 0 : i32
    %c0_i32_0 = arith.constant 0 : i32
    %c0_i32_1 = arith.constant 0 : i32
    return %c0_i32, %c0_i32_0 : i32, i32
  }
  func.func @transform_6(%arg0: i32) -> (i32, i32) {
    %c0_i32 = arith.constant 0 : i32
    %c0_i32_0 = arith.constant 0 : i32
    %c0_i32_1 = arith.constant 0 : i32
    return %c0_i32, %c0_i32_0 : i32, i32
  }
  func.func @transform_7(%arg0: i32) -> (i32, i32) {
    %c0_i32 = arith.constant 0 : i32
    %c0_i32_0 = arith.constant 0 : i32
    %c0_i32_1 = arith.constant 0 : i32
    return %c0_i32, %c0_i32_0 : i32, i32
  }
  func.func @transform_8(%arg0: i32) -> (i32, i32) {
    %c0_i32 = arith.constant 0 : i32
    %c0_i32_0 = arith.constant 0 : i32
    %c0_i32_1 = arith.constant 0 : i32
    return %c0_i32, %c0_i32_0 : i32, i32
  }
  func.func @transform_9(%arg0: i32) -> (i32, i32) {
    %c0_i32 = arith.constant 0 : i32
    %c0_i32_0 = arith.constant 0 : i32
    %c0_i32_1 = arith.constant 0 : i32
    return %c0_i32, %c0_i32_0 : i32, i32
  }
  func.func @transform_10(%arg0: i32) -> (i32, i32) {
    %c0_i32 = arith.constant 0 : i32
    %c0_i32_0 = arith.constant 0 : i32
    %c0_i32_1 = arith.constant 0 : i32
    return %c0_i32, %c0_i32_0 : i32, i32
  }
}

</mosaic_0001>

<llo_original>
// kernel: tpu_custom_call.1
$region0: #{tpu_custom_call.1}
  #allocation0 [shape = 'u32[]', space=smem, size = 0x4, offset = 0x4, fixed_abs, tag = 'smem constant byte address 0x4 - core index']
  #allocation1 [shape = 'u32[144,128]{1,0:T(1,128)}', space=vmem, size = 0x12000, scoped, tag = 'internal scratch']
  %s0 = inlined_call_operand.hbm [shape: f32[8,128], index: 0, kind: input, shape index: {}]
  %s1 = inlined_call_operand.hbm [shape: f32[128,2048], index: 1, kind: input, shape index: {}]
  %s2 = inlined_call_operand.hbm [shape: f32[1,2048], index: 2, kind: input, shape index: {}]
  %s3 = inlined_call_operand.vmem [shape: f32[8,128], index: 3, kind: input, shape index: {}]
  %s4 = inlined_call_operand.hbm [shape: f32[8,8], index: 4, kind: input, shape index: {}]
  %s5 = inlined_call_operand.vmem [shape: f32[1,128], index: 5, kind: input, shape index: {}]
  %s6 = inlined_call_operand.vmem [shape: f32[8,128], index: 6, kind: input, shape index: {}]
  %s7 = inlined_call_operand.vmem [shape: f32[8,128], index: 7, kind: input, shape index: {}]
  %s8 = inlined_call_operand.hbm [shape: f32[64,64], index: 8, kind: input, shape index: {}]
  %s9 = inlined_call_operand.hbm [shape: f32[8,128], index: 9, kind: output, shape index: {0}]
  %s10 = inlined_call_operand.hbm [shape: f32[8,128], index: 10, kind: output, shape index: {1}]
  %11 = xla_tuple %s9, %s10
  %s12 = sld [smem:[#allocation0]]
  $region74: #{tpu_custom_call.1} parent=0
    _
  %s14 = ssub.s32 1, %s12
  %s15 = scalar_select 0, %s14, %s12
  $region1: #{tpu_custom_call.1} parent=0
    #allocation2 [shape = 'u8[4096]{0}', space=vmem, size = 0x1000, scoped, tag = 'input window, operand 0, single buffered']
    #allocation3 [shape = 's32[1]{0}', space=sflag, size = 0x4, scoped, tag = 'scoped memory for tpu_custom_call.1']
    #allocation4 [shape = 's32[1]{0}', space=sflag, size = 0x4, scoped, tag = 'scoped memory for tpu_custom_call.1']
    #allocation5 [shape = 'u8[1048576]{0}', space=vmem, size = 0x100000, scoped, tag = 'input window, operand 1, single buffered']
    #allocation6 [shape = 's32[1]{0}', space=sflag, size = 0x4, scoped, tag = 'scoped memory for tpu_custom_call.1']
    #allocation7 [shape = 'u8[8192]{0}', space=vmem, size = 0x2000, scoped, tag = 'input window, operand 2, single buffered']
    #allocation8 [shape = 'u8[4096]{0}', space=vmem, size = 0x1000, scoped, tag = 'input window, operand 4, single buffered']
    #allocation9 [shape = 's32[1]{0}', space=sflag, size = 0x4, scoped, tag = 'scoped memory for tpu_custom_call.1']
    #allocation10 [shape = 'u8[32768]{0}', space=vmem, size = 0x8000, scoped, tag = 'input window, operand 8, single buffered']
    #allocation11 [shape = 'u8[4096]{0}', space=vmem, size = 0x1000, scoped, tag = 'output window, operand 0, single buffered']
    #allocation12 [shape = 'u8[4096]{0}', space=vmem, size = 0x1000, scoped, tag = 'output window, operand 1, single buffered']
    #allocation13 [shape = 's32[1]{0}', space=sflag, size = 0x4, scoped, tag = 'scoped memory for tpu_custom_call.1']
    %16 = vsyncpa [#allocation3], 0
    %17 = vsyncpa [#allocation6], 0
    %18 = vsyncpa [#allocation9], 0
    %19 = vsyncpa [#allocation4], 0
    %20 = vsyncpa [#allocation13], 0
    // Predicated region
    $region2: #{tpu_custom_call.1} parent=1 // pred_check
      _
    $region3: #{tpu_custom_call.1} parent=1 // pred_check_branch
      %22 = sbr.rel (0) target = $region5
    $region4: #{tpu_custom_call.1} parent=1 // pred_region
      %s24 = ssub.s32 128, 128
      %25 = vsyncadd [#allocation3], %s24
      %s27 = sshll.u32 [#allocation2], 4
      %s28 = int_to_ptr.vmem [resolvable:$true] %s27
      %30 = dma.hbm_to_vmem [thread:$0]  %s0, 128, %s28, [#allocation3]
    $region5: #{tpu_custom_call.1} parent=1 // pred_fallthru
      _
    // Predicated region
    $region6: #{tpu_custom_call.1} parent=1 // pred_check
      _
    $region7: #{tpu_custom_call.1} parent=1 // pred_check_branch
      %32 = sbr.rel (0) target = $region9
    $region8: #{tpu_custom_call.1} parent=1 // pred_region
      %s34 = ssub.s32 32768, 32768
      %35 = vsyncadd [#allocation6], %s34
      %s36 = sshll.u32 [#allocation5], 4
      %s37 = int_to_ptr.vmem [resolvable:$true] %s36
      %42 = dma.hbm_to_vmem [thread:$0]  %s1, 32768, %s37, [#allocation6], 2048, 2048, 128
    $region9: #{tpu_custom_call.1} parent=1 // pred_fallthru
      _
    // Predicated region
    $region10: #{tpu_custom_call.1} parent=1 // pred_check
      _
    $region11: #{tpu_custom_call.1} parent=1 // pred_check_branch
      %44 = sbr.rel (0) target = $region13
    $region12: #{tpu_custom_call.1} parent=1 // pred_region
      %s46 = ssub.s32 256, 256
      %47 = vsyncadd [#allocation6], %s46
      %s49 = sshll.u32 [#allocation7], 4
      %s50 = int_to_ptr.vmem [resolvable:$true] %s49
      %52 = dma.hbm_to_vmem [thread:$0]  %s2, 256, %s50, [#allocation6]
    $region13: #{tpu_custom_call.1} parent=1 // pred_fallthru
      _
    // Predicated region
    $region14: #{tpu_custom_call.1} parent=1 // pred_check
      _
    $region15: #{tpu_custom_call.1} parent=1 // pred_check_branch
      %54 = sbr.rel (0) target = $region17
    $region16: #{tpu_custom_call.1} parent=1 // pred_region
      _
    $region17: #{tpu_custom_call.1} parent=1 // pred_fallthru
      _
    // Predicated region
    $region18: #{tpu_custom_call.1} parent=1 // pred_check
      _
    $region19: #{tpu_custom_call.1} parent=1 // pred_check_branch
      %56 = sbr.rel (0) target = $region21
    $region20: #{tpu_custom_call.1} parent=1 // pred_region
      %s58 = ssub.s32 128, 128
      %59 = vsyncadd [#allocation9], %s58
      %s61 = sshll.u32 [#allocation8], 4
      %s62 = int_to_ptr.vmem [resolvable:$true] %s61
      %64 = dma.hbm_to_vmem [thread:$0]  %s4, 128, %s62, [#allocation9]
    $region21: #{tpu_custom_call.1} parent=1 // pred_fallthru
      _
    // Predicated region
    $region22: #{tpu_custom_call.1} parent=1 // pred_check
      _
    $region23: #{tpu_custom_call.1} parent=1 // pred_check_branch
      %66 = sbr.rel (0) target = $region25
    $region24: #{tpu_custom_call.1} parent=1 // pred_region
      _
    $region25: #{tpu_custom_call.1} parent=1 // pred_fallthru
      _
    // Predicated region
    $region26: #{tpu_custom_call.1} parent=1 // pred_check
      _
    $region27: #{tpu_custom_call.1} parent=1 // pred_check_branch
      %68 = sbr.rel (0) target = $region29
    $region28: #{tpu_custom_call.1} parent=1 // pred_region
      _
    $region29: #{tpu_custom_call.1} parent=1 // pred_fallthru
      _
    // Predicated region
    $region30: #{tpu_custom_call.1} parent=1 // pred_check
      _
    $region31: #{tpu_custom_call.1} parent=1 // pred_check_branch
      %70 = sbr.rel (0) target = $region33
    $region32: #{tpu_custom_call.1} parent=1 // pred_region
      _
    $region33: #{tpu_custom_call.1} parent=1 // pred_fallthru
      _
    // Predicated region
    $region34: #{tpu_custom_call.1} parent=1 // pred_check
      _
    $region35: #{tpu_custom_call.1} parent=1 // pred_check_branch
      %72 = sbr.rel (0) target = $region37
    $region36: #{tpu_custom_call.1} parent=1 // pred_region
      %s74 = ssub.s32 1024, 1024
      %75 = vsyncadd [#allocation9], %s74
      %s76 = sshll.u32 [#allocation10], 4
      %s77 = int_to_ptr.vmem [resolvable:$true] %s76
      %82 = dma.hbm_to_vmem [thread:$0]  %s8, 1024, %s77, [#allocation9], 128, 128, 8
    $region37: #{tpu_custom_call.1} parent=1 // pred_fallthru
      _
    // Predicated region
    $region38: #{tpu_custom_call.1} parent=1 // pred_check
      _
    $region39: #{tpu_custom_call.1} parent=1 // pred_check_branch
      %84 = sbr.rel (0) target = $region41
    $region40: #{tpu_custom_call.1} parent=1 // pred_region
      %85 = dma.done [#allocation3], 128
    $region41: #{tpu_custom_call.1} parent=1 // pred_fallthru
      _
    // Predicated region
    $region42: #{tpu_custom_call.1} parent=1 // pred_check
      _
    $region43: #{tpu_custom_call.1} parent=1 // pred_check_branch
      %87 = sbr.rel (0) target = $region45
    $region44: #{tpu_custom_call.1} parent=1 // pred_region
      %88 = dma.done [#allocation6], 32768
    $region45: #{tpu_custom_call.1} parent=1 // pred_fallthru
      _
    // Predicated region
    $region46: #{tpu_custom_call.1} parent=1 // pred_check
      _
    $region47: #{tpu_custom_call.1} parent=1 // pred_check_branch
      %90 = sbr.rel (0) target = $region49
    $region48: #{tpu_custom_call.1} parent=1 // pred_region
      %91 = dma.done [#allocation6], 256
    $region49: #{tpu_custom_call.1} parent=1 // pred_fallthru
      _
    // Predicated region
    $region50: #{tpu_custom_call.1} parent=1 // pred_check
      _
    $region51: #{tpu_custom_call.1} parent=1 // pred_check_branch
      %93 = sbr.rel (0) target = $region53
    $region52: #{tpu_custom_call.1} parent=1 // pred_region
      %94 = dma.done [#allocation9], 128
    $region53: #{tpu_custom_call.1} parent=1 // pred_fallthru
      _
    // Predicated region
    $region54: #{tpu_custom_call.1} parent=1 // pred_check
      _
    $region55: #{tpu_custom_call.1} parent=1 // pred_check_branch
      %96 = sbr.rel (0) target = $region57
    $region56: #{tpu_custom_call.1} parent=1 // pred_region
      %97 = dma.done [#allocation9], 1024
    $region57: #{tpu_custom_call.1} parent=1 // pred_fallthru
      _
    %v98 = vld [vmem:[#allocation2] sm:$0xff]
    %v99 = vld [vmem:[#allocation5] sm:$0xff]
    %v100 = vld [vmem:[#allocation5 + $0x8] sm:$0xff]
    %v101 = vld [vmem:[#allocation5 + $0x10] sm:$0xff]
    %v102 = vld [vmem:[#allocation5 + $0x18] sm:$0xff]
    %v103 = vld [vmem:[#allocation5 + $0x20] sm:$0xff]
    %v104 = vld [vmem:[#allocation5 + $0x28] sm:$0xff]
    %v105 = vld [vmem:[#allocation5 + $0x30] sm:$0xff]
    %v106 = vld [vmem:[#allocation5 + $0x38] sm:$0xff]
    %v107 = vld [vmem:[#allocation5 + $0x40] sm:$0xff]
    %v108 = vld [vmem:[#allocation5 + $0x48] sm:$0xff]
    %v109 = vld [vmem:[#allocation5 + $0x50] sm:$0xff]
    %v110 = vld [vmem:[#allocation5 + $0x58] sm:$0xff]
    %v111 = vld [vmem:[#allocation5 + $0x60] sm:$0xff]
    %v112 = vld [vmem:[#allocation5 + $0x68] sm:$0xff]
    %v113 = vld [vmem:[#allocation5 + $0x70] sm:$0xff]
    %v114 = vld [vmem:[#allocation5 + $0x78] sm:$0xff]
    %v115 = vld [vmem:[#allocation5 + $0x80] sm:$0xff]
    %v116 = vld [vmem:[#allocation5 + $0x88] sm:$0xff]
    %v117 = vld [vmem:[#allocation5 + $0x90] sm:$0xff]
    %v118 = vld [vmem:[#allocation5 + $0x98] sm:$0xff]
    %v119 = vld [vmem:[#allocation5 + $0xa0] sm:$0xff]
    %v120 = vld [vmem:[#allocation5 + $0xa8] sm:$0xff]
    %v121 = vld [vmem:[#allocation5 + $0xb0] sm:$0xff]
    %v122 = vld [vmem:[#allocation5 + $0xb8] sm:$0xff]
    %v123 = vld [vmem:[#allocation5 + $0xc0] sm:$0xff]
    %v124 = vld [vmem:[#allocation5 + $0xc8] sm:$0xff]
    %v125 = vld [vmem:[#allocation5 + $0xd0] sm:$0xff]
    %v126 = vld [vmem:[#allocation5 + $0xd8] sm:$0xff]
    %v127 = vld [vmem:[#allocation5 + $0xe0] sm:$0xff]
    %v128 = vld [vmem:[#allocation5 + $0xe8] sm:$0xff]
    %v129 = vld [vmem:[#allocation5 + $0xf0] sm:$0xff]
    %v130 = vld [vmem:[#allocation5 + $0xf8] sm:$0xff]
    %v131 = vld [vmem:[#allocation5 + $0x100] sm:$0xff]
    %v132 = vld [vmem:[#allocation5 + $0x108] sm:$0xff]
    %v133 = vld [vmem:[#allocation5 + $0x110] sm:$0xff]
    %v134 = vld [vmem:[#allocation5 + $0x118] sm:$0xff]
    %v135 = vld [vmem:[#allocation5 + $0x120] sm:$0xff]
    %v136 = vld [vmem:[#allocation5 + $0x128] sm:$0xff]
    %v137 = vld [vmem:[#allocation5 + $0x130] sm:$0xff]
    %v138 = vld [vmem:[#allocation5 + $0x138] sm:$0xff]
    %v139 = vld [vmem:[#allocation5 + $0x140] sm:$0xff]
    %v140 = vld [vmem:[#allocation5 + $0x148] sm:$0xff]
    %v141 = vld [vmem:[#allocation5 + $0x150] sm:$0xff]
    %v142 = vld [vmem:[#allocation5 + $0x158] sm:$0xff]
    %v143 = vld [vmem:[#allocation5 + $0x160] sm:$0xff]
    %v144 = vld [vmem:[#allocation5 + $0x168] sm:$0xff]
    %v145 = vld [vmem:[#allocation5 + $0x170] sm:$0xff]
    %v146 = vld [vmem:[#allocation5 + $0x178] sm:$0xff]
    %v147 = vld [vmem:[#allocation5 + $0x180] sm:$0xff]
    %v148 = vld [vmem:[#allocation5 + $0x188] sm:$0xff]
    %v149 = vld [vmem:[#allocation5 + $0x190] sm:$0xff]
    %v150 = vld [vmem:[#allocation5 + $0x198] sm:$0xff]
    %v151 = vld [vmem:[#allocation5 + $0x1a0] sm:$0xff]
    %v152 = vld [vmem:[#allocation5 + $0x1a8] sm:$0xff]
    %v153 = vld [vmem:[#allocation5 + $0x1b0] sm:$0xff]
    %v154 = vld [vmem:[#allocation5 + $0x1b8] sm:$0xff]
    %v155 = vld [vmem:[#allocation5 + $0x1c0] sm:$0xff]
    %v156 = vld [vmem:[#allocation5 + $0x1c8] sm:$0xff]
    %v157 = vld [vmem:[#allocation5 + $0x1d0] sm:$0xff]
    %v158 = vld [vmem:[#allocation5 + $0x1d8] sm:$0xff]
    %v159 = vld [vmem:[#allocation5 + $0x1e0] sm:$0xff]
    %v160 = vld [vmem:[#allocation5 + $0x1e8] sm:$0xff]
    %v161 = vld [vmem:[#allocation5 + $0x1f0] sm:$0xff]
    %v162 = vld [vmem:[#allocation5 + $0x1f8] sm:$0xff]
    %v163 = vld [vmem:[#allocation5 + $0x200] sm:$0xff]
    %v164 = vld [vmem:[#allocation5 + $0x208] sm:$0xff]
    %v165 = vld [vmem:[#allocation5 + $0x210] sm:$0xff]
    %v166 = vld [vmem:[#allocation5 + $0x218] sm:$0xff]
    %v167 = vld [vmem:[#allocation5 + $0x220] sm:$0xff]
    %v168 = vld [vmem:[#allocation5 + $0x228] sm:$0xff]
    %v169 = vld [vmem:[#allocation5 + $0x230] sm:$0xff]
    %v170 = vld [vmem:[#allocation5 + $0x238] sm:$0xff]
    %v171 = vld [vmem:[#allocation5 + $0x240] sm:$0xff]
    %v172 = vld [vmem:[#allocation5 + $0x248] sm:$0xff]
    %v173 = vld [vmem:[#allocation5 + $0x250] sm:$0xff]
    %v174 = vld [vmem:[#allocation5 + $0x258] sm:$0xff]
    %v175 = vld [vmem:[#allocation5 + $0x260] sm:$0xff]
    %v176 = vld [vmem:[#allocation5 + $0x268] sm:$0xff]
    %v177 = vld [vmem:[#allocation5 + $0x270] sm:$0xff]
    %v178 = vld [vmem:[#allocation5 + $0x278] sm:$0xff]
    %v179 = vld [vmem:[#allocation5 + $0x280] sm:$0xff]
    %v180 = vld [vmem:[#allocation5 + $0x288] sm:$0xff]
    %v181 = vld [vmem:[#allocation5 + $0x290] sm:$0xff]
    %v182 = vld [vmem:[#allocation5 + $0x298] sm:$0xff]
    %v183 = vld [vmem:[#allocation5 + $0x2a0] sm:$0xff]
    %v184 = vld [vmem:[#allocation5 + $0x2a8] sm:$0xff]
    %v185 = vld [vmem:[#allocation5 + $0x2b0] sm:$0xff]
    %v186 = vld [vmem:[#allocation5 + $0x2b8] sm:$0xff]
    %v187 = vld [vmem:[#allocation5 + $0x2c0] sm:$0xff]
    %v188 = vld [vmem:[#allocation5 + $0x2c8] sm:$0xff]
    %v189 = vld [vmem:[#allocation5 + $0x2d0] sm:$0xff]
    %v190 = vld [vmem:[#allocation5 + $0x2d8] sm:$0xff]
    %v191 = vld [vmem:[#allocation5 + $0x2e0] sm:$0xff]
    %v192 = vld [vmem:[#allocation5 + $0x2e8] sm:$0xff]
    %v193 = vld [vmem:[#allocation5 + $0x2f0] sm:$0xff]
    %v194 = vld [vmem:[#allocation5 + $0x2f8] sm:$0xff]
    %v195 = vld [vmem:[#allocation5 + $0x300] sm:$0xff]
    %v196 = vld [vmem:[#allocation5 + $0x308] sm:$0xff]
    %v197 = vld [vmem:[#allocation5 + $0x310] sm:$0xff]
    %v198 = vld [vmem:[#allocation5 + $0x318] sm:$0xff]
    %v199 = vld [vmem:[#allocation5 + $0x320] sm:$0xff]
    %v200 = vld [vmem:[#allocation5 + $0x328] sm:$0xff]
    %v201 = vld [vmem:[#allocation5 + $0x330] sm:$0xff]
    %v202 = vld [vmem:[#allocation5 + $0x338] sm:$0xff]
    %v203 = vld [vmem:[#allocation5 + $0x340] sm:$0xff]
    %v204 = vld [vmem:[#allocation5 + $0x348] sm:$0xff]
    %v205 = vld [vmem:[#allocation5 + $0x350] sm:$0xff]
    %v206 = vld [vmem:[#allocation5 + $0x358] sm:$0xff]
    %v207 = vld [vmem:[#allocation5 + $0x360] sm:$0xff]
    %v208 = vld [vmem:[#allocation5 + $0x368] sm:$0xff]
    %v209 = vld [vmem:[#allocation5 + $0x370] sm:$0xff]
    %v210 = vld [vmem:[#allocation5 + $0x378] sm:$0xff]
    %v211 = vld [vmem:[#allocation5 + $0x380] sm:$0xff]
    %v212 = vld [vmem:[#allocation5 + $0x388] sm:$0xff]
    %v213 = vld [vmem:[#allocation5 + $0x390] sm:$0xff]
    %v214 = vld [vmem:[#allocation5 + $0x398] sm:$0xff]
    %v215 = vld [vmem:[#allocation5 + $0x3a0] sm:$0xff]
    %v216 = vld [vmem:[#allocation5 + $0x3a8] sm:$0xff]
    %v217 = vld [vmem:[#allocation5 + $0x3b0] sm:$0xff]
    %v218 = vld [vmem:[#allocation5 + $0x3b8] sm:$0xff]
    %v219 = vld [vmem:[#allocation5 + $0x3c0] sm:$0xff]
    %v220 = vld [vmem:[#allocation5 + $0x3c8] sm:$0xff]
    %v221 = vld [vmem:[#allocation5 + $0x3d0] sm:$0xff]
    %v222 = vld [vmem:[#allocation5 + $0x3d8] sm:$0xff]
    %v223 = vld [vmem:[#allocation5 + $0x3e0] sm:$0xff]
    %v224 = vld [vmem:[#allocation5 + $0x3e8] sm:$0xff]
    %v225 = vld [vmem:[#allocation5 + $0x3f0] sm:$0xff]
    %v226 = vld [vmem:[#allocation5 + $0x3f8] sm:$0xff]
    %v227 = vld [vmem:[#allocation5 + $0x400] sm:$0xff]
    %v228 = vld [vmem:[#allocation5 + $0x408] sm:$0xff]
    %v229 = vld [vmem:[#allocation5 + $0x410] sm:$0xff]
    %v230 = vld [vmem:[#allocation5 + $0x418] sm:$0xff]
    %v231 = vld [vmem:[#allocation5 + $0x420] sm:$0xff]
    %v232 = vld [vmem:[#allocation5 + $0x428] sm:$0xff]
    %v233 = vld [vmem:[#allocation5 + $0x430] sm:$0xff]
    %v234 = vld [vmem:[#allocation5 + $0x438] sm:$0xff]
    %v235 = vld [vmem:[#allocation5 + $0x440] sm:$0xff]
    %v236 = vld [vmem:[#allocation5 + $0x448] sm:$0xff]
    %v237 = vld [vmem:[#allocation5 + $0x450] sm:$0xff]
    %v238 = vld [vmem:[#allocation5 + $0x458] sm:$0xff]
    %v239 = vld [vmem:[#allocation5 + $0x460] sm:$0xff]
    %v240 = vld [vmem:[#allocation5 + $0x468] sm:$0xff]
    %v241 = vld [vmem:[#allocation5 + $0x470] sm:$0xff]
    %v242 = vld [vmem:[#allocation5 + $0x478] sm:$0xff]
    %v243 = vld [vmem:[#allocation5 + $0x480] sm:$0xff]
    %v244 = vld [vmem:[#allocation5 + $0x488] sm:$0xff]
    %v245 = vld [vmem:[#allocation5 + $0x490] sm:$0xff]
    %v246 = vld [vmem:[#allocation5 + $0x498] sm:$0xff]
    %v247 = vld [vmem:[#allocation5 + $0x4a0] sm:$0xff]
    %v248 = vld [vmem:[#allocation5 + $0x4a8] sm:$0xff]
    %v249 = vld [vmem:[#allocation5 + $0x4b0] sm:$0xff]
    %v250 = vld [vmem:[#allocation5 + $0x4b8] sm:$0xff]
    %v251 = vld [vmem:[#allocation5 + $0x4c0] sm:$0xff]
    %v252 = vld [vmem:[#allocation5 + $0x4c8] sm:$0xff]
    %v253 = vld [vmem:[#allocation5 + $0x4d0] sm:$0xff]
    %v254 = vld [vmem:[#allocation5 + $0x4d8] sm:$0xff]
    %v255 = vld [vmem:[#allocation5 + $0x4e0] sm:$0xff]
    %v256 = vld [vmem:[#allocation5 + $0x4e8] sm:$0xff]
    %v257 = vld [vmem:[#allocation5 + $0x4f0] sm:$0xff]
    %v258 = vld [vmem:[#allocation5 + $0x4f8] sm:$0xff]
    %v259 = vld [vmem:[#allocation5 + $0x500] sm:$0xff]
    %v260 = vld [vmem:[#allocation5 + $0x508] sm:$0xff]
    %v261 = vld [vmem:[#allocation5 + $0x510] sm:$0xff]
    %v262 = vld [vmem:[#allocation5 + $0x518] sm:$0xff]
    %v263 = vld [vmem:[#allocation5 + $0x520] sm:$0xff]
    %v264 = vld [vmem:[#allocation5 + $0x528] sm:$0xff]
    %v265 = vld [vmem:[#allocation5 + $0x530] sm:$0xff]
    %v266 = vld [vmem:[#allocation5 + $0x538] sm:$0xff]
    %v267 = vld [vmem:[#allocation5 + $0x540] sm:$0xff]
    %v268 = vld [vmem:[#allocation5 + $0x548] sm:$0xff]
    %v269 = vld [vmem:[#allocation5 + $0x550] sm:$0xff]
    %v270 = vld [vmem:[#allocation5 + $0x558] sm:$0xff]
    %v271 = vld [vmem:[#allocation5 + $0x560] sm:$0xff]
    %v272 = vld [vmem:[#allocation5 + $0x568] sm:$0xff]
    %v273 = vld [vmem:[#allocation5 + $0x570] sm:$0xff]
    %v274 = vld [vmem:[#allocation5 + $0x578] sm:$0xff]
    %v275 = vld [vmem:[#allocation5 + $0x580] sm:$0xff]
    %v276 = vld [vmem:[#allocation5 + $0x588] sm:$0xff]
    %v277 = vld [vmem:[#allocation5 + $0x590] sm:$0xff]
    %v278 = vld [vmem:[#allocation5 + $0x598] sm:$0xff]
    %v279 = vld [vmem:[#allocation5 + $0x5a0] sm:$0xff]
    %v280 = vld [vmem:[#allocation5 + $0x5a8] sm:$0xff]
    %v281 = vld [vmem:[#allocation5 + $0x5b0] sm:$0xff]
    %v282 = vld [vmem:[#allocation5 + $0x5b8] sm:$0xff]
    %v283 = vld [vmem:[#allocation5 + $0x5c0] sm:$0xff]
    %v284 = vld [vmem:[#allocation5 + $0x5c8] sm:$0xff]
    %v285 = vld [vmem:[#allocation5 + $0x5d0] sm:$0xff]
    %v286 = vld [vmem:[#allocation5 + $0x5d8] sm:$0xff]
    %v287 = vld [vmem:[#allocation5 + $0x5e0] sm:$0xff]
    %v288 = vld [vmem:[#allocation5 + $0x5e8] sm:$0xff]
    %v289 = vld [vmem:[#allocation5 + $0x5f0] sm:$0xff]
    %v290 = vld [vmem:[#allocation5 + $0x5f8] sm:$0xff]
    %v291 = vld [vmem:[#allocation5 + $0x600] sm:$0xff]
    %v292 = vld [vmem:[#allocation5 + $0x608] sm:$0xff]
    %v293 = vld [vmem:[#allocation5 + $0x610] sm:$0xff]
    %v294 = vld [vmem:[#allocation5 + $0x618] sm:$0xff]
    %v295 = vld [vmem:[#allocation5 + $0x620] sm:$0xff]
    %v296 = vld [vmem:[#allocation5 + $0x628] sm:$0xff]
    %v297 = vld [vmem:[#allocation5 + $0x630] sm:$0xff]
    %v298 = vld [vmem:[#allocation5 + $0x638] sm:$0xff]
    %v299 = vld [vmem:[#allocation5 + $0x640] sm:$0xff]
    %v300 = vld [vmem:[#allocation5 + $0x648] sm:$0xff]
    %v301 = vld [vmem:[#allocation5 + $0x650] sm:$0xff]
    %v302 = vld [vmem:[#allocation5 + $0x658] sm:$0xff]
    %v303 = vld [vmem:[#allocation5 + $0x660] sm:$0xff]
    %v304 = vld [vmem:[#allocation5 + $0x668] sm:$0xff]
    %v305 = vld [vmem:[#allocation5 + $0x670] sm:$0xff]
    %v306 = vld [vmem:[#allocation5 + $0x678] sm:$0xff]
    %v307 = vld [vmem:[#allocation5 + $0x680] sm:$0xff]
    %v308 = vld [vmem:[#allocation5 + $0x688] sm:$0xff]
    %v309 = vld [vmem:[#allocation5 + $0x690] sm:$0xff]
    %v310 = vld [vmem:[#allocation5 + $0x698] sm:$0xff]
    %v311 = vld [vmem:[#allocation5 + $0x6a0] sm:$0xff]
    %v312 = vld [vmem:[#allocation5 + $0x6a8] sm:$0xff]
    %v313 = vld [vmem:[#allocation5 + $0x6b0] sm:$0xff]
    %v314 = vld [vmem:[#allocation5 + $0x6b8] sm:$0xff]
    %v315 = vld [vmem:[#allocation5 + $0x6c0] sm:$0xff]
    %v316 = vld [vmem:[#allocation5 + $0x6c8] sm:$0xff]
    %v317 = vld [vmem:[#allocation5 + $0x6d0] sm:$0xff]
    %v318 = vld [vmem:[#allocation5 + $0x6d8] sm:$0xff]
    %v319 = vld [vmem:[#allocation5 + $0x6e0] sm:$0xff]
    %v320 = vld [vmem:[#allocation5 + $0x6e8] sm:$0xff]
    %v321 = vld [vmem:[#allocation5 + $0x6f0] sm:$0xff]
    %v322 = vld [vmem:[#allocation5 + $0x6f8] sm:$0xff]
    %v323 = vld [vmem:[#allocation5 + $0x700] sm:$0xff]
    %v324 = vld [vmem:[#allocation5 + $0x708] sm:$0xff]
    %v325 = vld [vmem:[#allocation5 + $0x710] sm:$0xff]
    %v326 = vld [vmem:[#allocation5 + $0x718] sm:$0xff]
    %v327 = vld [vmem:[#allocation5 + $0x720] sm:$0xff]
    %v328 = vld [vmem:[#allocation5 + $0x728] sm:$0xff]
    %v329 = vld [vmem:[#allocation5 + $0x730] sm:$0xff]
    %v330 = vld [vmem:[#allocation5 + $0x738] sm:$0xff]
    %v331 = vld [vmem:[#allocation5 + $0x740] sm:$0xff]
    %v332 = vld [vmem:[#allocation5 + $0x748] sm:$0xff]
    %v333 = vld [vmem:[#allocation5 + $0x750] sm:$0xff]
    %v334 = vld [vmem:[#allocation5 + $0x758] sm:$0xff]
    %v335 = vld [vmem:[#allocation5 + $0x760] sm:$0xff]
    %v336 = vld [vmem:[#allocation5 + $0x768] sm:$0xff]
    %v337 = vld [vmem:[#allocation5 + $0x770] sm:$0xff]
    %v338 = vld [vmem:[#allocation5 + $0x778] sm:$0xff]
    %v339 = vld [vmem:[#allocation5 + $0x780] sm:$0xff]
    %v340 = vld [vmem:[#allocation5 + $0x788] sm:$0xff]
    %v341 = vld [vmem:[#allocation5 + $0x790] sm:$0xff]
    %v342 = vld [vmem:[#allocation5 + $0x798] sm:$0xff]
    %v343 = vld [vmem:[#allocation5 + $0x7a0] sm:$0xff]
    %v344 = vld [vmem:[#allocation5 + $0x7a8] sm:$0xff]
    %v345 = vld [vmem:[#allocation5 + $0x7b0] sm:$0xff]
    %v346 = vld [vmem:[#allocation5 + $0x7b8] sm:$0xff]
    %v347 = vld [vmem:[#allocation5 + $0x7c0] sm:$0xff]
    %v348 = vld [vmem:[#allocation5 + $0x7c8] sm:$0xff]
    %v349 = vld [vmem:[#allocation5 + $0x7d0] sm:$0xff]
    %v350 = vld [vmem:[#allocation5 + $0x7d8] sm:$0xff]
    %v351 = vld [vmem:[#allocation5 + $0x7e0] sm:$0xff]
    %v352 = vld [vmem:[#allocation5 + $0x7e8] sm:$0xff]
    %v353 = vld [vmem:[#allocation5 + $0x7f0] sm:$0xff]
    %v354 = vld [vmem:[#allocation5 + $0x7f8] sm:$0xff]
    %v355 = vld [vmem:[#allocation7] sm:$0xff]
    %v356 = vld [vmem:[#allocation7 + $0x8] sm:$0xff]
    %v359 = vlaneseq
    %v360 = vshrl.u32 %v359, 7
    %v361 = vsub.s32 0, %v360
    %v362 = vrot.slane %v355, %v361
    %v363 = vlaneseq
    %v364 = vshrl.u32 %v363, 7
    %v365 = vsub.s32 1, %v364
    %v366 = vrot.slane %v355, %v365
    %v367 = vlaneseq
    %v368 = vshrl.u32 %v367, 7
    %v369 = vsub.s32 2, %v368
    %v370 = vrot.slane %v355, %v369
    %v371 = vlaneseq
    %v372 = vshrl.u32 %v371, 7
    %v373 = vsub.s32 3, %v372
    %v374 = vrot.slane %v355, %v373
    %v375 = vlaneseq
    %v376 = vshrl.u32 %v375, 7
    %v377 = vsub.s32 4, %v376
    %v378 = vrot.slane %v355, %v377
    %v379 = vlaneseq
    %v380 = vshrl.u32 %v379, 7
    %v381 = vsub.s32 5, %v380
    %v382 = vrot.slane %v355, %v381
    %v383 = vlaneseq
    %v384 = vshrl.u32 %v383, 7
    %v385 = vsub.s32 6, %v384
    %v386 = vrot.slane %v355, %v385
    %v387 = vlaneseq
    %v388 = vshrl.u32 %v387, 7
    %v389 = vsub.s32 7, %v388
    %v390 = vrot.slane %v355, %v389
    %v391 = vlaneseq
    %v392 = vshrl.u32 %v391, 7
    %v393 = vsub.s32 0, %v392
    %v394 = vrot.slane %v356, %v393
    %v395 = vlaneseq
    %v396 = vshrl.u32 %v395, 7
    %v397 = vsub.s32 1, %v396
    %v398 = vrot.slane %v356, %v397
    %v399 = vlaneseq
    %v400 = vshrl.u32 %v399, 7
    %v401 = vsub.s32 2, %v400
    %v402 = vrot.slane %v356, %v401
    %v403 = vlaneseq
    %v404 = vshrl.u32 %v403, 7
    %v405 = vsub.s32 3, %v404
    %v406 = vrot.slane %v356, %v405
    %v407 = vlaneseq
    %v408 = vshrl.u32 %v407, 7
    %v409 = vsub.s32 4, %v408
    %v410 = vrot.slane %v356, %v409
    %v411 = vlaneseq
    %v412 = vshrl.u32 %v411, 7
    %v413 = vsub.s32 5, %v412
    %v414 = vrot.slane %v356, %v413
    %v415 = vlaneseq
    %v416 = vshrl.u32 %v415, 7
    %v417 = vsub.s32 6, %v416
    %v418 = vrot.slane %v356, %v417
    %v419 = vlaneseq
    %v420 = vshrl.u32 %v419, 7
    %v421 = vsub.s32 7, %v420
    %v422 = vrot.slane %v356, %v421
    %439 = vmatprep.subr.mxu0 %v100
    %440 = vmatpush1.msra.mxu0 %v99
    %441 = vmatprep.subr.mxu0 %v116
    %442 = vmatpush1.msra.mxu0 %v115
    %443 = vmatprep.subr.mxu0 %v132
    %444 = vmatpush1.msra.mxu0 %v131
    %445 = vmatprep.subr.mxu0 %v148
    %446 = vmatpush1.msra.mxu0 %v147
    %447 = vmatprep.subr.mxu0 %v164
    %448 = vmatpush1.msra.mxu0 %v163
    %449 = vmatprep.subr.mxu0 %v180
    %450 = vmatpush1.msra.mxu0 %v179
    %451 = vmatprep.subr.mxu0 %v196
    %452 = vmatpush1.msra.mxu0 %v195
    %453 = vmatprep.subr.mxu0 %v212
    %454 = vmatpush1.msra.mxu0 %v211
    %455 = vmatprep.subr.mxu0 %v228
    %456 = vmatpush1.msra.mxu0 %v227
    %457 = vmatprep.subr.mxu0 %v244
    %458 = vmatpush1.msra.mxu0 %v243
    %459 = vmatprep.subr.mxu0 %v260
    %460 = vmatpush1.msra.mxu0 %v259
    %461 = vmatprep.subr.mxu0 %v276
    %462 = vmatpush1.msra.mxu0 %v275
    %463 = vmatprep.subr.mxu0 %v292
    %464 = vmatpush1.msra.mxu0 %v291
    %465 = vmatprep.subr.mxu0 %v308
    %466 = vmatpush1.msra.mxu0 %v307
    %467 = vmatprep.subr.mxu0 %v324
    %468 = vmatpush1.msra.mxu0 %v323
    %469 = vmatprep.subr.mxu0 %v340
    %470 = vmatpush1.msra.mxu0 %v339
    %471 = vmatprep.subr.mxu0 0.0
    %472 = vmatpush1.msra.mxu0 0.0
    %473 = vmatprep.subr.mxu0 0.0
    %474 = vmatpush1.msra.mxu0 0.0
    %475 = vmatprep.subr.mxu0 0.0
    %476 = vmatpush1.msra.mxu0 0.0
    %477 = vmatprep.subr.mxu0 0.0
    %478 = vmatpush1.msra.mxu0 0.0
    %479 = vmatprep.subr.mxu0 0.0
    %480 = vmatpush1.msra.mxu0 0.0
    %481 = vmatprep.subr.mxu0 0.0
    %482 = vmatpush1.msra.mxu0 0.0
    %483 = vmatprep.subr.mxu0 0.0
    %484 = vmatpush1.msra.mxu0 0.0
    %485 = vmatprep.subr.mxu0 0.0
    %486 = vmatpush1.msra.mxu0 0.0
    %487 = vmatprep.subr.mxu0 0.0
    %488 = vmatpush1.msra.mxu0 0.0
    %489 = vmatprep.subr.mxu0 0.0
    %490 = vmatpush1.msra.mxu0 0.0
    %491 = vmatprep.subr.mxu0 0.0
    %492 = vmatpush1.msra.mxu0 0.0
    %493 = vmatprep.subr.mxu0 0.0
    %494 = vmatpush1.msra.mxu0 0.0
    %495 = vmatprep.subr.mxu0 0.0
    %496 = vmatpush1.msra.mxu0 0.0
    %497 = vmatprep.subr.mxu0 0.0
    %498 = vmatpush1.msra.mxu0 0.0
    %499 = vmatprep.subr.mxu0 0.0
    %500 = vmatpush1.msra.mxu0 0.0
    %501 = vmatprep.subr.mxu0 0.0
    %502 = vmatpush1.msra.mxu0 0.0
    %503 = vmatprep.mubr.f32.mxu0 0.0
    %504 = vmatmul.mubr.f32.gmra.mrb[0].mxu0 %v98
    %v505 = vpop.f32.mrb[0].mxu0
    %v506 = vadd.f32 %v362, %v505
    %v507 = vpop.f32.mrb[0].mxu0
    %v508 = vadd.f32 %v366, %v507
    %509 = vdwg.mxu0
    %510 = vmatprep.subr.mxu0 %v102
    %511 = vmatpush1.msra.mxu0 %v101
    %512 = vmatprep.subr.mxu0 %v118
    %513 = vmatpush1.msra.mxu0 %v117
    %514 = vmatprep.subr.mxu0 %v134
    %515 = vmatpush1.msra.mxu0 %v133
    %516 = vmatprep.subr.mxu0 %v150
    %517 = vmatpush1.msra.mxu0 %v149
    %518 = vmatprep.subr.mxu0 %v166
    %519 = vmatpush1.msra.mxu0 %v165
    %520 = vmatprep.subr.mxu0 %v182
    %521 = vmatpush1.msra.mxu0 %v181
    %522 = vmatprep.subr.mxu0 %v198
    %523 = vmatpush1.msra.mxu0 %v197
    %524 = vmatprep.subr.mxu0 %v214
    %525 = vmatpush1.msra.mxu0 %v213
    %526 = vmatprep.subr.mxu0 %v230
    %527 = vmatpush1.msra.mxu0 %v229
    %528 = vmatprep.subr.mxu0 %v246
    %529 = vmatpush1.msra.mxu0 %v245
    %530 = vmatprep.subr.mxu0 %v262
    %531 = vmatpush1.msra.mxu0 %v261
    %532 = vmatprep.subr.mxu0 %v278
    %533 = vmatpush1.msra.mxu0 %v277
    %534 = vmatprep.subr.mxu0 %v294
    %535 = vmatpush1.msra.mxu0 %v293
    %536 = vmatprep.subr.mxu0 %v310
    %537 = vmatpush1.msra.mxu0 %v309
    %538 = vmatprep.subr.mxu0 %v326
    %539 = vmatpush1.msra.mxu0 %v325
    %540 = vmatprep.subr.mxu0 %v342
    %541 = vmatpush1.msra.mxu0 %v341
    %542 = vmatprep.subr.mxu0 0.0
    %543 = vmatpush1.msra.mxu0 0.0
    %544 = vmatprep.subr.mxu0 0.0
    %545 = vmatpush1.msra.mxu0 0.0
    %546 = vmatprep.subr.mxu0 0.0
    %547 = vmatpush1.msra.mxu0 0.0
    %548 = vmatprep.subr.mxu0 0.0
    %549 = vmatpush1.msra.mxu0 0.0
    %550 = vmatprep.subr.mxu0 0.0
    %551 = vmatpush1.msra.mxu0 0.0
    %552 = vmatprep.subr.mxu0 0.0
    %553 = vmatpush1.msra.mxu0 0.0
    %554 = vmatprep.subr.mxu0 0.0
    %555 = vmatpush1.msra.mxu0 0.0
    %556 = vmatprep.subr.mxu0 0.0
    %557 = vmatpush1.msra.mxu0 0.0
    %558 = vmatprep.subr.mxu0 0.0
    %559 = vmatpush1.msra.mxu0 0.0
    %560 = vmatprep.subr.mxu0 0.0
    %561 = vmatpush1.msra.mxu0 0.0
    %562 = vmatprep.subr.mxu0 0.0
    %563 = vmatpush1.msra.mxu0 0.0
    %564 = vmatprep.subr.mxu0 0.0
    %565 = vmatpush1.msra.mxu0 0.0
    %566 = vmatprep.subr.mxu0 0.0
    %567 = vmatpush1.msra.mxu0 0.0
    %568 = vmatprep.subr.mxu0 0.0
    %569 = vmatpush1.msra.mxu0 0.0
    %570 = vmatprep.subr.mxu0 0.0
    %571 = vmatpush1.msra.mxu0 0.0
    %572 = vmatprep.subr.mxu0 0.0
    %573 = vmatpush1.msra.mxu0 0.0
    %574 = vmatprep.mubr.f32.mxu0 0.0
    %575 = vmatmul.mubr.f32.gmra.mrb[0].mxu0 %v98
    %v576 = vpop.f32.mrb[0].mxu0
    %v577 = vadd.f32 %v370, %v576
    %v578 = vpop.f32.mrb[0].mxu0
    %v579 = vadd.f32 %v374, %v578
    %580 = vdwg.mxu0
    %581 = vmatprep.subr.mxu0 %v104
    %582 = vmatpush1.msra.mxu0 %v103
    %583 = vmatprep.subr.mxu0 %v120
    %584 = vmatpush1.msra.mxu0 %v119
    %585 = vmatprep.subr.mxu0 %v136
    %586 = vmatpush1.msra.mxu0 %v135
    %587 = vmatprep.subr.mxu0 %v152
    %588 = vmatpush1.msra.mxu0 %v151
    %589 = vmatprep.subr.mxu0 %v168
    %590 = vmatpush1.msra.mxu0 %v167
    %591 = vmatprep.subr.mxu0 %v184
    %592 = vmatpush1.msra.mxu0 %v183
    %593 = vmatprep.subr.mxu0 %v200
    %594 = vmatpush1.msra.mxu0 %v199
    %595 = vmatprep.subr.mxu0 %v216
    %596 = vmatpush1.msra.mxu0 %v215
    %597 = vmatprep.subr.mxu0 %v232
    %598 = vmatpush1.msra.mxu0 %v231
    %599 = vmatprep.subr.mxu0 %v248
    %600 = vmatpush1.msra.mxu0 %v247
    %601 = vmatprep.subr.mxu0 %v264
    %602 = vmatpush1.msra.mxu0 %v263
    %603 = vmatprep.subr.mxu0 %v280
    %604 = vmatpush1.msra.mxu0 %v279
    %605 = vmatprep.subr.mxu0 %v296
    %606 = vmatpush1.msra.mxu0 %v295
    %607 = vmatprep.subr.mxu0 %v312
    %608 = vmatpush1.msra.mxu0 %v311
    %609 = vmatprep.subr.mxu0 %v328
    %610 = vmatpush1.msra.mxu0 %v327
    %611 = vmatprep.subr.mxu0 %v344
    %612 = vmatpush1.msra.mxu0 %v343
    %613 = vmatprep.subr.mxu0 0.0
    %614 = vmatpush1.msra.mxu0 0.0
    %615 = vmatprep.subr.mxu0 0.0
    %616 = vmatpush1.msra.mxu0 0.0
    %617 = vmatprep.subr.mxu0 0.0
    %618 = vmatpush1.msra.mxu0 0.0
    %619 = vmatprep.subr.mxu0 0.0
    %620 = vmatpush1.msra.mxu0 0.0
    %621 = vmatprep.subr.mxu0 0.0
    %622 = vmatpush1.msra.mxu0 0.0
    %623 = vmatprep.subr.mxu0 0.0
    %624 = vmatpush1.msra.mxu0 0.0
    %625 = vmatprep.subr.mxu0 0.0
    %626 = vmatpush1.msra.mxu0 0.0
    %627 = vmatprep.subr.mxu0 0.0
    %628 = vmatpush1.msra.mxu0 0.0
    %629 = vmatprep.subr.mxu0 0.0
    %630 = vmatpush1.msra.mxu0 0.0
    %631 = vmatprep.subr.mxu0 0.0
    %632 = vmatpush1.msra.mxu0 0.0
    %633 = vmatprep.subr.mxu0 0.0
    %634 = vmatpush1.msra.mxu0 0.0
    %635 = vmatprep.subr.mxu0 0.0
    %636 = vmatpush1.msra.mxu0 0.0
    %637 = vmatprep.subr.mxu0 0.0
    %638 = vmatpush1.msra.mxu0 0.0
    %639 = vmatprep.subr.mxu0 0.0
    %640 = vmatpush1.msra.mxu0 0.0
    %641 = vmatprep.subr.mxu0 0.0
    %642 = vmatpush1.msra.mxu0 0.0
    %643 = vmatprep.subr.mxu0 0.0
    %644 = vmatpush1.msra.mxu0 0.0
    %645 = vmatprep.mubr.f32.mxu0 0.0
    %646 = vmatmul.mubr.f32.gmra.mrb[0].mxu0 %v98
    %v647 = vpop.f32.mrb[0].mxu0
    %v648 = vadd.f32 %v378, %v647
    %v649 = vpop.f32.mrb[0].mxu0
    %v650 = vadd.f32 %v382, %v649
    %651 = vdwg.mxu0
    %652 = vmatprep.subr.mxu0 %v106
    %653 = vmatpush1.msra.mxu0 %v105
    %654 = vmatprep.subr.mxu0 %v122
    %655 = vmatpush1.msra.mxu0 %v121
    %656 = vmatprep.subr.mxu0 %v138
    %657 = vmatpush1.msra.mxu0 %v137
    %658 = vmatprep.subr.mxu0 %v154
    %659 = vmatpush1.msra.mxu0 %v153
    %660 = vmatprep.subr.mxu0 %v170
    %661 = vmatpush1.msra.mxu0 %v169
    %662 = vmatprep.subr.mxu0 %v186
    %663 = vmatpush1.msra.mxu0 %v185
    %664 = vmatprep.subr.mxu0 %v202
    %665 = vmatpush1.msra.mxu0 %v201
    %666 = vmatprep.subr.mxu0 %v218
    %667 = vmatpush1.msra.mxu0 %v217
    %668 = vmatprep.subr.mxu0 %v234
    %669 = vmatpush1.msra.mxu0 %v233
    %670 = vmatprep.subr.mxu0 %v250
    %671 = vmatpush1.msra.mxu0 %v249
    %672 = vmatprep.subr.mxu0 %v266
    %673 = vmatpush1.msra.mxu0 %v265
    %674 = vmatprep.subr.mxu0 %v282
    %675 = vmatpush1.msra.mxu0 %v281
    %676 = vmatprep.subr.mxu0 %v298
    %677 = vmatpush1.msra.mxu0 %v297
    %678 = vmatprep.subr.mxu0 %v314
    %679 = vmatpush1.msra.mxu0 %v313
    %680 = vmatprep.subr.mxu0 %v330
    %681 = vmatpush1.msra.mxu0 %v329
    %682 = vmatprep.subr.mxu0 %v346
    %683 = vmatpush1.msra.mxu0 %v345
    %684 = vmatprep.subr.mxu0 0.0
    %685 = vmatpush1.msra.mxu0 0.0
    %686 = vmatprep.subr.mxu0 0.0
    %687 = vmatpush1.msra.mxu0 0.0
    %688 = vmatprep.subr.mxu0 0.0
    %689 = vmatpush1.msra.mxu0 0.0
    %690 = vmatprep.subr.mxu0 0.0
    %691 = vmatpush1.msra.mxu0 0.0
    %692 = vmatprep.subr.mxu0 0.0
    %693 = vmatpush1.msra.mxu0 0.0
    %694 = vmatprep.subr.mxu0 0.0
    %695 = vmatpush1.msra.mxu0 0.0
    %696 = vmatprep.subr.mxu0 0.0
    %697 = vmatpush1.msra.mxu0 0.0
    %698 = vmatprep.subr.mxu0 0.0
    %699 = vmatpush1.msra.mxu0 0.0
    %700 = vmatprep.subr.mxu0 0.0
    %701 = vmatpush1.msra.mxu0 0.0
    %702 = vmatprep.subr.mxu0 0.0
    %703 = vmatpush1.msra.mxu0 0.0
    %704 = vmatprep.subr.mxu0 0.0
    %705 = vmatpush1.msra.mxu0 0.0
    %706 = vmatprep.subr.mxu0 0.0
    %707 = vmatpush1.msra.mxu0 0.0
    %708 = vmatprep.subr.mxu0 0.0
    %709 = vmatpush1.msra.mxu0 0.0
    %710 = vmatprep.subr.mxu0 0.0
    %711 = vmatpush1.msra.mxu0 0.0
    %712 = vmatprep.subr.mxu0 0.0
    %713 = vmatpush1.msra.mxu0 0.0
    %714 = vmatprep.subr.mxu0 0.0
    %715 = vmatpush1.msra.mxu0 0.0
    %716 = vmatprep.mubr.f32.mxu0 0.0
    %717 = vmatmul.mubr.f32.gmra.mrb[0].mxu0 %v98
    %v718 = vpop.f32.mrb[0].mxu0
    %v719 = vadd.f32 %v386, %v718
    %v720 = vpop.f32.mrb[0].mxu0
    %v721 = vadd.f32 %v390, %v720
    %722 = vdwg.mxu0
    %723 = vmatprep.subr.mxu0 %v108
    %724 = vmatpush1.msra.mxu0 %v107
    %725 = vmatprep.subr.mxu0 %v124
    %726 = vmatpush1.msra.mxu0 %v123
    %727 = vmatprep.subr.mxu0 %v140
    %728 = vmatpush1.msra.mxu0 %v139
    %729 = vmatprep.subr.mxu0 %v156
    %730 = vmatpush1.msra.mxu0 %v155
    %731 = vmatprep.subr.mxu0 %v172
    %732 = vmatpush1.msra.mxu0 %v171
    %733 = vmatprep.subr.mxu0 %v188
    %734 = vmatpush1.msra.mxu0 %v187
    %735 = vmatprep.subr.mxu0 %v204
    %736 = vmatpush1.msra.mxu0 %v203
    %737 = vmatprep.subr.mxu0 %v220
    %738 = vmatpush1.msra.mxu0 %v219
    %739 = vmatprep.subr.mxu0 %v236
    %740 = vmatpush1.msra.mxu0 %v235
    %741 = vmatprep.subr.mxu0 %v252
    %742 = vmatpush1.msra.mxu0 %v251
    %743 = vmatprep.subr.mxu0 %v268
    %744 = vmatpush1.msra.mxu0 %v267
    %745 = vmatprep.subr.mxu0 %v284
    %746 = vmatpush1.msra.mxu0 %v283
    %747 = vmatprep.subr.mxu0 %v300
    %748 = vmatpush1.msra.mxu0 %v299
    %749 = vmatprep.subr.mxu0 %v316
    %750 = vmatpush1.msra.mxu0 %v315
    %751 = vmatprep.subr.mxu0 %v332
    %752 = vmatpush1.msra.mxu0 %v331
    %753 = vmatprep.subr.mxu0 %v348
    %754 = vmatpush1.msra.mxu0 %v347
    %755 = vmatprep.subr.mxu0 0.0
    %756 = vmatpush1.msra.mxu0 0.0
    %757 = vmatprep.subr.mxu0 0.0
    %758 = vmatpush1.msra.mxu0 0.0
    %759 = vmatprep.subr.mxu0 0.0
    %760 = vmatpush1.msra.mxu0 0.0
    %761 = vmatprep.subr.mxu0 0.0
    %762 = vmatpush1.msra.mxu0 0.0
    %763 = vmatprep.subr.mxu0 0.0
    %764 = vmatpush1.msra.mxu0 0.0
    %765 = vmatprep.subr.mxu0 0.0
    %766 = vmatpush1.msra.mxu0 0.0
    %767 = vmatprep.subr.mxu0 0.0
    %768 = vmatpush1.msra.mxu0 0.0
    %769 = vmatprep.subr.mxu0 0.0
    %770 = vmatpush1.msra.mxu0 0.0
    %771 = vmatprep.subr.mxu0 0.0
    %772 = vmatpush1.msra.mxu0 0.0
    %773 = vmatprep.subr.mxu0 0.0
    %774 = vmatpush1.msra.mxu0 0.0
    %775 = vmatprep.subr.mxu0 0.0
    %776 = vmatpush1.msra.mxu0 0.0
    %777 = vmatprep.subr.mxu0 0.0
    %778 = vmatpush1.msra.mxu0 0.0
    %779 = vmatprep.subr.mxu0 0.0
    %780 = vmatpush1.msra.mxu0 0.0
    %781 = vmatprep.subr.mxu0 0.0
    %782 = vmatpush1.msra.mxu0 0.0
    %783 = vmatprep.subr.mxu0 0.0
    %784 = vmatpush1.msra.mxu0 0.0
    %785 = vmatprep.subr.mxu0 0.0
    %786 = vmatpush1.msra.mxu0 0.0
    %787 = vmatprep.mubr.f32.mxu0 0.0
    %788 = vmatmul.mubr.f32.gmra.mrb[0].mxu0 %v98
    %v789 = vpop.f32.mrb[0].mxu0
    %v790 = vadd.f32 %v394, %v789
    %v791 = vpop.f32.mrb[0].mxu0
    %v792 = vadd.f32 %v398, %v791
    %793 = vdwg.mxu0
    %794 = vmatprep.subr.mxu0 %v110
    %795 = vmatpush1.msra.mxu0 %v109
    %796 = vmatprep.subr.mxu0 %v126
    %797 = vmatpush1.msra.mxu0 %v125
    %798 = vmatprep.subr.mxu0 %v142
    %799 = vmatpush1.msra.mxu0 %v141
    %800 = vmatprep.subr.mxu0 %v158
    %801 = vmatpush1.msra.mxu0 %v157
    %802 = vmatprep.subr.mxu0 %v174
    %803 = vmatpush1.msra.mxu0 %v173
    %804 = vmatprep.subr.mxu0 %v190
    %805 = vmatpush1.msra.mxu0 %v189
    %806 = vmatprep.subr.mxu0 %v206
    %807 = vmatpush1.msra.mxu0 %v205
    %808 = vmatprep.subr.mxu0 %v222
    %809 = vmatpush1.msra.mxu0 %v221
    %810 = vmatprep.subr.mxu0 %v238
    %811 = vmatpush1.msra.mxu0 %v237
    %812 = vmatprep.subr.mxu0 %v254
    %813 = vmatpush1.msra.mxu0 %v253
    %814 = vmatprep.subr.mxu0 %v270
    %815 = vmatpush1.msra.mxu0 %v269
    %816 = vmatprep.subr.mxu0 %v286
    %817 = vmatpush1.msra.mxu0 %v285
    %818 = vmatprep.subr.mxu0 %v302
    %819 = vmatpush1.msra.mxu0 %v301
    %820 = vmatprep.subr.mxu0 %v318
    %821 = vmatpush1.msra.mxu0 %v317
    %822 = vmatprep.subr.mxu0 %v334
    %823 = vmatpush1.msra.mxu0 %v333
    %824 = vmatprep.subr.mxu0 %v350
    %825 = vmatpush1.msra.mxu0 %v349
    %826 = vmatprep.subr.mxu0 0.0
    %827 = vmatpush1.msra.mxu0 0.0
    %828 = vmatprep.subr.mxu0 0.0
    %829 = vmatpush1.msra.mxu0 0.0
    %830 = vmatprep.subr.mxu0 0.0
    %831 = vmatpush1.msra.mxu0 0.0
    %832 = vmatprep.subr.mxu0 0.0
    %833 = vmatpush1.msra.mxu0 0.0
    %834 = vmatprep.subr.mxu0 0.0
    %835 = vmatpush1.msra.mxu0 0.0
    %836 = vmatprep.subr.mxu0 0.0
    %837 = vmatpush1.msra.mxu0 0.0
    %838 = vmatprep.subr.mxu0 0.0
    %839 = vmatpush1.msra.mxu0 0.0
    %840 = vmatprep.subr.mxu0 0.0
    %841 = vmatpush1.msra.mxu0 0.0
    %842 = vmatprep.subr.mxu0 0.0
    %843 = vmatpush1.msra.mxu0 0.0
    %844 = vmatprep.subr.mxu0 0.0
    %845 = vmatpush1.msra.mxu0 0.0
    %846 = vmatprep.subr.mxu0 0.0
    %847 = vmatpush1.msra.mxu0 0.0
    %848 = vmatprep.subr.mxu0 0.0
    %849 = vmatpush1.msra.mxu0 0.0
    %850 = vmatprep.subr.mxu0 0.0
    %851 = vmatpush1.msra.mxu0 0.0
    %852 = vmatprep.subr.mxu0 0.0
    %853 = vmatpush1.msra.mxu0 0.0
    %854 = vmatprep.subr.mxu0 0.0
    %855 = vmatpush1.msra.mxu0 0.0
    %856 = vmatprep.subr.mxu0 0.0
    %857 = vmatpush1.msra.mxu0 0.0
    %858 = vmatprep.mubr.f32.mxu0 0.0
    %859 = vmatmul.mubr.f32.gmra.mrb[0].mxu0 %v98
    %v860 = vpop.f32.mrb[0].mxu0
    %v861 = vadd.f32 %v402, %v860
    %v862 = vpop.f32.mrb[0].mxu0
    %v863 = vadd.f32 %v406, %v862
    %864 = vdwg.mxu0
    %865 = vmatprep.subr.mxu0 %v112
    %866 = vmatpush1.msra.mxu0 %v111
    %867 = vmatprep.subr.mxu0 %v128
    %868 = vmatpush1.msra.mxu0 %v127
    %869 = vmatprep.subr.mxu0 %v144
    %870 = vmatpush1.msra.mxu0 %v143
    %871 = vmatprep.subr.mxu0 %v160
    %872 = vmatpush1.msra.mxu0 %v159
    %873 = vmatprep.subr.mxu0 %v176
    %874 = vmatpush1.msra.mxu0 %v175
    %875 = vmatprep.subr.mxu0 %v192
    %876 = vmatpush1.msra.mxu0 %v191
    %877 = vmatprep.subr.mxu0 %v208
    %878 = vmatpush1.msra.mxu0 %v207
    %879 = vmatprep.subr.mxu0 %v224
    %880 = vmatpush1.msra.mxu0 %v223
    %881 = vmatprep.subr.mxu0 %v240
    %882 = vmatpush1.msra.mxu0 %v239
    %883 = vmatprep.subr.mxu0 %v256
    %884 = vmatpush1.msra.mxu0 %v255
    %885 = vmatprep.subr.mxu0 %v272
    %886 = vmatpush1.msra.mxu0 %v271
    %887 = vmatprep.subr.mxu0 %v288
    %888 = vmatpush1.msra.mxu0 %v287
    %889 = vmatprep.subr.mxu0 %v304
    %890 = vmatpush1.msra.mxu0 %v303
    %891 = vmatprep.subr.mxu0 %v320
    %892 = vmatpush1.msra.mxu0 %v319
    %893 = vmatprep.subr.mxu0 %v336
    %894 = vmatpush1.msra.mxu0 %v335
    %895 = vmatprep.subr.mxu0 %v352
    %896 = vmatpush1.msra.mxu0 %v351
    %897 = vmatprep.subr.mxu0 0.0
    %898 = vmatpush1.msra.mxu0 0.0
    %899 = vmatprep.subr.mxu0 0.0
    %900 = vmatpush1.msra.mxu0 0.0
    %901 = vmatprep.subr.mxu0 0.0
    %902 = vmatpush1.msra.mxu0 0.0
    %903 = vmatprep.subr.mxu0 0.0
    %904 = vmatpush1.msra.mxu0 0.0
    %905 = vmatprep.subr.mxu0 0.0
    %906 = vmatpush1.msra.mxu0 0.0
    %907 = vmatprep.subr.mxu0 0.0
    %908 = vmatpush1.msra.mxu0 0.0
    %909 = vmatprep.subr.mxu0 0.0
    %910 = vmatpush1.msra.mxu0 0.0
    %911 = vmatprep.subr.mxu0 0.0
    %912 = vmatpush1.msra.mxu0 0.0
    %913 = vmatprep.subr.mxu0 0.0
    %914 = vmatpush1.msra.mxu0 0.0
    %915 = vmatprep.subr.mxu0 0.0
    %916 = vmatpush1.msra.mxu0 0.0
    %917 = vmatprep.subr.mxu0 0.0
    %918 = vmatpush1.msra.mxu0 0.0
    %919 = vmatprep.subr.mxu0 0.0
    %920 = vmatpush1.msra.mxu0 0.0
    %921 = vmatprep.subr.mxu0 0.0
    %922 = vmatpush1.msra.mxu0 0.0
    %923 = vmatprep.subr.mxu0 0.0
    %924 = vmatpush1.msra.mxu0 0.0
    %925 = vmatprep.subr.mxu0 0.0
    %926 = vmatpush1.msra.mxu0 0.0
    %927 = vmatprep.subr.mxu0 0.0
    %928 = vmatpush1.msra.mxu0 0.0
    %929 = vmatprep.mubr.f32.mxu0 0.0
    %930 = vmatmul.mubr.f32.gmra.mrb[0].mxu0 %v98
    %v931 = vpop.f32.mrb[0].mxu0
    %v932 = vadd.f32 %v410, %v931
    %v933 = vpop.f32.mrb[0].mxu0
    %v934 = vadd.f32 %v414, %v933
    %935 = vdwg.mxu0
    %936 = vmatprep.subr.mxu0 %v114
    %937 = vmatpush1.msra.mxu0 %v113
    %938 = vmatprep.subr.mxu0 %v130
    %939 = vmatpush1.msra.mxu0 %v129
    %940 = vmatprep.subr.mxu0 %v146
    %941 = vmatpush1.msra.mxu0 %v145
    %942 = vmatprep.subr.mxu0 %v162
    %943 = vmatpush1.msra.mxu0 %v161
    %944 = vmatprep.subr.mxu0 %v178
    %945 = vmatpush1.msra.mxu0 %v177
    %946 = vmatprep.subr.mxu0 %v194
    %947 = vmatpush1.msra.mxu0 %v193
    %948 = vmatprep.subr.mxu0 %v210
    %949 = vmatpush1.msra.mxu0 %v209
    %950 = vmatprep.subr.mxu0 %v226
    %951 = vmatpush1.msra.mxu0 %v225
    %952 = vmatprep.subr.mxu0 %v242
    %953 = vmatpush1.msra.mxu0 %v241
    %954 = vmatprep.subr.mxu0 %v258
    %955 = vmatpush1.msra.mxu0 %v257
    %956 = vmatprep.subr.mxu0 %v274
    %957 = vmatpush1.msra.mxu0 %v273
    %958 = vmatprep.subr.mxu0 %v290
    %959 = vmatpush1.msra.mxu0 %v289
    %960 = vmatprep.subr.mxu0 %v306
    %961 = vmatpush1.msra.mxu0 %v305
    %962 = vmatprep.subr.mxu0 %v322
    %963 = vmatpush1.msra.mxu0 %v321
    %964 = vmatprep.subr.mxu0 %v338
    %965 = vmatpush1.msra.mxu0 %v337
    %966 = vmatprep.subr.mxu0 %v354
    %967 = vmatpush1.msra.mxu0 %v353
    %968 = vmatprep.subr.mxu0 0.0
    %969 = vmatpush1.msra.mxu0 0.0
    %970 = vmatprep.subr.mxu0 0.0
    %971 = vmatpush1.msra.mxu0 0.0
    %972 = vmatprep.subr.mxu0 0.0
    %973 = vmatpush1.msra.mxu0 0.0
    %974 = vmatprep.subr.mxu0 0.0
    %975 = vmatpush1.msra.mxu0 0.0
    %976 = vmatprep.subr.mxu0 0.0
    %977 = vmatpush1.msra.mxu0 0.0
    %978 = vmatprep.subr.mxu0 0.0
    %979 = vmatpush1.msra.mxu0 0.0
    %980 = vmatprep.subr.mxu0 0.0
    %981 = vmatpush1.msra.mxu0 0.0
    %982 = vmatprep.subr.mxu0 0.0
    %983 = vmatpush1.msra.mxu0 0.0
    %984 = vmatprep.subr.mxu0 0.0
    %985 = vmatpush1.msra.mxu0 0.0
    %986 = vmatprep.subr.mxu0 0.0
    %987 = vmatpush1.msra.mxu0 0.0
    %988 = vmatprep.subr.mxu0 0.0
    %989 = vmatpush1.msra.mxu0 0.0
    %990 = vmatprep.subr.mxu0 0.0
    %991 = vmatpush1.msra.mxu0 0.0
    %992 = vmatprep.subr.mxu0 0.0
    %993 = vmatpush1.msra.mxu0 0.0
    %994 = vmatprep.subr.mxu0 0.0
    %995 = vmatpush1.msra.mxu0 0.0
    %996 = vmatprep.subr.mxu0 0.0
    %997 = vmatpush1.msra.mxu0 0.0
    %998 = vmatprep.subr.mxu0 0.0
    %999 = vmatpush1.msra.mxu0 0.0
    %1000 = vmatprep.mubr.f32.mxu0 0.0
    %1001 = vmatmul.mubr.f32.gmra.mrb[0].mxu0 %v98
    %v1002 = vpop.f32.mrb[0].mxu0
    %v1003 = vadd.f32 %v418, %v1002
    %v1004 = vpop.f32.mrb[0].mxu0
    %v1005 = vadd.f32 %v422, %v1004
    %1006 = vdwg.mxu0
    %v1015 = vcombine.high %v790, %v790
    %v1017 = vunpack.c.l.s4 1966171168
    %v1018 = vunpack.c.0.s8 %v1017
    %v1019 = vlaneseq
    %v1020 = vshrl.u32 %v1019, 7
    %v1021 = vsub.s32 %v1018, %v1020
    %v1022 = vrot.slane %v790, %v1021
    %v1024 = vunpack.c.l.s4 1966171168
    %v1025 = vunpack.c.0.s8 %v1024
    %v1026 = vlaneseq
    %v1027 = vshrl.u32 %v1026, 7
    %v1028 = vsub.s32 %v1025, %v1027
    %v1029 = vrot.slane %v1015, %v1028
    %v1030 = vcombine.high %v1022, %v1022
    %v1031 = vcombine.high %v1029, %v1029
    %v1033 = vunpack.c.l.s4 1966171168
    %v1034 = vunpack.c.0.s8 %v1033
    %v1035 = vlaneseq
    %v1036 = vshrl.u32 %v1035, 7
    %v1037 = vsub.s32 %v1034, %v1036
    %v1038 = vrot.slane %v1022, %v1037
    %v1040 = vunpack.c.l.s4 1966171168
    %v1041 = vunpack.c.0.s8 %v1040
    %v1042 = vlaneseq
    %v1043 = vshrl.u32 %v1042, 7
    %v1044 = vsub.s32 %v1041, %v1043
    %v1045 = vrot.slane %v1029, %v1044
    %v1047 = vunpack.c.l.s4 1966171168
    %v1048 = vunpack.c.0.s8 %v1047
    %v1049 = vlaneseq
    %v1050 = vshrl.u32 %v1049, 7
    %v1051 = vsub.s32 %v1048, %v1050
    %v1052 = vrot.slane %v1030, %v1051
    %v1054 = vunpack.c.l.s4 1966171168
    %v1055 = vunpack.c.0.s8 %v1054
    %v1056 = vlaneseq
    %v1057 = vshrl.u32 %v1056, 7
    %v1058 = vsub.s32 %v1055, %v1057
    %v1059 = vrot.slane %v1031, %v1058
    %v1060 = vcombine.high %v1038, %v1038
    %v1061 = vcombine.high %v1045, %v1045
    %v1062 = vcombine.high %v1052, %v1052
    %v1063 = vcombine.high %v1059, %v1059
    %v1064 = vcombine.high %v792, %v792
    %v1066 = vunpack.c.l.s4 1966171168
    %v1067 = vunpack.c.0.s8 %v1066
    %v1068 = vlaneseq
    %v1069 = vshrl.u32 %v1068, 7
    %v1070 = vsub.s32 %v1067, %v1069
    %v1071 = vrot.slane %v792, %v1070
    %v1073 = vunpack.c.l.s4 1966171168
    %v1074 = vunpack.c.0.s8 %v1073
    %v1075 = vlaneseq
    %v1076 = vshrl.u32 %v1075, 7
    %v1077 = vsub.s32 %v1074, %v1076
    %v1078 = vrot.slane %v1064, %v1077
    %v1079 = vcombine.high %v1071, %v1071
    %v1080 = vcombine.high %v1078, %v1078
    %v1082 = vunpack.c.l.s4 1966171168
    %v1083 = vunpack.c.0.s8 %v1082
    %v1084 = vlaneseq
    %v1085 = vshrl.u32 %v1084, 7
    %v1086 = vsub.s32 %v1083, %v1085
    %v1087 = vrot.slane %v1071, %v1086
    %v1089 = vunpack.c.l.s4 1966171168
    %v1090 = vunpack.c.0.s8 %v1089
    %v1091 = vlaneseq
    %v1092 = vshrl.u32 %v1091, 7
    %v1093 = vsub.s32 %v1090, %v1092
    %v1094 = vrot.slane %v1078, %v1093
    %v1096 = vunpack.c.l.s4 1966171168
    %v1097 = vunpack.c.0.s8 %v1096
    %v1098 = vlaneseq
    %v1099 = vshrl.u32 %v1098, 7
    %v1100 = vsub.s32 %v1097, %v1099
    %v1101 = vrot.slane %v1079, %v1100
    %v1103 = vunpack.c.l.s4 1966171168
    %v1104 = vunpack.c.0.s8 %v1103
    %v1105 = vlaneseq
    %v1106 = vshrl.u32 %v1105, 7
    %v1107 = vsub.s32 %v1104, %v1106
    %v1108 = vrot.slane %v1080, %v1107
    %v1109 = vcombine.high %v1087, %v1087
    %v1110 = vcombine.high %v1094, %v1094
    %v1111 = vcombine.high %v1101, %v1101
    %v1112 = vcombine.high %v1108, %v1108
    %v1113 = vcombine.high %v861, %v861
    %v1115 = vunpack.c.l.s4 1966171168
    %v1116 = vunpack.c.0.s8 %v1115
    %v1117 = vlaneseq
    %v1118 = vshrl.u32 %v1117, 7
    %v1119 = vsub.s32 %v1116, %v1118
    %v1120 = vrot.slane %v861, %v1119
    %v1122 = vunpack.c.l.s4 1966171168
    %v1123 = vunpack.c.0.s8 %v1122
    %v1124 = vlaneseq
    %v1125 = vshrl.u32 %v1124, 7
    %v1126 = vsub.s32 %v1123, %v1125
    %v1127 = vrot.slane %v1113, %v1126
    %v1128 = vcombine.high %v1120, %v1120
    %v1129 = vcombine.high %v1127, %v1127
    %v1131 = vunpack.c.l.s4 1966171168
    %v1132 = vunpack.c.0.s8 %v1131
    %v1133 = vlaneseq
    %v1134 = vshrl.u32 %v1133, 7
    %v1135 = vsub.s32 %v1132, %v1134
    %v1136 = vrot.slane %v1120, %v1135
    %v1138 = vunpack.c.l.s4 1966171168
    %v1139 = vunpack.c.0.s8 %v1138
    %v1140 = vlaneseq
    %v1141 = vshrl.u32 %v1140, 7
    %v1142 = vsub.s32 %v1139, %v1141
    %v1143 = vrot.slane %v1127, %v1142
    %v1145 = vunpack.c.l.s4 1966171168
    %v1146 = vunpack.c.0.s8 %v1145
    %v1147 = vlaneseq
    %v1148 = vshrl.u32 %v1147, 7
    %v1149 = vsub.s32 %v1146, %v1148
    %v1150 = vrot.slane %v1128, %v1149
    %v1152 = vunpack.c.l.s4 1966171168
    %v1153 = vunpack.c.0.s8 %v1152
    %v1154 = vlaneseq
    %v1155 = vshrl.u32 %v1154, 7
    %v1156 = vsub.s32 %v1153, %v1155
    %v1157 = vrot.slane %v1129, %v1156
    %v1158 = vcombine.high %v1136, %v1136
    %v1159 = vcombine.high %v1143, %v1143
    %v1160 = vcombine.high %v1150, %v1150
    %v1161 = vcombine.high %v1157, %v1157
    %v1162 = vcombine.high %v863, %v863
    %v1164 = vunpack.c.l.s4 1966171168
    %v1165 = vunpack.c.0.s8 %v1164
    %v1166 = vlaneseq
    %v1167 = vshrl.u32 %v1166, 7
    %v1168 = vsub.s32 %v1165, %v1167
    %v1169 = vrot.slane %v863, %v1168
    %v1171 = vunpack.c.l.s4 1966171168
    %v1172 = vunpack.c.0.s8 %v1171
    %v1173 = vlaneseq
    %v1174 = vshrl.u32 %v1173, 7
    %v1175 = vsub.s32 %v1172, %v1174
    %v1176 = vrot.slane %v1162, %v1175
    %v1177 = vcombine.high %v1169, %v1169
    %v1178 = vcombine.high %v1176, %v1176
    %v1180 = vunpack.c.l.s4 1966171168
    %v1181 = vunpack.c.0.s8 %v1180
    %v1182 = vlaneseq
    %v1183 = vshrl.u32 %v1182, 7
    %v1184 = vsub.s32 %v1181, %v1183
    %v1185 = vrot.slane %v1169, %v1184
    %v1187 = vunpack.c.l.s4 1966171168
    %v1188 = vunpack.c.0.s8 %v1187
    %v1189 = vlaneseq
    %v1190 = vshrl.u32 %v1189, 7
    %v1191 = vsub.s32 %v1188, %v1190
    %v1192 = vrot.slane %v1176, %v1191
    %v1194 = vunpack.c.l.s4 1966171168
    %v1195 = vunpack.c.0.s8 %v1194
    %v1196 = vlaneseq
    %v1197 = vshrl.u32 %v1196, 7
    %v1198 = vsub.s32 %v1195, %v1197
    %v1199 = vrot.slane %v1177, %v1198
    %v1201 = vunpack.c.l.s4 1966171168
    %v1202 = vunpack.c.0.s8 %v1201
    %v1203 = vlaneseq
    %v1204 = vshrl.u32 %v1203, 7
    %v1205 = vsub.s32 %v1202, %v1204
    %v1206 = vrot.slane %v1178, %v1205
    %v1207 = vcombine.high %v1185, %v1185
    %v1208 = vcombine.high %v1192, %v1192
    %v1209 = vcombine.high %v1199, %v1199
    %v1210 = vcombine.high %v1206, %v1206
    %v1211 = vcombine.high %v932, %v932
    %v1213 = vunpack.c.l.s4 1966171168
    %v1214 = vunpack.c.0.s8 %v1213
    %v1215 = vlaneseq
    %v1216 = vshrl.u32 %v1215, 7
    %v1217 = vsub.s32 %v1214, %v1216
    %v1218 = vrot.slane %v932, %v1217
    %v1220 = vunpack.c.l.s4 1966171168
    %v1221 = vunpack.c.0.s8 %v1220
    %v1222 = vlaneseq
    %v1223 = vshrl.u32 %v1222, 7
    %v1224 = vsub.s32 %v1221, %v1223
    %v1225 = vrot.slane %v1211, %v1224
    %v1226 = vcombine.high %v1218, %v1218
    %v1227 = vcombine.high %v1225, %v1225
    %v1229 = vunpack.c.l.s4 1966171168
    %v1230 = vunpack.c.0.s8 %v1229
    %v1231 = vlaneseq
    %v1232 = vshrl.u32 %v1231, 7
    %v1233 = vsub.s32 %v1230, %v1232
    %v1234 = vrot.slane %v1218, %v1233
    %v1236 = vunpack.c.l.s4 1966171168
    %v1237 = vunpack.c.0.s8 %v1236
    %v1238 = vlaneseq
    %v1239 = vshrl.u32 %v1238, 7
    %v1240 = vsub.s32 %v1237, %v1239
    %v1241 = vrot.slane %v1225, %v1240
    %v1243 = vunpack.c.l.s4 1966171168
    %v1244 = vunpack.c.0.s8 %v1243
    %v1245 = vlaneseq
    %v1246 = vshrl.u32 %v1245, 7
    %v1247 = vsub.s32 %v1244, %v1246
    %v1248 = vrot.slane %v1226, %v1247
    %v1250 = vunpack.c.l.s4 1966171168
    %v1251 = vunpack.c.0.s8 %v1250
    %v1252 = vlaneseq
    %v1253 = vshrl.u32 %v1252, 7
    %v1254 = vsub.s32 %v1251, %v1253
    %v1255 = vrot.slane %v1227, %v1254
    %v1256 = vcombine.high %v1234, %v1234
    %v1257 = vcombine.high %v1241, %v1241
    %v1258 = vcombine.high %v1248, %v1248
    %v1259 = vcombine.high %v1255, %v1255
    %v1260 = vcombine.high %v934, %v934
    %v1262 = vunpack.c.l.s4 1966171168
    %v1263 = vunpack.c.0.s8 %v1262
    %v1264 = vlaneseq
    %v1265 = vshrl.u32 %v1264, 7
    %v1266 = vsub.s32 %v1263, %v1265
    %v1267 = vrot.slane %v934, %v1266
    %v1269 = vunpack.c.l.s4 1966171168
    %v1270 = vunpack.c.0.s8 %v1269
    %v1271 = vlaneseq
    %v1272 = vshrl.u32 %v1271, 7
    %v1273 = vsub.s32 %v1270, %v1272
    %v1274 = vrot.slane %v1260, %v1273
    %v1275 = vcombine.high %v1267, %v1267
    %v1276 = vcombine.high %v1274, %v1274
    %v1278 = vunpack.c.l.s4 1966171168
    %v1279 = vunpack.c.0.s8 %v1278
    %v1280 = vlaneseq
    %v1281 = vshrl.u32 %v1280, 7
    %v1282 = vsub.s32 %v1279, %v1281
    %v1283 = vrot.slane %v1267, %v1282
    %v1285 = vunpack.c.l.s4 1966171168
    %v1286 = vunpack.c.0.s8 %v1285
    %v1287 = vlaneseq
    %v1288 = vshrl.u32 %v1287, 7
    %v1289 = vsub.s32 %v1286, %v1288
    %v1290 = vrot.slane %v1274, %v1289
    %v1292 = vunpack.c.l.s4 1966171168
    %v1293 = vunpack.c.0.s8 %v1292
    %v1294 = vlaneseq
    %v1295 = vshrl.u32 %v1294, 7
    %v1296 = vsub.s32 %v1293, %v1295
    %v1297 = vrot.slane %v1275, %v1296
    %v1299 = vunpack.c.l.s4 1966171168
    %v1300 = vunpack.c.0.s8 %v1299
    %v1301 = vlaneseq
    %v1302 = vshrl.u32 %v1301, 7
    %v1303 = vsub.s32 %v1300, %v1302
    %v1304 = vrot.slane %v1276, %v1303
    %v1305 = vcombine.high %v1283, %v1283
    %v1306 = vcombine.high %v1290, %v1290
    %v1307 = vcombine.high %v1297, %v1297
    %v1308 = vcombine.high %v1304, %v1304
    %v1309 = vcombine.high %v1003, %v1003
    %v1311 = vunpack.c.l.s4 1966171168
    %v1312 = vunpack.c.0.s8 %v1311
    %v1313 = vlaneseq
    %v1314 = vshrl.u32 %v1313, 7
    %v1315 = vsub.s32 %v1312, %v1314
    %v1316 = vrot.slane %v1003, %v1315
    %v1318 = vunpack.c.l.s4 1966171168
    %v1319 = vunpack.c.0.s8 %v1318
    %v1320 = vlaneseq
    %v1321 = vshrl.u32 %v1320, 7
    %v1322 = vsub.s32 %v1319, %v1321
    %v1323 = vrot.slane %v1309, %v1322
    %v1324 = vcombine.high %v1316, %v1316
    %v1325 = vcombine.high %v1323, %v1323
    %v1327 = vunpack.c.l.s4 1966171168
    %v1328 = vunpack.c.0.s8 %v1327
    %v1329 = vlaneseq
    %v1330 = vshrl.u32 %v1329, 7
    %v1331 = vsub.s32 %v1328, %v1330
    %v1332 = vrot.slane %v1316, %v1331
    %v1334 = vunpack.c.l.s4 1966171168
    %v1335 = vunpack.c.0.s8 %v1334
    %v1336 = vlaneseq
    %v1337 = vshrl.u32 %v1336, 7
    %v1338 = vsub.s32 %v1335, %v1337
    %v1339 = vrot.slane %v1323, %v1338
    %v1341 = vunpack.c.l.s4 1966171168
    %v1342 = vunpack.c.0.s8 %v1341
    %v1343 = vlaneseq
    %v1344 = vshrl.u32 %v1343, 7
    %v1345 = vsub.s32 %v1342, %v1344
    %v1346 = vrot.slane %v1324, %v1345
    %v1348 = vunpack.c.l.s4 1966171168
    %v1349 = vunpack.c.0.s8 %v1348
    %v1350 = vlaneseq
    %v1351 = vshrl.u32 %v1350, 7
    %v1352 = vsub.s32 %v1349, %v1351
    %v1353 = vrot.slane %v1325, %v1352
    %v1354 = vcombine.high %v1332, %v1332
    %v1355 = vcombine.high %v1339, %v1339
    %v1356 = vcombine.high %v1346, %v1346
    %v1357 = vcombine.high %v1353, %v1353
    %v1358 = vcombine.high %v1005, %v1005
    %v1360 = vunpack.c.l.s4 1966171168
    %v1361 = vunpack.c.0.s8 %v1360
    %v1362 = vlaneseq
    %v1363 = vshrl.u32 %v1362, 7
    %v1364 = vsub.s32 %v1361, %v1363
    %v1365 = vrot.slane %v1005, %v1364
    %v1367 = vunpack.c.l.s4 1966171168
    %v1368 = vunpack.c.0.s8 %v1367
    %v1369 = vlaneseq
    %v1370 = vshrl.u32 %v1369, 7
    %v1371 = vsub.s32 %v1368, %v1370
    %v1372 = vrot.slane %v1358, %v1371
    %v1373 = vcombine.high %v1365, %v1365
    %v1374 = vcombine.high %v1372, %v1372
    %v1376 = vunpack.c.l.s4 1966171168
    %v1377 = vunpack.c.0.s8 %v1376
    %v1378 = vlaneseq
    %v1379 = vshrl.u32 %v1378, 7
    %v1380 = vsub.s32 %v1377, %v1379
    %v1381 = vrot.slane %v1365, %v1380
    %v1383 = vunpack.c.l.s4 1966171168
    %v1384 = vunpack.c.0.s8 %v1383
    %v1385 = vlaneseq
    %v1386 = vshrl.u32 %v1385, 7
    %v1387 = vsub.s32 %v1384, %v1386
    %v1388 = vrot.slane %v1372, %v1387
    %v1390 = vunpack.c.l.s4 1966171168
    %v1391 = vunpack.c.0.s8 %v1390
    %v1392 = vlaneseq
    %v1393 = vshrl.u32 %v1392, 7
    %v1394 = vsub.s32 %v1391, %v1393
    %v1395 = vrot.slane %v1373, %v1394
    %v1397 = vunpack.c.l.s4 1966171168
    %v1398 = vunpack.c.0.s8 %v1397
    %v1399 = vlaneseq
    %v1400 = vshrl.u32 %v1399, 7
    %v1401 = vsub.s32 %v1398, %v1400
    %v1402 = vrot.slane %v1374, %v1401
    %v1403 = vcombine.high %v1381, %v1381
    %v1404 = vcombine.high %v1388, %v1388
    %v1405 = vcombine.high %v1395, %v1395
    %v1406 = vcombine.high %v1402, %v1402
    %v1407 = vlaneseq
    %v1408 = vshrl.u32 %v1407, 7
    %v1409 = vsub.s32 0, %v1408
    %v1410 = vrot.slane %v1038, %v1409
    %v1411 = vlaneseq
    %v1412 = vshrl.u32 %v1411, 7
    %v1413 = vsub.s32 0, %v1412
    %v1414 = vrot.slane %v1052, %v1413
    %v1415 = vlaneseq
    %v1416 = vshrl.u32 %v1415, 7
    %v1417 = vsub.s32 0, %v1416
    %v1418 = vrot.slane %v1060, %v1417
    %v1419 = vlaneseq
    %v1420 = vshrl.u32 %v1419, 7
    %v1421 = vsub.s32 0, %v1420
    %v1422 = vrot.slane %v1062, %v1421
    %v1423 = vlaneseq
    %v1424 = vshrl.u32 %v1423, 7
    %v1425 = vsub.s32 0, %v1424
    %v1426 = vrot.slane %v1045, %v1425
    %v1427 = vlaneseq
    %v1428 = vshrl.u32 %v1427, 7
    %v1429 = vsub.s32 0, %v1428
    %v1430 = vrot.slane %v1059, %v1429
    %v1431 = vlaneseq
    %v1432 = vshrl.u32 %v1431, 7
    %v1433 = vsub.s32 0, %v1432
    %v1434 = vrot.slane %v1061, %v1433
    %v1435 = vlaneseq
    %v1436 = vshrl.u32 %v1435, 7
    %v1437 = vsub.s32 0, %v1436
    %v1438 = vrot.slane %v1063, %v1437
    %v1439 = vlaneseq
    %v1440 = vshrl.u32 %v1439, 7
    %v1441 = vsub.s32 0, %v1440
    %v1442 = vrot.slane %v1087, %v1441
    %v1443 = vlaneseq
    %v1444 = vshrl.u32 %v1443, 7
    %v1445 = vsub.s32 0, %v1444
    %v1446 = vrot.slane %v1101, %v1445
    %v1447 = vlaneseq
    %v1448 = vshrl.u32 %v1447, 7
    %v1449 = vsub.s32 0, %v1448
    %v1450 = vrot.slane %v1109, %v1449
    %v1451 = vlaneseq
    %v1452 = vshrl.u32 %v1451, 7
    %v1453 = vsub.s32 0, %v1452
    %v1454 = vrot.slane %v1111, %v1453
    %v1455 = vlaneseq
    %v1456 = vshrl.u32 %v1455, 7
    %v1457 = vsub.s32 0, %v1456
    %v1458 = vrot.slane %v1094, %v1457
    %v1459 = vlaneseq
    %v1460 = vshrl.u32 %v1459, 7
    %v1461 = vsub.s32 0, %v1460
    %v1462 = vrot.slane %v1108, %v1461
    %v1463 = vlaneseq
    %v1464 = vshrl.u32 %v1463, 7
    %v1465 = vsub.s32 0, %v1464
    %v1466 = vrot.slane %v1110, %v1465
    %v1467 = vlaneseq
    %v1468 = vshrl.u32 %v1467, 7
    %v1469 = vsub.s32 0, %v1468
    %v1470 = vrot.slane %v1112, %v1469
    %v1471 = vlaneseq
    %v1472 = vshrl.u32 %v1471, 7
    %v1473 = vsub.s32 0, %v1472
    %v1474 = vrot.slane %v1136, %v1473
    %v1475 = vlaneseq
    %v1476 = vshrl.u32 %v1475, 7
    %v1477 = vsub.s32 0, %v1476
    %v1478 = vrot.slane %v1150, %v1477
    %v1479 = vlaneseq
    %v1480 = vshrl.u32 %v1479, 7
    %v1481 = vsub.s32 0, %v1480
    %v1482 = vrot.slane %v1158, %v1481
    %v1483 = vlaneseq
    %v1484 = vshrl.u32 %v1483, 7
    %v1485 = vsub.s32 0, %v1484
    %v1486 = vrot.slane %v1160, %v1485
    %v1487 = vlaneseq
    %v1488 = vshrl.u32 %v1487, 7
    %v1489 = vsub.s32 0, %v1488
    %v1490 = vrot.slane %v1143, %v1489
    %v1491 = vlaneseq
    %v1492 = vshrl.u32 %v1491, 7
    %v1493 = vsub.s32 0, %v1492
    %v1494 = vrot.slane %v1157, %v1493
    %v1495 = vlaneseq
    %v1496 = vshrl.u32 %v1495, 7
    %v1497 = vsub.s32 0, %v1496
    %v1498 = vrot.slane %v1159, %v1497
    %v1499 = vlaneseq
    %v1500 = vshrl.u32 %v1499, 7
    %v1501 = vsub.s32 0, %v1500
    %v1502 = vrot.slane %v1161, %v1501
    %v1503 = vlaneseq
    %v1504 = vshrl.u32 %v1503, 7
    %v1505 = vsub.s32 0, %v1504
    %v1506 = vrot.slane %v1185, %v1505
    %v1507 = vlaneseq
    %v1508 = vshrl.u32 %v1507, 7
    %v1509 = vsub.s32 0, %v1508
    %v1510 = vrot.slane %v1199, %v1509
    %v1511 = vlaneseq
    %v1512 = vshrl.u32 %v1511, 7
    %v1513 = vsub.s32 0, %v1512
    %v1514 = vrot.slane %v1207, %v1513
    %v1515 = vlaneseq
    %v1516 = vshrl.u32 %v1515, 7
    %v1517 = vsub.s32 0, %v1516
    %v1518 = vrot.slane %v1209, %v1517
    %v1519 = vlaneseq
    %v1520 = vshrl.u32 %v1519, 7
    %v1521 = vsub.s32 0, %v1520
    %v1522 = vrot.slane %v1192, %v1521
    %v1523 = vlaneseq
    %v1524 = vshrl.u32 %v1523, 7
    %v1525 = vsub.s32 0, %v1524
    %v1526 = vrot.slane %v1206, %v1525
    %v1527 = vlaneseq
    %v1528 = vshrl.u32 %v1527, 7
    %v1529 = vsub.s32 0, %v1528
    %v1530 = vrot.slane %v1208, %v1529
    %v1531 = vlaneseq
    %v1532 = vshrl.u32 %v1531, 7
    %v1533 = vsub.s32 0, %v1532
    %v1534 = vrot.slane %v1210, %v1533
    %v1535 = vlaneseq
    %v1536 = vshrl.u32 %v1535, 7
    %v1537 = vsub.s32 0, %v1536
    %v1538 = vrot.slane %v1234, %v1537
    %v1539 = vlaneseq
    %v1540 = vshrl.u32 %v1539, 7
    %v1541 = vsub.s32 0, %v1540
    %v1542 = vrot.slane %v1248, %v1541
    %v1543 = vlaneseq
    %v1544 = vshrl.u32 %v1543, 7
    %v1545 = vsub.s32 0, %v1544
    %v1546 = vrot.slane %v1256, %v1545
    %v1547 = vlaneseq
    %v1548 = vshrl.u32 %v1547, 7
    %v1549 = vsub.s32 0, %v1548
    %v1550 = vrot.slane %v1258, %v1549
    %v1551 = vlaneseq
    %v1552 = vshrl.u32 %v1551, 7
    %v1553 = vsub.s32 0, %v1552
    %v1554 = vrot.slane %v1241, %v1553
    %v1555 = vlaneseq
    %v1556 = vshrl.u32 %v1555, 7
    %v1557 = vsub.s32 0, %v1556
    %v1558 = vrot.slane %v1255, %v1557
    %v1559 = vlaneseq
    %v1560 = vshrl.u32 %v1559, 7
    %v1561 = vsub.s32 0, %v1560
    %v1562 = vrot.slane %v1257, %v1561
    %v1563 = vlaneseq
    %v1564 = vshrl.u32 %v1563, 7
    %v1565 = vsub.s32 0, %v1564
    %v1566 = vrot.slane %v1259, %v1565
    %v1567 = vlaneseq
    %v1568 = vshrl.u32 %v1567, 7
    %v1569 = vsub.s32 0, %v1568
    %v1570 = vrot.slane %v1283, %v1569
    %v1571 = vlaneseq
    %v1572 = vshrl.u32 %v1571, 7
    %v1573 = vsub.s32 0, %v1572
    %v1574 = vrot.slane %v1297, %v1573
    %v1575 = vlaneseq
    %v1576 = vshrl.u32 %v1575, 7
    %v1577 = vsub.s32 0, %v1576
    %v1578 = vrot.slane %v1305, %v1577
    %v1579 = vlaneseq
    %v1580 = vshrl.u32 %v1579, 7
    %v1581 = vsub.s32 0, %v1580
    %v1582 = vrot.slane %v1307, %v1581
    %v1583 = vlaneseq
    %v1584 = vshrl.u32 %v1583, 7
    %v1585 = vsub.s32 0, %v1584
    %v1586 = vrot.slane %v1290, %v1585
    %v1587 = vlaneseq
    %v1588 = vshrl.u32 %v1587, 7
    %v1589 = vsub.s32 0, %v1588
    %v1590 = vrot.slane %v1304, %v1589
    %v1591 = vlaneseq
    %v1592 = vshrl.u32 %v1591, 7
    %v1593 = vsub.s32 0, %v1592
    %v1594 = vrot.slane %v1306, %v1593
    %v1595 = vlaneseq
    %v1596 = vshrl.u32 %v1595, 7
    %v1597 = vsub.s32 0, %v1596
    %v1598 = vrot.slane %v1308, %v1597
    %v1599 = vlaneseq
    %v1600 = vshrl.u32 %v1599, 7
    %v1601 = vsub.s32 0, %v1600
    %v1602 = vrot.slane %v1332, %v1601
    %v1603 = vlaneseq
    %v1604 = vshrl.u32 %v1603, 7
    %v1605 = vsub.s32 0, %v1604
    %v1606 = vrot.slane %v1346, %v1605
    %v1607 = vlaneseq
    %v1608 = vshrl.u32 %v1607, 7
    %v1609 = vsub.s32 0, %v1608
    %v1610 = vrot.slane %v1354, %v1609
    %v1611 = vlaneseq
    %v1612 = vshrl.u32 %v1611, 7
    %v1613 = vsub.s32 0, %v1612
    %v1614 = vrot.slane %v1356, %v1613
    %v1615 = vlaneseq
    %v1616 = vshrl.u32 %v1615, 7
    %v1617 = vsub.s32 0, %v1616
    %v1618 = vrot.slane %v1339, %v1617
    %v1619 = vlaneseq
    %v1620 = vshrl.u32 %v1619, 7
    %v1621 = vsub.s32 0, %v1620
    %v1622 = vrot.slane %v1353, %v1621
    %v1623 = vlaneseq
    %v1624 = vshrl.u32 %v1623, 7
    %v1625 = vsub.s32 0, %v1624
    %v1626 = vrot.slane %v1355, %v1625
    %v1627 = vlaneseq
    %v1628 = vshrl.u32 %v1627, 7
    %v1629 = vsub.s32 0, %v1628
    %v1630 = vrot.slane %v1357, %v1629
    %v1631 = vlaneseq
    %v1632 = vshrl.u32 %v1631, 7
    %v1633 = vsub.s32 0, %v1632
    %v1634 = vrot.slane %v1381, %v1633
    %v1635 = vlaneseq
    %v1636 = vshrl.u32 %v1635, 7
    %v1637 = vsub.s32 0, %v1636
    %v1638 = vrot.slane %v1395, %v1637
    %v1639 = vlaneseq
    %v1640 = vshrl.u32 %v1639, 7
    %v1641 = vsub.s32 0, %v1640
    %v1642 = vrot.slane %v1403, %v1641
    %v1643 = vlaneseq
    %v1644 = vshrl.u32 %v1643, 7
    %v1645 = vsub.s32 0, %v1644
    %v1646 = vrot.slane %v1405, %v1645
    %v1647 = vlaneseq
    %v1648 = vshrl.u32 %v1647, 7
    %v1649 = vsub.s32 0, %v1648
    %v1650 = vrot.slane %v1388, %v1649
    %v1651 = vlaneseq
    %v1652 = vshrl.u32 %v1651, 7
    %v1653 = vsub.s32 0, %v1652
    %v1654 = vrot.slane %v1402, %v1653
    %v1655 = vlaneseq
    %v1656 = vshrl.u32 %v1655, 7
    %v1657 = vsub.s32 0, %v1656
    %v1658 = vrot.slane %v1404, %v1657
    %v1659 = vlaneseq
    %v1660 = vshrl.u32 %v1659, 7
    %v1661 = vsub.s32 0, %v1660
    %v1662 = vrot.slane %v1406, %v1661
    %v1727 = vadd.f32 %v1410, %v506
    %v1728 = vadd.f32 %v1414, %v506
    %v1729 = vadd.f32 %v1418, %v506
    %v1730 = vadd.f32 %v1422, %v506
    %v1731 = vadd.f32 %v1426, %v506
    %v1732 = vadd.f32 %v1430, %v506
    %v1733 = vadd.f32 %v1434, %v506
    %v1734 = vadd.f32 %v1438, %v506
    %v1735 = vadd.f32 %v1442, %v508
    %v1736 = vadd.f32 %v1446, %v508
    %v1737 = vadd.f32 %v1450, %v508
    %v1738 = vadd.f32 %v1454, %v508
    %v1739 = vadd.f32 %v1458, %v508
    %v1740 = vadd.f32 %v1462, %v508
    %v1741 = vadd.f32 %v1466, %v508
    %v1742 = vadd.f32 %v1470, %v508
    %v1743 = vadd.f32 %v1474, %v577
    %v1744 = vadd.f32 %v1478, %v577
    %v1745 = vadd.f32 %v1482, %v577
    %v1746 = vadd.f32 %v1486, %v577
    %v1747 = vadd.f32 %v1490, %v577
    %v1748 = vadd.f32 %v1494, %v577
    %v1749 = vadd.f32 %v1498, %v577
    %v1750 = vadd.f32 %v1502, %v577
    %v1751 = vadd.f32 %v1506, %v579
    %v1752 = vadd.f32 %v1510, %v579
    %v1753 = vadd.f32 %v1514, %v579
    %v1754 = vadd.f32 %v1518, %v579
    %v1755 = vadd.f32 %v1522, %v579
    %v1756 = vadd.f32 %v1526, %v579
    %v1757 = vadd.f32 %v1530, %v579
    %v1758 = vadd.f32 %v1534, %v579
    %v1759 = vadd.f32 %v1538, %v648
    %v1760 = vadd.f32 %v1542, %v648
    %v1761 = vadd.f32 %v1546, %v648
    %v1762 = vadd.f32 %v1550, %v648
    %v1763 = vadd.f32 %v1554, %v648
    %v1764 = vadd.f32 %v1558, %v648
    %v1765 = vadd.f32 %v1562, %v648
    %v1766 = vadd.f32 %v1566, %v648
    %v1767 = vadd.f32 %v1570, %v650
    %v1768 = vadd.f32 %v1574, %v650
    %v1769 = vadd.f32 %v1578, %v650
    %v1770 = vadd.f32 %v1582, %v650
    %v1771 = vadd.f32 %v1586, %v650
    %v1772 = vadd.f32 %v1590, %v650
    %v1773 = vadd.f32 %v1594, %v650
    %v1774 = vadd.f32 %v1598, %v650
    %v1775 = vadd.f32 %v1602, %v719
    %v1776 = vadd.f32 %v1606, %v719
    %v1777 = vadd.f32 %v1610, %v719
    %v1778 = vadd.f32 %v1614, %v719
    %v1779 = vadd.f32 %v1618, %v719
    %v1780 = vadd.f32 %v1622, %v719
    %v1781 = vadd.f32 %v1626, %v719
    %v1782 = vadd.f32 %v1630, %v719
    %v1783 = vadd.f32 %v1634, %v721
    %v1784 = vadd.f32 %v1638, %v721
    %v1785 = vadd.f32 %v1642, %v721
    %v1786 = vadd.f32 %v1646, %v721
    %v1787 = vadd.f32 %v1650, %v721
    %v1788 = vadd.f32 %v1654, %v721
    %v1789 = vadd.f32 %v1658, %v721
    %v1790 = vadd.f32 %v1662, %v721
    %vm1791 = vcmp.ge.f32.partialorder %v1727, 0.0
    %vm1792 = vcmp.ge.f32.partialorder %v1728, 0.0
    %vm1793 = vcmp.ge.f32.partialorder %v1729, 0.0
    %vm1794 = vcmp.ge.f32.partialorder %v1730, 0.0
    %vm1795 = vcmp.ge.f32.partialorder %v1731, 0.0
    %vm1796 = vcmp.ge.f32.partialorder %v1732, 0.0
    %vm1797 = vcmp.ge.f32.partialorder %v1733, 0.0
    %vm1798 = vcmp.ge.f32.partialorder %v1734, 0.0
    %vm1799 = vcmp.ge.f32.partialorder %v1735, 0.0
    %vm1800 = vcmp.ge.f32.partialorder %v1736, 0.0
    %vm1801 = vcmp.ge.f32.partialorder %v1737, 0.0
    %vm1802 = vcmp.ge.f32.partialorder %v1738, 0.0
    %vm1803 = vcmp.ge.f32.partialorder %v1739, 0.0
    %vm1804 = vcmp.ge.f32.partialorder %v1740, 0.0
    %vm1805 = vcmp.ge.f32.partialorder %v1741, 0.0
    %vm1806 = vcmp.ge.f32.partialorder %v1742, 0.0
    %vm1807 = vcmp.ge.f32.partialorder %v1743, 0.0
    %vm1808 = vcmp.ge.f32.partialorder %v1744, 0.0
    %vm1809 = vcmp.ge.f32.partialorder %v1745, 0.0
    %vm1810 = vcmp.ge.f32.partialorder %v1746, 0.0
    %vm1811 = vcmp.ge.f32.partialorder %v1747, 0.0
    %vm1812 = vcmp.ge.f32.partialorder %v1748, 0.0
    %vm1813 = vcmp.ge.f32.partialorder %v1749, 0.0
    %vm1814 = vcmp.ge.f32.partialorder %v1750, 0.0
    %vm1815 = vcmp.ge.f32.partialorder %v1751, 0.0
    %vm1816 = vcmp.ge.f32.partialorder %v1752, 0.0
    %vm1817 = vcmp.ge.f32.partialorder %v1753, 0.0
    %vm1818 = vcmp.ge.f32.partialorder %v1754, 0.0
    %vm1819 = vcmp.ge.f32.partialorder %v1755, 0.0
    %vm1820 = vcmp.ge.f32.partialorder %v1756, 0.0
    %vm1821 = vcmp.ge.f32.partialorder %v1757, 0.0
    %vm1822 = vcmp.ge.f32.partialorder %v1758, 0.0
    %vm1823 = vcmp.ge.f32.partialorder %v1759, 0.0
    %vm1824 = vcmp.ge.f32.partialorder %v1760, 0.0
    %vm1825 = vcmp.ge.f32.partialorder %v1761, 0.0
    %vm1826 = vcmp.ge.f32.partialorder %v1762, 0.0
    %vm1827 = vcmp.ge.f32.partialorder %v1763, 0.0
    %vm1828 = vcmp.ge.f32.partialorder %v1764, 0.0
    %vm1829 = vcmp.ge.f32.partialorder %v1765, 0.0
    %vm1830 = vcmp.ge.f32.partialorder %v1766, 0.0
    %vm1831 = vcmp.ge.f32.partialorder %v1767, 0.0
    %vm1832 = vcmp.ge.f32.partialorder %v1768, 0.0
    %vm1833 = vcmp.ge.f32.partialorder %v1769, 0.0
    %vm1834 = vcmp.ge.f32.partialorder %v1770, 0.0
    %vm1835 = vcmp.ge.f32.partialorder %v1771, 0.0
    %vm1836 = vcmp.ge.f32.partialorder %v1772, 0.0
    %vm1837 = vcmp.ge.f32.partialorder %v1773, 0.0
    %vm1838 = vcmp.ge.f32.partialorder %v1774, 0.0
    %vm1839 = vcmp.ge.f32.partialorder %v1775, 0.0
    %vm1840 = vcmp.ge.f32.partialorder %v1776, 0.0
    %vm1841 = vcmp.ge.f32.partialorder %v1777, 0.0
    %vm1842 = vcmp.ge.f32.partialorder %v1778, 0.0
    %vm1843 = vcmp.ge.f32.partialorder %v1779, 0.0
    %vm1844 = vcmp.ge.f32.partialorder %v1780, 0.0
    %vm1845 = vcmp.ge.f32.partialorder %v1781, 0.0
    %vm1846 = vcmp.ge.f32.partialorder %v1782, 0.0
    %vm1847 = vcmp.ge.f32.partialorder %v1783, 0.0
    %vm1848 = vcmp.ge.f32.partialorder %v1784, 0.0
    %vm1849 = vcmp.ge.f32.partialorder %v1785, 0.0
    %vm1850 = vcmp.ge.f32.partialorder %v1786, 0.0
    %vm1851 = vcmp.ge.f32.partialorder %v1787, 0.0
    %vm1852 = vcmp.ge.f32.partialorder %v1788, 0.0
    %vm1853 = vcmp.ge.f32.partialorder %v1789, 0.0
    %vm1854 = vcmp.ge.f32.partialorder %v1790, 0.0
    %v1855 = vmul.f32 %v1727, 0.2
    %v1856 = vmul.f32 %v1728, 0.2
    %v1857 = vmul.f32 %v1729, 0.2
    %v1858 = vmul.f32 %v1730, 0.2
    %v1859 = vmul.f32 %v1731, 0.2
    %v1860 = vmul.f32 %v1732, 0.2
    %v1861 = vmul.f32 %v1733, 0.2
    %v1862 = vmul.f32 %v1734, 0.2
    %v1863 = vmul.f32 %v1735, 0.2
    %v1864 = vmul.f32 %v1736, 0.2
    %v1865 = vmul.f32 %v1737, 0.2
    %v1866 = vmul.f32 %v1738, 0.2
    %v1867 = vmul.f32 %v1739, 0.2
    %v1868 = vmul.f32 %v1740, 0.2
    %v1869 = vmul.f32 %v1741, 0.2
    %v1870 = vmul.f32 %v1742, 0.2
    %v1871 = vmul.f32 %v1743, 0.2
    %v1872 = vmul.f32 %v1744, 0.2
    %v1873 = vmul.f32 %v1745, 0.2
    %v1874 = vmul.f32 %v1746, 0.2
    %v1875 = vmul.f32 %v1747, 0.2
    %v1876 = vmul.f32 %v1748, 0.2
    %v1877 = vmul.f32 %v1749, 0.2
    %v1878 = vmul.f32 %v1750, 0.2
    %v1879 = vmul.f32 %v1751, 0.2
    %v1880 = vmul.f32 %v1752, 0.2
    %v1881 = vmul.f32 %v1753, 0.2
    %v1882 = vmul.f32 %v1754, 0.2
    %v1883 = vmul.f32 %v1755, 0.2
    %v1884 = vmul.f32 %v1756, 0.2
    %v1885 = vmul.f32 %v1757, 0.2
    %v1886 = vmul.f32 %v1758, 0.2
    %v1887 = vmul.f32 %v1759, 0.2
    %v1888 = vmul.f32 %v1760, 0.2
    %v1889 = vmul.f32 %v1761, 0.2
    %v1890 = vmul.f32 %v1762, 0.2
    %v1891 = vmul.f32 %v1763, 0.2
    %v1892 = vmul.f32 %v1764, 0.2
    %v1893 = vmul.f32 %v1765, 0.2
    %v1894 = vmul.f32 %v1766, 0.2
    %v1895 = vmul.f32 %v1767, 0.2
    %v1896 = vmul.f32 %v1768, 0.2
    %v1897 = vmul.f32 %v1769, 0.2
    %v1898 = vmul.f32 %v1770, 0.2
    %v1899 = vmul.f32 %v1771, 0.2
    %v1900 = vmul.f32 %v1772, 0.2
    %v1901 = vmul.f32 %v1773, 0.2
    %v1902 = vmul.f32 %v1774, 0.2
    %v1903 = vmul.f32 %v1775, 0.2
    %v1904 = vmul.f32 %v1776, 0.2
    %v1905 = vmul.f32 %v1777, 0.2
    %v1906 = vmul.f32 %v1778, 0.2
    %v1907 = vmul.f32 %v1779, 0.2
    %v1908 = vmul.f32 %v1780, 0.2
    %v1909 = vmul.f32 %v1781, 0.2
    %v1910 = vmul.f32 %v1782, 0.2
    %v1911 = vmul.f32 %v1783, 0.2
    %v1912 = vmul.f32 %v1784, 0.2
    %v1913 = vmul.f32 %v1785, 0.2
    %v1914 = vmul.f32 %v1786, 0.2
    %v1915 = vmul.f32 %v1787, 0.2
    %v1916 = vmul.f32 %v1788, 0.2
    %v1917 = vmul.f32 %v1789, 0.2
    %v1918 = vmul.f32 %v1790, 0.2
    %v1919 = vsel %vm1791, %v1727, %v1855
    %v1920 = vsel %vm1792, %v1728, %v1856
    %v1921 = vsel %vm1793, %v1729, %v1857
    %v1922 = vsel %vm1794, %v1730, %v1858
    %v1923 = vsel %vm1795, %v1731, %v1859
    %v1924 = vsel %vm1796, %v1732, %v1860
    %v1925 = vsel %vm1797, %v1733, %v1861
    %v1926 = vsel %vm1798, %v1734, %v1862
    %v1927 = vsel %vm1799, %v1735, %v1863
    %v1928 = vsel %vm1800, %v1736, %v1864
    %v1929 = vsel %vm1801, %v1737, %v1865
    %v1930 = vsel %vm1802, %v1738, %v1866
    %v1931 = vsel %vm1803, %v1739, %v1867
    %v1932 = vsel %vm1804, %v1740, %v1868
    %v1933 = vsel %vm1805, %v1741, %v1869
    %v1934 = vsel %vm1806, %v1742, %v1870
    %v1935 = vsel %vm1807, %v1743, %v1871
    %v1936 = vsel %vm1808, %v1744, %v1872
    %v1937 = vsel %vm1809, %v1745, %v1873
    %v1938 = vsel %vm1810, %v1746, %v1874
    %v1939 = vsel %vm1811, %v1747, %v1875
    %v1940 = vsel %vm1812, %v1748, %v1876
    %v1941 = vsel %vm1813, %v1749, %v1877
    %v1942 = vsel %vm1814, %v1750, %v1878
    %v1943 = vsel %vm1815, %v1751, %v1879
    %v1944 = vsel %vm1816, %v1752, %v1880
    %v1945 = vsel %vm1817, %v1753, %v1881
    %v1946 = vsel %vm1818, %v1754, %v1882
    %v1947 = vsel %vm1819, %v1755, %v1883
    %v1948 = vsel %vm1820, %v1756, %v1884
    %v1949 = vsel %vm1821, %v1757, %v1885
    %v1950 = vsel %vm1822, %v1758, %v1886
    %v1951 = vsel %vm1823, %v1759, %v1887
    %v1952 = vsel %vm1824, %v1760, %v1888
    %v1953 = vsel %vm1825, %v1761, %v1889
    %v1954 = vsel %vm1826, %v1762, %v1890
    %v1955 = vsel %vm1827, %v1763, %v1891
    %v1956 = vsel %vm1828, %v1764, %v1892
    %v1957 = vsel %vm1829, %v1765, %v1893
    %v1958 = vsel %vm1830, %v1766, %v1894
    %v1959 = vsel %vm1831, %v1767, %v1895
    %v1960 = vsel %vm1832, %v1768, %v1896
    %v1961 = vsel %vm1833, %v1769, %v1897
    %v1962 = vsel %vm1834, %v1770, %v1898
    %v1963 = vsel %vm1835, %v1771, %v1899
    %v1964 = vsel %vm1836, %v1772, %v1900
    %v1965 = vsel %vm1837, %v1773, %v1901
    %v1966 = vsel %vm1838, %v1774, %v1902
    %v1967 = vsel %vm1839, %v1775, %v1903
    %v1968 = vsel %vm1840, %v1776, %v1904
    %v1969 = vsel %vm1841, %v1777, %v1905
    %v1970 = vsel %vm1842, %v1778, %v1906
    %v1971 = vsel %vm1843, %v1779, %v1907
    %v1972 = vsel %vm1844, %v1780, %v1908
    %v1973 = vsel %vm1845, %v1781, %v1909
    %v1974 = vsel %vm1846, %v1782, %v1910
    %v1975 = vsel %vm1847, %v1783, %v1911
    %v1976 = vsel %vm1848, %v1784, %v1912
    %v1977 = vsel %vm1849, %v1785, %v1913
    %v1978 = vsel %vm1850, %v1786, %v1914
    %v1979 = vsel %vm1851, %v1787, %v1915
    %v1980 = vsel %vm1852, %v1788, %v1916
    %v1981 = vsel %vm1853, %v1789, %v1917
    %v1982 = vsel %vm1854, %v1790, %v1918
    %v1983 = vld [vmem:[%s3] sm:$0xff]
    %v1985 = vcombine.high %v1983, %v1983
    %v1987 = vunpack.c.l.s4 1966171168
    %v1988 = vunpack.c.0.s8 %v1987
    %v1989 = vlaneseq
    %v1990 = vshrl.u32 %v1989, 7
    %v1991 = vsub.s32 %v1988, %v1990
    %v1992 = vrot.slane %v1983, %v1991
    %v1994 = vunpack.c.l.s4 1966171168
    %v1995 = vunpack.c.0.s8 %v1994
    %v1996 = vlaneseq
    %v1997 = vshrl.u32 %v1996, 7
    %v1998 = vsub.s32 %v1995, %v1997
    %v1999 = vrot.slane %v1985, %v1998
    %v2000 = vcombine.high %v1992, %v1992
    %v2001 = vcombine.high %v1999, %v1999
    %v2003 = vunpack.c.l.s4 1966171168
    %v2004 = vunpack.c.0.s8 %v2003
    %v2005 = vlaneseq
    %v2006 = vshrl.u32 %v2005, 7
    %v2007 = vsub.s32 %v2004, %v2006
    %v2008 = vrot.slane %v1992, %v2007
    %v2010 = vunpack.c.l.s4 1966171168
    %v2011 = vunpack.c.0.s8 %v2010
    %v2012 = vlaneseq
    %v2013 = vshrl.u32 %v2012, 7
    %v2014 = vsub.s32 %v2011, %v2013
    %v2015 = vrot.slane %v1999, %v2014
    %v2017 = vunpack.c.l.s4 1966171168
    %v2018 = vunpack.c.0.s8 %v2017
    %v2019 = vlaneseq
    %v2020 = vshrl.u32 %v2019, 7
    %v2021 = vsub.s32 %v2018, %v2020
    %v2022 = vrot.slane %v2000, %v2021
    %v2024 = vunpack.c.l.s4 1966171168
    %v2025 = vunpack.c.0.s8 %v2024
    %v2026 = vlaneseq
    %v2027 = vshrl.u32 %v2026, 7
    %v2028 = vsub.s32 %v2025, %v2027
    %v2029 = vrot.slane %v2001, %v2028
    %v2030 = vcombine.high %v2008, %v2008
    %v2031 = vcombine.high %v2015, %v2015
    %v2032 = vcombine.high %v2022, %v2022
    %v2033 = vcombine.high %v2029, %v2029
    %v2034 = vlaneseq
    %v2035 = vshrl.u32 %v2034, 7
    %v2036 = vsub.s32 0, %v2035
    %v2037 = vrot.slane %v2008, %v2036
    %v2038 = vlaneseq
    %v2039 = vshrl.u32 %v2038, 7
    %v2040 = vsub.s32 0, %v2039
    %v2041 = vrot.slane %v2022, %v2040
    %v2042 = vlaneseq
    %v2043 = vshrl.u32 %v2042, 7
    %v2044 = vsub.s32 0, %v2043
    %v2045 = vrot.slane %v2030, %v2044
    %v2046 = vlaneseq
    %v2047 = vshrl.u32 %v2046, 7
    %v2048 = vsub.s32 0, %v2047
    %v2049 = vrot.slane %v2032, %v2048
    %v2050 = vlaneseq
    %v2051 = vshrl.u32 %v2050, 7
    %v2052 = vsub.s32 0, %v2051
    %v2053 = vrot.slane %v2015, %v2052
    %v2054 = vlaneseq
    %v2055 = vshrl.u32 %v2054, 7
    %v2056 = vsub.s32 0, %v2055
    %v2057 = vrot.slane %v2029, %v2056
    %v2058 = vlaneseq
    %v2059 = vshrl.u32 %v2058, 7
    %v2060 = vsub.s32 0, %v2059
    %v2061 = vrot.slane %v2031, %v2060
    %v2062 = vlaneseq
    %v2063 = vshrl.u32 %v2062, 7
    %v2064 = vsub.s32 0, %v2063
    %v2065 = vrot.slane %v2033, %v2064
    %v2074 = vmul.f32 %v1919, %v2037
    %v2075 = vmul.f32 %v1920, %v2037
    %v2076 = vmul.f32 %v1921, %v2037
    %v2077 = vmul.f32 %v1922, %v2037
    %v2078 = vmul.f32 %v1923, %v2037
    %v2079 = vmul.f32 %v1924, %v2037
    %v2080 = vmul.f32 %v1925, %v2037
    %v2081 = vmul.f32 %v1926, %v2037
    %v2082 = vmul.f32 %v1927, %v2041
    %v2083 = vmul.f32 %v1928, %v2041
    %v2084 = vmul.f32 %v1929, %v2041
    %v2085 = vmul.f32 %v1930, %v2041
    %v2086 = vmul.f32 %v1931, %v2041
    %v2087 = vmul.f32 %v1932, %v2041
    %v2088 = vmul.f32 %v1933, %v2041
    %v2089 = vmul.f32 %v1934, %v2041
    %v2090 = vmul.f32 %v1935, %v2045
    %v2091 = vmul.f32 %v1936, %v2045
    %v2092 = vmul.f32 %v1937, %v2045
    %v2093 = vmul.f32 %v1938, %v2045
    %v2094 = vmul.f32 %v1939, %v2045
    %v2095 = vmul.f32 %v1940, %v2045
    %v2096 = vmul.f32 %v1941, %v2045
    %v2097 = vmul.f32 %v1942, %v2045
    %v2098 = vmul.f32 %v1943, %v2049
    %v2099 = vmul.f32 %v1944, %v2049
    %v2100 = vmul.f32 %v1945, %v2049
    %v2101 = vmul.f32 %v1946, %v2049
    %v2102 = vmul.f32 %v1947, %v2049
    %v2103 = vmul.f32 %v1948, %v2049
    %v2104 = vmul.f32 %v1949, %v2049
    %v2105 = vmul.f32 %v1950, %v2049
    %v2106 = vmul.f32 %v1951, %v2053
    %v2107 = vmul.f32 %v1952, %v2053
    %v2108 = vmul.f32 %v1953, %v2053
    %v2109 = vmul.f32 %v1954, %v2053
    %v2110 = vmul.f32 %v1955, %v2053
    %v2111 = vmul.f32 %v1956, %v2053
    %v2112 = vmul.f32 %v1957, %v2053
    %v2113 = vmul.f32 %v1958, %v2053
    %v2114 = vmul.f32 %v1959, %v2057
    %v2115 = vmul.f32 %v1960, %v2057
    %v2116 = vmul.f32 %v1961, %v2057
    %v2117 = vmul.f32 %v1962, %v2057
    %v2118 = vmul.f32 %v1963, %v2057
    %v2119 = vmul.f32 %v1964, %v2057
    %v2120 = vmul.f32 %v1965, %v2057
    %v2121 = vmul.f32 %v1966, %v2057
    %v2122 = vmul.f32 %v1967, %v2061
    %v2123 = vmul.f32 %v1968, %v2061
    %v2124 = vmul.f32 %v1969, %v2061
    %v2125 = vmul.f32 %v1970, %v2061
    %v2126 = vmul.f32 %v1971, %v2061
    %v2127 = vmul.f32 %v1972, %v2061
    %v2128 = vmul.f32 %v1973, %v2061
    %v2129 = vmul.f32 %v1974, %v2061
    %v2130 = vmul.f32 %v1975, %v2065
    %v2131 = vmul.f32 %v1976, %v2065
    %v2132 = vmul.f32 %v1977, %v2065
    %v2133 = vmul.f32 %v1978, %v2065
    %v2134 = vmul.f32 %v1979, %v2065
    %v2135 = vmul.f32 %v1980, %v2065
    %v2136 = vmul.f32 %v1981, %v2065
    %v2137 = vmul.f32 %v1982, %v2065
    %2138 = vadd.xlane.f32.xlu0 %v2074
    %v2139 = vpop.xlane.xlu0 %2138
    %2140 = vadd.xlane.f32.xlu0 %v2075
    %v2141 = vpop.xlane.xlu0 %2140
    %2142 = vadd.xlane.f32.xlu0 %v2076
    %v2143 = vpop.xlane.xlu0 %2142
    %2144 = vadd.xlane.f32.xlu0 %v2077
    %v2145 = vpop.xlane.xlu0 %2144
    %2146 = vadd.xlane.f32.xlu0 %v2078
    %v2147 = vpop.xlane.xlu0 %2146
    %2148 = vadd.xlane.f32.xlu0 %v2079
    %v2149 = vpop.xlane.xlu0 %2148
    %2150 = vadd.xlane.f32.xlu0 %v2080
    %v2151 = vpop.xlane.xlu0 %2150
    %2152 = vadd.xlane.f32.xlu0 %v2081
    %v2153 = vpop.xlane.xlu0 %2152
    %2154 = vadd.xlane.f32.xlu0 %v2082
    %v2155 = vpop.xlane.xlu0 %2154
    %2156 = vadd.xlane.f32.xlu0 %v2083
    %v2157 = vpop.xlane.xlu0 %2156
    %2158 = vadd.xlane.f32.xlu0 %v2084
    %v2159 = vpop.xlane.xlu0 %2158
    %2160 = vadd.xlane.f32.xlu0 %v2085
    %v2161 = vpop.xlane.xlu0 %2160
    %2162 = vadd.xlane.f32.xlu0 %v2086
    %v2163 = vpop.xlane.xlu0 %2162
    %2164 = vadd.xlane.f32.xlu0 %v2087
    %v2165 = vpop.xlane.xlu0 %2164
    %2166 = vadd.xlane.f32.xlu0 %v2088
    %v2167 = vpop.xlane.xlu0 %2166
    %2168 = vadd.xlane.f32.xlu0 %v2089
    %v2169 = vpop.xlane.xlu0 %2168
    %2170 = vadd.xlane.f32.xlu0 %v2090
    %v2171 = vpop.xlane.xlu0 %2170
    %2172 = vadd.xlane.f32.xlu0 %v2091
    %v2173 = vpop.xlane.xlu0 %2172
    %2174 = vadd.xlane.f32.xlu0 %v2092
    %v2175 = vpop.xlane.xlu0 %2174
    %2176 = vadd.xlane.f32.xlu0 %v2093
    %v2177 = vpop.xlane.xlu0 %2176
    %2178 = vadd.xlane.f32.xlu0 %v2094
    %v2179 = vpop.xlane.xlu0 %2178
    %2180 = vadd.xlane.f32.xlu0 %v2095
    %v2181 = vpop.xlane.xlu0 %2180
    %2182 = vadd.xlane.f32.xlu0 %v2096
    %v2183 = vpop.xlane.xlu0 %2182
    %2184 = vadd.xlane.f32.xlu0 %v2097
    %v2185 = vpop.xlane.xlu0 %2184
    %2186 = vadd.xlane.f32.xlu0 %v2098
    %v2187 = vpop.xlane.xlu0 %2186
    %2188 = vadd.xlane.f32.xlu0 %v2099
    %v2189 = vpop.xlane.xlu0 %2188
    %2190 = vadd.xlane.f32.xlu0 %v2100
    %v2191 = vpop.xlane.xlu0 %2190
    %2192 = vadd.xlane.f32.xlu0 %v2101
    %v2193 = vpop.xlane.xlu0 %2192
    %2194 = vadd.xlane.f32.xlu0 %v2102
    %v2195 = vpop.xlane.xlu0 %2194
    %2196 = vadd.xlane.f32.xlu0 %v2103
    %v2197 = vpop.xlane.xlu0 %2196
    %2198 = vadd.xlane.f32.xlu0 %v2104
    %v2199 = vpop.xlane.xlu0 %2198
    %2200 = vadd.xlane.f32.xlu0 %v2105
    %v2201 = vpop.xlane.xlu0 %2200
    %2202 = vadd.xlane.f32.xlu0 %v2106
    %v2203 = vpop.xlane.xlu0 %2202
    %2204 = vadd.xlane.f32.xlu0 %v2107
    %v2205 = vpop.xlane.xlu0 %2204
    %2206 = vadd.xlane.f32.xlu0 %v2108
    %v2207 = vpop.xlane.xlu0 %2206
    %2208 = vadd.xlane.f32.xlu0 %v2109
    %v2209 = vpop.xlane.xlu0 %2208
    %2210 = vadd.xlane.f32.xlu0 %v2110
    %v2211 = vpop.xlane.xlu0 %2210
    %2212 = vadd.xlane.f32.xlu0 %v2111
    %v2213 = vpop.xlane.xlu0 %2212
    %2214 = vadd.xlane.f32.xlu0 %v2112
    %v2215 = vpop.xlane.xlu0 %2214
    %2216 = vadd.xlane.f32.xlu0 %v2113
    %v2217 = vpop.xlane.xlu0 %2216
    %2218 = vadd.xlane.f32.xlu0 %v2114
    %v2219 = vpop.xlane.xlu0 %2218
    %2220 = vadd.xlane.f32.xlu0 %v2115
    %v2221 = vpop.xlane.xlu0 %2220
    %2222 = vadd.xlane.f32.xlu0 %v2116
    %v2223 = vpop.xlane.xlu0 %2222
    %2224 = vadd.xlane.f32.xlu0 %v2117
    %v2225 = vpop.xlane.xlu0 %2224
    %2226 = vadd.xlane.f32.xlu0 %v2118
    %v2227 = vpop.xlane.xlu0 %2226
    %2228 = vadd.xlane.f32.xlu0 %v2119
    %v2229 = vpop.xlane.xlu0 %2228
    %2230 = vadd.xlane.f32.xlu0 %v2120
    %v2231 = vpop.xlane.xlu0 %2230
    %2232 = vadd.xlane.f32.xlu0 %v2121
    %v2233 = vpop.xlane.xlu0 %2232
    %2234 = vadd.xlane.f32.xlu0 %v2122
    %v2235 = vpop.xlane.xlu0 %2234
    %2236 = vadd.xlane.f32.xlu0 %v2123
    %v2237 = vpop.xlane.xlu0 %2236
    %2238 = vadd.xlane.f32.xlu0 %v2124
    %v2239 = vpop.xlane.xlu0 %2238
    %2240 = vadd.xlane.f32.xlu0 %v2125
    %v2241 = vpop.xlane.xlu0 %2240
    %2242 = vadd.xlane.f32.xlu0 %v2126
    %v2243 = vpop.xlane.xlu0 %2242
    %2244 = vadd.xlane.f32.xlu0 %v2127
    %v2245 = vpop.xlane.xlu0 %2244
    %2246 = vadd.xlane.f32.xlu0 %v2128
    %v2247 = vpop.xlane.xlu0 %2246
    %2248 = vadd.xlane.f32.xlu0 %v2129
    %v2249 = vpop.xlane.xlu0 %2248
    %2250 = vadd.xlane.f32.xlu0 %v2130
    %v2251 = vpop.xlane.xlu0 %2250
    %2252 = vadd.xlane.f32.xlu0 %v2131
    %v2253 = vpop.xlane.xlu0 %2252
    %2254 = vadd.xlane.f32.xlu0 %v2132
    %v2255 = vpop.xlane.xlu0 %2254
    %2256 = vadd.xlane.f32.xlu0 %v2133
    %v2257 = vpop.xlane.xlu0 %2256
    %2258 = vadd.xlane.f32.xlu0 %v2134
    %v2259 = vpop.xlane.xlu0 %2258
    %2260 = vadd.xlane.f32.xlu0 %v2135
    %v2261 = vpop.xlane.xlu0 %2260
    %2262 = vadd.xlane.f32.xlu0 %v2136
    %v2263 = vpop.xlane.xlu0 %2262
    %2264 = vadd.xlane.f32.xlu0 %v2137
    %v2265 = vpop.xlane.xlu0 %2264
    %v2266 = vld [vmem:[#allocation8] sm:$0xff]
    %vm2267 = vcmp.gt.f32.partialorder %v2266, 0.0
    %v2332 = vlaneseq
    %v2333 = vand.u32 %v2332, 127
    %v2334 = vlaneseq
    %v2335 = vshrl.u32 %v2334, 7
    %v2336 = vsub.s32 %v2333, %v2335
    %v2337 = vrot.slane %v2139, %v2336
    %v2338 = vlaneseq
    %v2339 = vshrl.u32 %v2338, 7
    %v2340 = vsub.s32 %v2333, %v2339
    %v2341 = vrot.slane %v2141, %v2340
    %v2342 = vlaneseq
    %v2343 = vshrl.u32 %v2342, 7
    %v2344 = vsub.s32 %v2333, %v2343
    %v2345 = vrot.slane %v2143, %v2344
    %v2346 = vlaneseq
    %v2347 = vshrl.u32 %v2346, 7
    %v2348 = vsub.s32 %v2333, %v2347
    %v2349 = vrot.slane %v2145, %v2348
    %v2350 = vlaneseq
    %v2351 = vshrl.u32 %v2350, 7
    %v2352 = vsub.s32 %v2333, %v2351
    %v2353 = vrot.slane %v2147, %v2352
    %v2354 = vlaneseq
    %v2355 = vshrl.u32 %v2354, 7
    %v2356 = vsub.s32 %v2333, %v2355
    %v2357 = vrot.slane %v2149, %v2356
    %v2358 = vlaneseq
    %v2359 = vshrl.u32 %v2358, 7
    %v2360 = vsub.s32 %v2333, %v2359
    %v2361 = vrot.slane %v2151, %v2360
    %v2362 = vlaneseq
    %v2363 = vshrl.u32 %v2362, 7
    %v2364 = vsub.s32 %v2333, %v2363
    %v2365 = vrot.slane %v2153, %v2364
    %v2366 = vlaneseq
    %v2367 = vshrl.u32 %v2366, 7
    %v2368 = vsub.s32 %v2333, %v2367
    %v2369 = vrot.slane %v2155, %v2368
    %v2370 = vlaneseq
    %v2371 = vshrl.u32 %v2370, 7
    %v2372 = vsub.s32 %v2333, %v2371
    %v2373 = vrot.slane %v2157, %v2372
    %v2374 = vlaneseq
    %v2375 = vshrl.u32 %v2374, 7
    %v2376 = vsub.s32 %v2333, %v2375
    %v2377 = vrot.slane %v2159, %v2376
    %v2378 = vlaneseq
    %v2379 = vshrl.u32 %v2378, 7
    %v2380 = vsub.s32 %v2333, %v2379
    %v2381 = vrot.slane %v2161, %v2380
    %v2382 = vlaneseq
    %v2383 = vshrl.u32 %v2382, 7
    %v2384 = vsub.s32 %v2333, %v2383
    %v2385 = vrot.slane %v2163, %v2384
    %v2386 = vlaneseq
    %v2387 = vshrl.u32 %v2386, 7
    %v2388 = vsub.s32 %v2333, %v2387
    %v2389 = vrot.slane %v2165, %v2388
    %v2390 = vlaneseq
    %v2391 = vshrl.u32 %v2390, 7
    %v2392 = vsub.s32 %v2333, %v2391
    %v2393 = vrot.slane %v2167, %v2392
    %v2394 = vlaneseq
    %v2395 = vshrl.u32 %v2394, 7
    %v2396 = vsub.s32 %v2333, %v2395
    %v2397 = vrot.slane %v2169, %v2396
    %v2398 = vlaneseq
    %v2399 = vshrl.u32 %v2398, 7
    %v2400 = vsub.s32 %v2333, %v2399
    %v2401 = vrot.slane %v2171, %v2400
    %v2402 = vlaneseq
    %v2403 = vshrl.u32 %v2402, 7
    %v2404 = vsub.s32 %v2333, %v2403
    %v2405 = vrot.slane %v2173, %v2404
    %v2406 = vlaneseq
    %v2407 = vshrl.u32 %v2406, 7
    %v2408 = vsub.s32 %v2333, %v2407
    %v2409 = vrot.slane %v2175, %v2408
    %v2410 = vlaneseq
    %v2411 = vshrl.u32 %v2410, 7
    %v2412 = vsub.s32 %v2333, %v2411
    %v2413 = vrot.slane %v2177, %v2412
    %v2414 = vlaneseq
    %v2415 = vshrl.u32 %v2414, 7
    %v2416 = vsub.s32 %v2333, %v2415
    %v2417 = vrot.slane %v2179, %v2416
    %v2418 = vlaneseq
    %v2419 = vshrl.u32 %v2418, 7
    %v2420 = vsub.s32 %v2333, %v2419
    %v2421 = vrot.slane %v2181, %v2420
    %v2422 = vlaneseq
    %v2423 = vshrl.u32 %v2422, 7
    %v2424 = vsub.s32 %v2333, %v2423
    %v2425 = vrot.slane %v2183, %v2424
    %v2426 = vlaneseq
    %v2427 = vshrl.u32 %v2426, 7
    %v2428 = vsub.s32 %v2333, %v2427
    %v2429 = vrot.slane %v2185, %v2428
    %v2430 = vlaneseq
    %v2431 = vshrl.u32 %v2430, 7
    %v2432 = vsub.s32 %v2333, %v2431
    %v2433 = vrot.slane %v2187, %v2432
    %v2434 = vlaneseq
    %v2435 = vshrl.u32 %v2434, 7
    %v2436 = vsub.s32 %v2333, %v2435
    %v2437 = vrot.slane %v2189, %v2436
    %v2438 = vlaneseq
    %v2439 = vshrl.u32 %v2438, 7
    %v2440 = vsub.s32 %v2333, %v2439
    %v2441 = vrot.slane %v2191, %v2440
    %v2442 = vlaneseq
    %v2443 = vshrl.u32 %v2442, 7
    %v2444 = vsub.s32 %v2333, %v2443
    %v2445 = vrot.slane %v2193, %v2444
    %v2446 = vlaneseq
    %v2447 = vshrl.u32 %v2446, 7
    %v2448 = vsub.s32 %v2333, %v2447
    %v2449 = vrot.slane %v2195, %v2448
    %v2450 = vlaneseq
    %v2451 = vshrl.u32 %v2450, 7
    %v2452 = vsub.s32 %v2333, %v2451
    %v2453 = vrot.slane %v2197, %v2452
    %v2454 = vlaneseq
    %v2455 = vshrl.u32 %v2454, 7
    %v2456 = vsub.s32 %v2333, %v2455
    %v2457 = vrot.slane %v2199, %v2456
    %v2458 = vlaneseq
    %v2459 = vshrl.u32 %v2458, 7
    %v2460 = vsub.s32 %v2333, %v2459
    %v2461 = vrot.slane %v2201, %v2460
    %v2462 = vlaneseq
    %v2463 = vshrl.u32 %v2462, 7
    %v2464 = vsub.s32 %v2333, %v2463
    %v2465 = vrot.slane %v2203, %v2464
    %v2466 = vlaneseq
    %v2467 = vshrl.u32 %v2466, 7
    %v2468 = vsub.s32 %v2333, %v2467
    %v2469 = vrot.slane %v2205, %v2468
    %v2470 = vlaneseq
    %v2471 = vshrl.u32 %v2470, 7
    %v2472 = vsub.s32 %v2333, %v2471
    %v2473 = vrot.slane %v2207, %v2472
    %v2474 = vlaneseq
    %v2475 = vshrl.u32 %v2474, 7
    %v2476 = vsub.s32 %v2333, %v2475
    %v2477 = vrot.slane %v2209, %v2476
    %v2478 = vlaneseq
    %v2479 = vshrl.u32 %v2478, 7
    %v2480 = vsub.s32 %v2333, %v2479
    %v2481 = vrot.slane %v2211, %v2480
    %v2482 = vlaneseq
    %v2483 = vshrl.u32 %v2482, 7
    %v2484 = vsub.s32 %v2333, %v2483
    %v2485 = vrot.slane %v2213, %v2484
    %v2486 = vlaneseq
    %v2487 = vshrl.u32 %v2486, 7
    %v2488 = vsub.s32 %v2333, %v2487
    %v2489 = vrot.slane %v2215, %v2488
    %v2490 = vlaneseq
    %v2491 = vshrl.u32 %v2490, 7
    %v2492 = vsub.s32 %v2333, %v2491
    %v2493 = vrot.slane %v2217, %v2492
    %v2494 = vlaneseq
    %v2495 = vshrl.u32 %v2494, 7
    %v2496 = vsub.s32 %v2333, %v2495
    %v2497 = vrot.slane %v2219, %v2496
    %v2498 = vlaneseq
    %v2499 = vshrl.u32 %v2498, 7
    %v2500 = vsub.s32 %v2333, %v2499
    %v2501 = vrot.slane %v2221, %v2500
    %v2502 = vlaneseq
    %v2503 = vshrl.u32 %v2502, 7
    %v2504 = vsub.s32 %v2333, %v2503
    %v2505 = vrot.slane %v2223, %v2504
    %v2506 = vlaneseq
    %v2507 = vshrl.u32 %v2506, 7
    %v2508 = vsub.s32 %v2333, %v2507
    %v2509 = vrot.slane %v2225, %v2508
    %v2510 = vlaneseq
    %v2511 = vshrl.u32 %v2510, 7
    %v2512 = vsub.s32 %v2333, %v2511
    %v2513 = vrot.slane %v2227, %v2512
    %v2514 = vlaneseq
    %v2515 = vshrl.u32 %v2514, 7
    %v2516 = vsub.s32 %v2333, %v2515
    %v2517 = vrot.slane %v2229, %v2516
    %v2518 = vlaneseq
    %v2519 = vshrl.u32 %v2518, 7
    %v2520 = vsub.s32 %v2333, %v2519
    %v2521 = vrot.slane %v2231, %v2520
    %v2522 = vlaneseq
    %v2523 = vshrl.u32 %v2522, 7
    %v2524 = vsub.s32 %v2333, %v2523
    %v2525 = vrot.slane %v2233, %v2524
    %v2526 = vlaneseq
    %v2527 = vshrl.u32 %v2526, 7
    %v2528 = vsub.s32 %v2333, %v2527
    %v2529 = vrot.slane %v2235, %v2528
    %v2530 = vlaneseq
    %v2531 = vshrl.u32 %v2530, 7
    %v2532 = vsub.s32 %v2333, %v2531
    %v2533 = vrot.slane %v2237, %v2532
    %v2534 = vlaneseq
    %v2535 = vshrl.u32 %v2534, 7
    %v2536 = vsub.s32 %v2333, %v2535
    %v2537 = vrot.slane %v2239, %v2536
    %v2538 = vlaneseq
    %v2539 = vshrl.u32 %v2538, 7
    %v2540 = vsub.s32 %v2333, %v2539
    %v2541 = vrot.slane %v2241, %v2540
    %v2542 = vlaneseq
    %v2543 = vshrl.u32 %v2542, 7
    %v2544 = vsub.s32 %v2333, %v2543
    %v2545 = vrot.slane %v2243, %v2544
    %v2546 = vlaneseq
    %v2547 = vshrl.u32 %v2546, 7
    %v2548 = vsub.s32 %v2333, %v2547
    %v2549 = vrot.slane %v2245, %v2548
    %v2550 = vlaneseq
    %v2551 = vshrl.u32 %v2550, 7
    %v2552 = vsub.s32 %v2333, %v2551
    %v2553 = vrot.slane %v2247, %v2552
    %v2554 = vlaneseq
    %v2555 = vshrl.u32 %v2554, 7
    %v2556 = vsub.s32 %v2333, %v2555
    %v2557 = vrot.slane %v2249, %v2556
    %v2558 = vlaneseq
    %v2559 = vshrl.u32 %v2558, 7
    %v2560 = vsub.s32 %v2333, %v2559
    %v2561 = vrot.slane %v2251, %v2560
    %v2562 = vlaneseq
    %v2563 = vshrl.u32 %v2562, 7
    %v2564 = vsub.s32 %v2333, %v2563
    %v2565 = vrot.slane %v2253, %v2564
    %v2566 = vlaneseq
    %v2567 = vshrl.u32 %v2566, 7
    %v2568 = vsub.s32 %v2333, %v2567
    %v2569 = vrot.slane %v2255, %v2568
    %v2570 = vlaneseq
    %v2571 = vshrl.u32 %v2570, 7
    %v2572 = vsub.s32 %v2333, %v2571
    %v2573 = vrot.slane %v2257, %v2572
    %v2574 = vlaneseq
    %v2575 = vshrl.u32 %v2574, 7
    %v2576 = vsub.s32 %v2333, %v2575
    %v2577 = vrot.slane %v2259, %v2576
    %v2578 = vlaneseq
    %v2579 = vshrl.u32 %v2578, 7
    %v2580 = vsub.s32 %v2333, %v2579
    %v2581 = vrot.slane %v2261, %v2580
    %v2582 = vlaneseq
    %v2583 = vshrl.u32 %v2582, 7
    %v2584 = vsub.s32 %v2333, %v2583
    %v2585 = vrot.slane %v2263, %v2584
    %v2586 = vlaneseq
    %v2587 = vshrl.u32 %v2586, 7
    %v2588 = vsub.s32 %v2333, %v2587
    %v2589 = vrot.slane %v2265, %v2588
    %vm2590 = vcmask 1041409
    %v2591 = vsel %vm2590, %v2341, %v2337
    %vm2592 = vcmask 1042434
    %v2593 = vsel %vm2592, %v2345, %v2591
    %vm2594 = vcmask 1043459
    %v2595 = vsel %vm2594, %v2349, %v2593
    %vm2596 = vcmask 1044484
    %v2597 = vsel %vm2596, %v2353, %v2595
    %vm2598 = vcmask 1045509
    %v2599 = vsel %vm2598, %v2357, %v2597
    %vm2600 = vcmask 1046534
    %v2601 = vsel %vm2600, %v2361, %v2599
    %vm2602 = vcmask 1047559
    %v2603 = vsel %vm2602, %v2365, %v2601
    %v2604 = vsel %vm2590, %v2373, %v2369
    %v2605 = vsel %vm2592, %v2377, %v2604
    %v2606 = vsel %vm2594, %v2381, %v2605
    %v2607 = vsel %vm2596, %v2385, %v2606
    %v2608 = vsel %vm2598, %v2389, %v2607
    %v2609 = vsel %vm2600, %v2393, %v2608
    %v2610 = vsel %vm2602, %v2397, %v2609
    %v2611 = vsel %vm2590, %v2405, %v2401
    %v2612 = vsel %vm2592, %v2409, %v2611
    %v2613 = vsel %vm2594, %v2413, %v2612
    %v2614 = vsel %vm2596, %v2417, %v2613
    %v2615 = vsel %vm2598, %v2421, %v2614
    %v2616 = vsel %vm2600, %v2425, %v2615
    %v2617 = vsel %vm2602, %v2429, %v2616
    %v2618 = vsel %vm2590, %v2437, %v2433
    %v2619 = vsel %vm2592, %v2441, %v2618
    %v2620 = vsel %vm2594, %v2445, %v2619
    %v2621 = vsel %vm2596, %v2449, %v2620
    %v2622 = vsel %vm2598, %v2453, %v2621
    %v2623 = vsel %vm2600, %v2457, %v2622
    %v2624 = vsel %vm2602, %v2461, %v2623
    %v2625 = vsel %vm2590, %v2469, %v2465
    %v2626 = vsel %vm2592, %v2473, %v2625
    %v2627 = vsel %vm2594, %v2477, %v2626
    %v2628 = vsel %vm2596, %v2481, %v2627
    %v2629 = vsel %vm2598, %v2485, %v2628
    %v2630 = vsel %vm2600, %v2489, %v2629
    %v2631 = vsel %vm2602, %v2493, %v2630
    %v2632 = vsel %vm2590, %v2501, %v2497
    %v2633 = vsel %vm2592, %v2505, %v2632
    %v2634 = vsel %vm2594, %v2509, %v2633
    %v2635 = vsel %vm2596, %v2513, %v2634
    %v2636 = vsel %vm2598, %v2517, %v2635
    %v2637 = vsel %vm2600, %v2521, %v2636
    %v2638 = vsel %vm2602, %v2525, %v2637
    %v2639 = vsel %vm2590, %v2533, %v2529
    %v2640 = vsel %vm2592, %v2537, %v2639
    %v2641 = vsel %vm2594, %v2541, %v2640
    %v2642 = vsel %vm2596, %v2545, %v2641
    %v2643 = vsel %vm2598, %v2549, %v2642
    %v2644 = vsel %vm2600, %v2553, %v2643
    %v2645 = vsel %vm2602, %v2557, %v2644
    %v2646 = vsel %vm2590, %v2565, %v2561
    %v2647 = vsel %vm2592, %v2569, %v2646
    %v2648 = vsel %vm2594, %v2573, %v2647
    %v2649 = vsel %vm2596, %v2577, %v2648
    %v2650 = vsel %vm2598, %v2581, %v2649
    %v2651 = vsel %vm2600, %v2585, %v2650
    %v2652 = vsel %vm2602, %v2589, %v2651
    %v2661 = vsel %vm2267, %v2603, -1e+30
    %v2662 = vsel %vm2267, %v2610, -1e+30
    %v2663 = vsel %vm2267, %v2617, -1e+30
    %v2664 = vsel %vm2267, %v2624, -1e+30
    %v2665 = vsel %vm2267, %v2631, -1e+30
    %v2666 = vsel %vm2267, %v2638, -1e+30
    %v2667 = vsel %vm2267, %v2645, -1e+30
    %v2668 = vsel %vm2267, %v2652, -1e+30
    %vm2669 = vcmask 64512
    %v2670 = vsel %vm2669, %v2661, -inf
    %2671 = vmax.xlane.f32.xlu0 %v2670
    %v2672 = vpop.xlane.xlu0 %2671
    %v2673 = vsel %vm2669, %v2662, -inf
    %2674 = vmax.xlane.f32.xlu0 %v2673
    %v2675 = vpop.xlane.xlu0 %2674
    %v2676 = vsel %vm2669, %v2663, -inf
    %2677 = vmax.xlane.f32.xlu0 %v2676
    %v2678 = vpop.xlane.xlu0 %2677
    %v2679 = vsel %vm2669, %v2664, -inf
    %2680 = vmax.xlane.f32.xlu0 %v2679
    %v2681 = vpop.xlane.xlu0 %2680
    %v2682 = vsel %vm2669, %v2665, -inf
    %2683 = vmax.xlane.f32.xlu0 %v2682
    %v2684 = vpop.xlane.xlu0 %2683
    %v2685 = vsel %vm2669, %v2666, -inf
    %2686 = vmax.xlane.f32.xlu0 %v2685
    %v2687 = vpop.xlane.xlu0 %2686
    %v2688 = vsel %vm2669, %v2667, -inf
    %2689 = vmax.xlane.f32.xlu0 %v2688
    %v2690 = vpop.xlane.xlu0 %2689
    %v2691 = vsel %vm2669, %v2668, -inf
    %2692 = vmax.xlane.f32.xlu0 %v2691
    %v2693 = vpop.xlane.xlu0 %2692
    %v2694 = vsub.f32 %v2661, %v2672
    %v2695 = vsub.f32 %v2662, %v2675
    %v2696 = vsub.f32 %v2663, %v2678
    %v2697 = vsub.f32 %v2664, %v2681
    %v2698 = vsub.f32 %v2665, %v2684
    %v2699 = vsub.f32 %v2666, %v2687
    %v2700 = vsub.f32 %v2667, %v2690
    %v2701 = vsub.f32 %v2668, %v2693
    %v2702 = vmul.f32 %v2694, 1.442695
    %v2703 = vpow.pop %v2702
    %v2704 = vmul.f32 %v2695, 1.442695
    %v2705 = vpow.pop %v2704
    %v2706 = vmul.f32 %v2696, 1.442695
    %v2707 = vpow.pop %v2706
    %v2708 = vmul.f32 %v2697, 1.442695
    %v2709 = vpow.pop %v2708
    %v2710 = vmul.f32 %v2698, 1.442695
    %v2711 = vpow.pop %v2710
    %v2712 = vmul.f32 %v2699, 1.442695
    %v2713 = vpow.pop %v2712
    %v2714 = vmul.f32 %v2700, 1.442695
    %v2715 = vpow.pop %v2714
    %v2716 = vmul.f32 %v2701, 1.442695
    %v2717 = vpow.pop %v2716
    %v2718 = vsel %vm2267, %v2703, 0.0
    %v2719 = vsel %vm2267, %v2705, 0.0
    %v2720 = vsel %vm2267, %v2707, 0.0
    %v2721 = vsel %vm2267, %v2709, 0.0
    %v2722 = vsel %vm2267, %v2711, 0.0
    %v2723 = vsel %vm2267, %v2713, 0.0
    %v2724 = vsel %vm2267, %v2715, 0.0
    %v2725 = vsel %vm2267, %v2717, 0.0
    %v2726 = vsel %vm2669, %v2718, 0.0
    %2727 = vadd.xlane.f32.xlu0 %v2726
    %v2728 = vpop.xlane.xlu0 %2727
    %v2729 = vsel %vm2669, %v2719, 0.0
    %2730 = vadd.xlane.f32.xlu0 %v2729
    %v2731 = vpop.xlane.xlu0 %2730
    %v2732 = vsel %vm2669, %v2720, 0.0
    %2733 = vadd.xlane.f32.xlu0 %v2732
    %v2734 = vpop.xlane.xlu0 %2733
    %v2735 = vsel %vm2669, %v2721, 0.0
    %2736 = vadd.xlane.f32.xlu0 %v2735
    %v2737 = vpop.xlane.xlu0 %2736
    %v2738 = vsel %vm2669, %v2722, 0.0
    %2739 = vadd.xlane.f32.xlu0 %v2738
    %v2740 = vpop.xlane.xlu0 %2739
    %v2741 = vsel %vm2669, %v2723, 0.0
    %2742 = vadd.xlane.f32.xlu0 %v2741
    %v2743 = vpop.xlane.xlu0 %2742
    %v2744 = vsel %vm2669, %v2724, 0.0
    %2745 = vadd.xlane.f32.xlu0 %v2744
    %v2746 = vpop.xlane.xlu0 %2745
    %v2747 = vsel %vm2669, %v2725, 0.0
    %2748 = vadd.xlane.f32.xlu0 %v2747
    %v2749 = vpop.xlane.xlu0 %2748
    %v2750 = vmax.f32 %v2728, 1e-20
    %v2751 = vmax.f32 %v2731, 1e-20
    %v2752 = vmax.f32 %v2734, 1e-20
    %v2753 = vmax.f32 %v2737, 1e-20
    %v2754 = vmax.f32 %v2740, 1e-20
    %v2755 = vmax.f32 %v2743, 1e-20
    %v2756 = vmax.f32 %v2746, 1e-20
    %v2757 = vmax.f32 %v2749, 1e-20
    %v2758 = vrcp.pop %v2750
    %v2759 = vrcp.pop %v2751
    %v2760 = vrcp.pop %v2752
    %v2761 = vrcp.pop %v2753
    %v2762 = vrcp.pop %v2754
    %v2763 = vrcp.pop %v2755
    %v2764 = vrcp.pop %v2756
    %v2765 = vrcp.pop %v2757
    %v2766 = vmul.f32 %v2718, %v2758
    %v2767 = vmul.f32 %v2719, %v2759
    %v2768 = vmul.f32 %v2720, %v2760
    %v2769 = vmul.f32 %v2721, %v2761
    %v2770 = vmul.f32 %v2722, %v2762
    %v2771 = vmul.f32 %v2723, %v2763
    %v2772 = vmul.f32 %v2724, %v2764
    %v2773 = vmul.f32 %v2725, %v2765
    %2782 = vrot.lane.b32.xlu0 %v2766, 8
    %v2783 = vpop.permute.xlu0 %2782
    %2784 = vrot.lane.b32.xlu0 %v2767, 8
    %v2785 = vpop.permute.xlu0 %2784
    %2786 = vrot.lane.b32.xlu0 %v2768, 8
    %v2787 = vpop.permute.xlu0 %2786
    %2788 = vrot.lane.b32.xlu0 %v2769, 8
    %v2789 = vpop.permute.xlu0 %2788
    %2790 = vrot.lane.b32.xlu0 %v2770, 8
    %v2791 = vpop.permute.xlu0 %2790
    %2792 = vrot.lane.b32.xlu0 %v2771, 8
    %v2793 = vpop.permute.xlu0 %2792
    %2794 = vrot.lane.b32.xlu0 %v2772, 8
    %v2795 = vpop.permute.xlu0 %2794
    %2796 = vrot.lane.b32.xlu0 %v2773, 8
    %v2797 = vpop.permute.xlu0 %2796
    %2806 = vrot.lane.b32.xlu0 %v2766, 16
    %v2807 = vpop.permute.xlu0 %2806
    %2808 = vrot.lane.b32.xlu0 %v2767, 16
    %v2809 = vpop.permute.xlu0 %2808
    %2810 = vrot.lane.b32.xlu0 %v2768, 16
    %v2811 = vpop.permute.xlu0 %2810
    %2812 = vrot.lane.b32.xlu0 %v2769, 16
    %v2813 = vpop.permute.xlu0 %2812
    %2814 = vrot.lane.b32.xlu0 %v2770, 16
    %v2815 = vpop.permute.xlu0 %2814
    %2816 = vrot.lane.b32.xlu0 %v2771, 16
    %v2817 = vpop.permute.xlu0 %2816
    %2818 = vrot.lane.b32.xlu0 %v2772, 16
    %v2819 = vpop.permute.xlu0 %2818
    %2820 = vrot.lane.b32.xlu0 %v2773, 16
    %v2821 = vpop.permute.xlu0 %2820
    %2830 = vrot.lane.b32.xlu0 %v2766, 24
    %v2831 = vpop.permute.xlu0 %2830
    %2832 = vrot.lane.b32.xlu0 %v2767, 24
    %v2833 = vpop.permute.xlu0 %2832
    %2834 = vrot.lane.b32.xlu0 %v2768, 24
    %v2835 = vpop.permute.xlu0 %2834
    %2836 = vrot.lane.b32.xlu0 %v2769, 24
    %v2837 = vpop.permute.xlu0 %2836
    %2838 = vrot.lane.b32.xlu0 %v2770, 24
    %v2839 = vpop.permute.xlu0 %2838
    %2840 = vrot.lane.b32.xlu0 %v2771, 24
    %v2841 = vpop.permute.xlu0 %2840
    %2842 = vrot.lane.b32.xlu0 %v2772, 24
    %v2843 = vpop.permute.xlu0 %2842
    %2844 = vrot.lane.b32.xlu0 %v2773, 24
    %v2845 = vpop.permute.xlu0 %2844
    %2854 = vrot.lane.b32.xlu0 %v2766, 32
    %v2855 = vpop.permute.xlu0 %2854
    %2856 = vrot.lane.b32.xlu0 %v2767, 32
    %v2857 = vpop.permute.xlu0 %2856
    %2858 = vrot.lane.b32.xlu0 %v2768, 32
    %v2859 = vpop.permute.xlu0 %2858
    %2860 = vrot.lane.b32.xlu0 %v2769, 32
    %v2861 = vpop.permute.xlu0 %2860
    %2862 = vrot.lane.b32.xlu0 %v2770, 32
    %v2863 = vpop.permute.xlu0 %2862
    %2864 = vrot.lane.b32.xlu0 %v2771, 32
    %v2865 = vpop.permute.xlu0 %2864
    %2866 = vrot.lane.b32.xlu0 %v2772, 32
    %v2867 = vpop.permute.xlu0 %2866
    %2868 = vrot.lane.b32.xlu0 %v2773, 32
    %v2869 = vpop.permute.xlu0 %2868
    %2878 = vrot.lane.b32.xlu0 %v2766, 40
    %v2879 = vpop.permute.xlu0 %2878
    %2880 = vrot.lane.b32.xlu0 %v2767, 40
    %v2881 = vpop.permute.xlu0 %2880
    %2882 = vrot.lane.b32.xlu0 %v2768, 40
    %v2883 = vpop.permute.xlu0 %2882
    %2884 = vrot.lane.b32.xlu0 %v2769, 40
    %v2885 = vpop.permute.xlu0 %2884
    %2886 = vrot.lane.b32.xlu0 %v2770, 40
    %v2887 = vpop.permute.xlu0 %2886
    %2888 = vrot.lane.b32.xlu0 %v2771, 40
    %v2889 = vpop.permute.xlu0 %2888
    %2890 = vrot.lane.b32.xlu0 %v2772, 40
    %v2891 = vpop.permute.xlu0 %2890
    %2892 = vrot.lane.b32.xlu0 %v2773, 40
    %v2893 = vpop.permute.xlu0 %2892
    %2902 = vrot.lane.b32.xlu0 %v2766, 48
    %v2903 = vpop.permute.xlu0 %2902
    %2904 = vrot.lane.b32.xlu0 %v2767, 48
    %v2905 = vpop.permute.xlu0 %2904
    %2906 = vrot.lane.b32.xlu0 %v2768, 48
    %v2907 = vpop.permute.xlu0 %2906
    %2908 = vrot.lane.b32.xlu0 %v2769, 48
    %v2909 = vpop.permute.xlu0 %2908
    %2910 = vrot.lane.b32.xlu0 %v2770, 48
    %v2911 = vpop.permute.xlu0 %2910
    %2912 = vrot.lane.b32.xlu0 %v2771, 48
    %v2913 = vpop.permute.xlu0 %2912
    %2914 = vrot.lane.b32.xlu0 %v2772, 48
    %v2915 = vpop.permute.xlu0 %2914
    %2916 = vrot.lane.b32.xlu0 %v2773, 48
    %v2917 = vpop.permute.xlu0 %2916
    %2926 = vrot.lane.b32.xlu0 %v2766, 56
    %v2927 = vpop.permute.xlu0 %2926
    %2928 = vrot.lane.b32.xlu0 %v2767, 56
    %v2929 = vpop.permute.xlu0 %2928
    %2930 = vrot.lane.b32.xlu0 %v2768, 56
    %v2931 = vpop.permute.xlu0 %2930
    %2932 = vrot.lane.b32.xlu0 %v2769, 56
    %v2933 = vpop.permute.xlu0 %2932
    %2934 = vrot.lane.b32.xlu0 %v2770, 56
    %v2935 = vpop.permute.xlu0 %2934
    %2936 = vrot.lane.b32.xlu0 %v2771, 56
    %v2937 = vpop.permute.xlu0 %2936
    %2938 = vrot.lane.b32.xlu0 %v2772, 56
    %v2939 = vpop.permute.xlu0 %2938
    %2940 = vrot.lane.b32.xlu0 %v2773, 56
    %v2941 = vpop.permute.xlu0 %2940
    %v2950 = vsel %vm2669, %v2766, %v2783
    %v2951 = vsel %vm2669, %v2767, %v2785
    %v2952 = vsel %vm2669, %v2768, %v2787
    %v2953 = vsel %vm2669, %v2769, %v2789
    %v2954 = vsel %vm2669, %v2770, %v2791
    %v2955 = vsel %vm2669, %v2771, %v2793
    %v2956 = vsel %vm2669, %v2772, %v2795
    %v2957 = vsel %vm2669, %v2773, %v2797
    %vm2958 = vcmask 130048
    %v2959 = vsel %vm2958, %v2950, %v2807
    %v2960 = vsel %vm2958, %v2951, %v2809
    %v2961 = vsel %vm2958, %v2952, %v2811
    %v2962 = vsel %vm2958, %v2953, %v2813
    %v2963 = vsel %vm2958, %v2954, %v2815
    %v2964 = vsel %vm2958, %v2955, %v2817
    %v2965 = vsel %vm2958, %v2956, %v2819
    %v2966 = vsel %vm2958, %v2957, %v2821
    %vm2967 = vcmask 195584
    %v2968 = vsel %vm2967, %v2959, %v2831
    %v2969 = vsel %vm2967, %v2960, %v2833
    %v2970 = vsel %vm2967, %v2961, %v2835
    %v2971 = vsel %vm2967, %v2962, %v2837
    %v2972 = vsel %vm2967, %v2963, %v2839
    %v2973 = vsel %vm2967, %v2964, %v2841
    %v2974 = vsel %vm2967, %v2965, %v2843
    %v2975 = vsel %vm2967, %v2966, %v2845
    %vm2976 = vcmask 261120
    %v2977 = vsel %vm2976, %v2968, %v2855
    %v2978 = vsel %vm2976, %v2969, %v2857
    %v2979 = vsel %vm2976, %v2970, %v2859
    %v2980 = vsel %vm2976, %v2971, %v2861
    %v2981 = vsel %vm2976, %v2972, %v2863
    %v2982 = vsel %vm2976, %v2973, %v2865
    %v2983 = vsel %vm2976, %v2974, %v2867
    %v2984 = vsel %vm2976, %v2975, %v2869
    %vm2985 = vcmask 326656
    %v2986 = vsel %vm2985, %v2977, %v2879
    %v2987 = vsel %vm2985, %v2978, %v2881
    %v2988 = vsel %vm2985, %v2979, %v2883
    %v2989 = vsel %vm2985, %v2980, %v2885
    %v2990 = vsel %vm2985, %v2981, %v2887
    %v2991 = vsel %vm2985, %v2982, %v2889
    %v2992 = vsel %vm2985, %v2983, %v2891
    %v2993 = vsel %vm2985, %v2984, %v2893
    %vm2994 = vcmask 392192
    %v2995 = vsel %vm2994, %v2986, %v2903
    %v2996 = vsel %vm2994, %v2987, %v2905
    %v2997 = vsel %vm2994, %v2988, %v2907
    %v2998 = vsel %vm2994, %v2989, %v2909
    %v2999 = vsel %vm2994, %v2990, %v2911
    %v3000 = vsel %vm2994, %v2991, %v2913
    %v3001 = vsel %vm2994, %v2992, %v2915
    %v3002 = vsel %vm2994, %v2993, %v2917
    %vm3003 = vcmask 457728
    %v3004 = vsel %vm3003, %v2995, %v2927
    %v3005 = vsel %vm3003, %v2996, %v2929
    %v3006 = vsel %vm3003, %v2997, %v2931
    %v3007 = vsel %vm3003, %v2998, %v2933
    %v3008 = vsel %vm3003, %v2999, %v2935
    %v3009 = vsel %vm3003, %v3000, %v2937
    %v3010 = vsel %vm3003, %v3001, %v2939
    %v3011 = vsel %vm3003, %v3002, %v2941
    %v3012 = vld [vmem:[#allocation10] sm:$0xff]
    %v3013 = vld [vmem:[#allocation10 + $0x8] sm:$0xff]
    %v3014 = vld [vmem:[#allocation10 + $0x10] sm:$0xff]
    %v3015 = vld [vmem:[#allocation10 + $0x18] sm:$0xff]
    %v3016 = vld [vmem:[#allocation10 + $0x20] sm:$0xff]
    %v3017 = vld [vmem:[#allocation10 + $0x28] sm:$0xff]
    %v3018 = vld [vmem:[#allocation10 + $0x30] sm:$0xff]
    %v3019 = vld [vmem:[#allocation10 + $0x38] sm:$0xff]
    %v3020 = vmul.f32 %v3004, %v3012
    %v3021 = vmul.f32 %v3005, %v3013
    %v3022 = vmul.f32 %v3006, %v3014
    %v3023 = vmul.f32 %v3007, %v3015
    %v3024 = vmul.f32 %v3008, %v3016
    %v3025 = vmul.f32 %v3009, %v3017
    %v3026 = vmul.f32 %v3010, %v3018
    %v3027 = vmul.f32 %v3011, %v3019
    %vm3028 = vcmask 523264
    %v3030 = vsel %vm3028, %v3020, 0
    %v3033 = vsel %vm3028, %v3021, 0
    %v3036 = vsel %vm3028, %v3022, 0
    %v3039 = vsel %vm3028, %v3023, 0
    %v3042 = vsel %vm3028, %v3024, 0
    %v3045 = vsel %vm3028, %v3025, 0
    %v3048 = vsel %vm3028, %v3026, 0
    %v3051 = vsel %vm3028, %v3027, 0
    %3053 = vmatprep.subr.mxu0 0.0
    %3054 = vmatpush1.msra.mxu0 %v506
    %3055 = vmatprep.subr.mxu0 0.0
    %3056 = vmatpush1.msra.mxu0 %v508
    %3057 = vmatprep.subr.mxu0 0.0
    %3058 = vmatpush1.msra.mxu0 %v577
    %3059 = vmatprep.subr.mxu0 0.0
    %3060 = vmatpush1.msra.mxu0 %v579
    %3061 = vmatprep.subr.mxu0 0.0
    %3062 = vmatpush1.msra.mxu0 %v648
    %3063 = vmatprep.subr.mxu0 0.0
    %3064 = vmatpush1.msra.mxu0 %v650
    %3065 = vmatprep.subr.mxu0 0.0
    %3066 = vmatpush1.msra.mxu0 %v719
    %3067 = vmatprep.subr.mxu0 0.0
    %3068 = vmatpush1.msra.mxu0 %v721
    %3069 = vmatprep.subr.mxu0 0.0
    %3070 = vmatpush1.msra.mxu0 0.0
    %3071 = vmatprep.subr.mxu0 0.0
    %3072 = vmatpush1.msra.mxu0 0.0
    %3073 = vmatprep.subr.mxu0 0.0
    %3074 = vmatpush1.msra.mxu0 0.0
    %3075 = vmatprep.subr.mxu0 0.0
    %3076 = vmatpush1.msra.mxu0 0.0
    %3077 = vmatprep.subr.mxu0 0.0
    %3078 = vmatpush1.msra.mxu0 0.0
    %3079 = vmatprep.subr.mxu0 0.0
    %3080 = vmatpush1.msra.mxu0 0.0
    %3081 = vmatprep.subr.mxu0 0.0
    %3082 = vmatpush1.msra.mxu0 0.0
    %3083 = vmatprep.subr.mxu0 0.0
    %3084 = vmatpush1.msra.mxu0 0.0
    %3085 = vmatprep.subr.mxu0 0.0
    %3086 = vmatpush1.msra.mxu0 0.0
    %3087 = vmatprep.subr.mxu0 0.0
    %3088 = vmatpush1.msra.mxu0 0.0
    %3089 = vmatprep.subr.mxu0 0.0
    %3090 = vmatpush1.msra.mxu0 0.0
    %3091 = vmatprep.subr.mxu0 0.0
    %3092 = vmatpush1.msra.mxu0 0.0
    %3093 = vmatprep.subr.mxu0 0.0
    %3094 = vmatpush1.msra.mxu0 0.0
    %3095 = vmatprep.subr.mxu0 0.0
    %3096 = vmatpush1.msra.mxu0 0.0
    %3097 = vmatprep.subr.mxu0 0.0
    %3098 = vmatpush1.msra.mxu0 0.0
    %3099 = vmatprep.subr.mxu0 0.0
    %3100 = vmatpush1.msra.mxu0 0.0
    %3101 = vmatprep.subr.mxu0 0.0
    %3102 = vmatpush1.msra.mxu0 0.0
    %3103 = vmatprep.subr.mxu0 0.0
    %3104 = vmatpush1.msra.mxu0 0.0
    %3105 = vmatprep.subr.mxu0 0.0
    %3106 = vmatpush1.msra.mxu0 0.0
    %3107 = vmatprep.subr.mxu0 0.0
    %3108 = vmatpush1.msra.mxu0 0.0
    %3109 = vmatprep.subr.mxu0 0.0
    %3110 = vmatpush1.msra.mxu0 0.0
    %3111 = vmatprep.subr.mxu0 0.0
    %3112 = vmatpush1.msra.mxu0 0.0
    %3113 = vmatprep.subr.mxu0 0.0
    %3114 = vmatpush1.msra.mxu0 0.0
    %3115 = vmatprep.subr.mxu0 0.0
    %3116 = vmatpush1.msra.mxu0 0.0
    %3117 = vmatprep.mubr.f32.mxu0 0.0
    %3118 = vmatmul.mubr.f32.gmra.mrb[0].mxu0 %v3030
    %v3119 = vpop.f32.mrb[0].mxu0
    %v3120 = vadd.f32 0.0, %v3119
    %v3121 = vpop.f32.mrb[0].mxu0
    %3122 = vmatprep.mubr.f32.mxu0 0.0
    %3123 = vmatmul.mubr.f32.gmra.mrb[0].mxu0 %v3033
    %v3124 = vpop.f32.mrb[0].mxu0
    %v3125 = vadd.f32 0.0, %v3124
    %v3126 = vpop.f32.mrb[0].mxu0
    %3127 = vmatprep.mubr.f32.mxu0 0.0
    %3128 = vmatmul.mubr.f32.gmra.mrb[0].mxu0 %v3036
    %v3129 = vpop.f32.mrb[0].mxu0
    %v3130 = vadd.f32 0.0, %v3129
    %v3131 = vpop.f32.mrb[0].mxu0
    %3132 = vmatprep.mubr.f32.mxu0 0.0
    %3133 = vmatmul.mubr.f32.gmra.mrb[0].mxu0 %v3039
    %v3134 = vpop.f32.mrb[0].mxu0
    %v3135 = vadd.f32 0.0, %v3134
    %v3136 = vpop.f32.mrb[0].mxu0
    %3137 = vmatprep.mubr.f32.mxu0 0.0
    %3138 = vmatmul.mubr.f32.gmra.mrb[0].mxu0 %v3042
    %v3139 = vpop.f32.mrb[0].mxu0
    %v3140 = vadd.f32 0.0, %v3139
    %v3141 = vpop.f32.mrb[0].mxu0
    %3142 = vmatprep.mubr.f32.mxu0 0.0
    %3143 = vmatmul.mubr.f32.gmra.mrb[0].mxu0 %v3045
    %v3144 = vpop.f32.mrb[0].mxu0
    %v3145 = vadd.f32 0.0, %v3144
    %v3146 = vpop.f32.mrb[0].mxu0
    %3147 = vmatprep.mubr.f32.mxu0 0.0
    %3148 = vmatmul.mubr.f32.gmra.mrb[0].mxu0 %v3048
    %v3149 = vpop.f32.mrb[0].mxu0
    %v3150 = vadd.f32 0.0, %v3149
    %v3151 = vpop.f32.mrb[0].mxu0
    %3152 = vmatprep.mubr.f32.mxu0 0.0
    %3153 = vmatmul.mubr.f32.gmra.mrb[0].mxu0 %v3051
    %v3154 = vpop.f32.mrb[0].mxu0
    %v3155 = vadd.f32 0.0, %v3154
    %v3156 = vpop.f32.mrb[0].mxu0
    %3157 = vdwg.mxu0
    %v3158 = vadd.f32 %v3120, %v3125
    %v3159 = vadd.f32 %v3158, %v3130
    %v3160 = vadd.f32 %v3159, %v3135
    %v3161 = vadd.f32 %v3160, %v3140
    %v3162 = vadd.f32 %v3161, %v3145
    %v3163 = vadd.f32 %v3162, %v3150
    %v3164 = vadd.f32 %v3163, %v3155
    %v3165 = vmul.f32 %v3164, 0.125
    %v3166 = vld [vmem:[%s5] sm:$0x1]
    %v3168 = vlaneseq
    %v3169 = vshrl.u32 %v3168, 7
    %v3170 = vsub.s32 0, %v3169
    %v3171 = vrot.slane %v3166, %v3170
    %v3173 = vadd.f32 %v3165, %v3171
    %3174 = vst [vmem:[#allocation11] sm:$0xff] %v3173
    %v3175 = vld [vmem:[%s6] sm:$0xff]
    %v3176 = vsel %vm2669, %v2766, 0
    %v3178 = vsel %vm2669, %v2767, 0
    %v3180 = vsel %vm2669, %v2768, 0
    %v3182 = vsel %vm2669, %v2769, 0
    %v3184 = vsel %vm2669, %v2770, 0
    %v3186 = vsel %vm2669, %v2771, 0
    %v3188 = vsel %vm2669, %v2772, 0
    %v3190 = vsel %vm2669, %v2773, 0
    %3192 = vmatprep.subr.mxu0 0.0
    %3193 = vmatpush1.msra.mxu0 %v3175
    %3194 = vmatprep.subr.mxu0 0.0
    %3195 = vmatpush1.msra.mxu0 0.0
    %3196 = vmatprep.subr.mxu0 0.0
    %3197 = vmatpush1.msra.mxu0 0.0
    %3198 = vmatprep.subr.mxu0 0.0
    %3199 = vmatpush1.msra.mxu0 0.0
    %3200 = vmatprep.subr.mxu0 0.0
    %3201 = vmatpush1.msra.mxu0 0.0
    %3202 = vmatprep.subr.mxu0 0.0
    %3203 = vmatpush1.msra.mxu0 0.0
    %3204 = vmatprep.subr.mxu0 0.0
    %3205 = vmatpush1.msra.mxu0 0.0
    %3206 = vmatprep.subr.mxu0 0.0
    %3207 = vmatpush1.msra.mxu0 0.0
    %3208 = vmatprep.subr.mxu0 0.0
    %3209 = vmatpush1.msra.mxu0 0.0
    %3210 = vmatprep.subr.mxu0 0.0
    %3211 = vmatpush1.msra.mxu0 0.0
    %3212 = vmatprep.subr.mxu0 0.0
    %3213 = vmatpush1.msra.mxu0 0.0
    %3214 = vmatprep.subr.mxu0 0.0
    %3215 = vmatpush1.msra.mxu0 0.0
    %3216 = vmatprep.subr.mxu0 0.0
    %3217 = vmatpush1.msra.mxu0 0.0
    %3218 = vmatprep.subr.mxu0 0.0
    %3219 = vmatpush1.msra.mxu0 0.0
    %3220 = vmatprep.subr.mxu0 0.0
    %3221 = vmatpush1.msra.mxu0 0.0
    %3222 = vmatprep.subr.mxu0 0.0
    %3223 = vmatpush1.msra.mxu0 0.0
    %3224 = vmatprep.subr.mxu0 0.0
    %3225 = vmatpush1.msra.mxu0 0.0
    %3226 = vmatprep.subr.mxu0 0.0
    %3227 = vmatpush1.msra.mxu0 0.0
    %3228 = vmatprep.subr.mxu0 0.0
    %3229 = vmatpush1.msra.mxu0 0.0
    %3230 = vmatprep.subr.mxu0 0.0
    %3231 = vmatpush1.msra.mxu0 0.0
    %3232 = vmatprep.subr.mxu0 0.0
    %3233 = vmatpush1.msra.mxu0 0.0
    %3234 = vmatprep.subr.mxu0 0.0
    %3235 = vmatpush1.msra.mxu0 0.0
    %3236 = vmatprep.subr.mxu0 0.0
    %3237 = vmatpush1.msra.mxu0 0.0
    %3238 = vmatprep.subr.mxu0 0.0
    %3239 = vmatpush1.msra.mxu0 0.0
    %3240 = vmatprep.subr.mxu0 0.0
    %3241 = vmatpush1.msra.mxu0 0.0
    %3242 = vmatprep.subr.mxu0 0.0
    %3243 = vmatpush1.msra.mxu0 0.0
    %3244 = vmatprep.subr.mxu0 0.0
    %3245 = vmatpush1.msra.mxu0 0.0
    %3246 = vmatprep.subr.mxu0 0.0
    %3247 = vmatpush1.msra.mxu0 0.0
    %3248 = vmatprep.subr.mxu0 0.0
    %3249 = vmatpush1.msra.mxu0 0.0
    %3250 = vmatprep.subr.mxu0 0.0
    %3251 = vmatpush1.msra.mxu0 0.0
    %3252 = vmatprep.subr.mxu0 0.0
    %3253 = vmatpush1.msra.mxu0 0.0
    %3254 = vmatprep.subr.mxu0 0.0
    %3255 = vmatpush1.msra.mxu0 0.0
    %3256 = vmatprep.mubr.f32.mxu0 0.0
    %3257 = vmatmul.mubr.f32.gmra.mrb[0].mxu0 %v3176
    %v3258 = vpop.f32.mrb[0].mxu0
    %v3259 = vadd.f32 0.0, %v3258
    %v3260 = vpop.f32.mrb[0].mxu0
    %3261 = vmatprep.mubr.f32.mxu0 0.0
    %3262 = vmatmul.mubr.f32.gmra.mrb[0].mxu0 %v3178
    %v3263 = vpop.f32.mrb[0].mxu0
    %v3264 = vadd.f32 0.0, %v3263
    %v3265 = vpop.f32.mrb[0].mxu0
    %3266 = vmatprep.mubr.f32.mxu0 0.0
    %3267 = vmatmul.mubr.f32.gmra.mrb[0].mxu0 %v3180
    %v3268 = vpop.f32.mrb[0].mxu0
    %v3269 = vadd.f32 0.0, %v3268
    %v3270 = vpop.f32.mrb[0].mxu0
    %3271 = vmatprep.mubr.f32.mxu0 0.0
    %3272 = vmatmul.mubr.f32.gmra.mrb[0].mxu0 %v3182
    %v3273 = vpop.f32.mrb[0].mxu0
    %v3274 = vadd.f32 0.0, %v3273
    %v3275 = vpop.f32.mrb[0].mxu0
    %3276 = vmatprep.mubr.f32.mxu0 0.0
    %3277 = vmatmul.mubr.f32.gmra.mrb[0].mxu0 %v3184
    %v3278 = vpop.f32.mrb[0].mxu0
    %v3279 = vadd.f32 0.0, %v3278
    %v3280 = vpop.f32.mrb[0].mxu0
    %3281 = vmatprep.mubr.f32.mxu0 0.0
    %3282 = vmatmul.mubr.f32.gmra.mrb[0].mxu0 %v3186
    %v3283 = vpop.f32.mrb[0].mxu0
    %v3284 = vadd.f32 0.0, %v3283
    %v3285 = vpop.f32.mrb[0].mxu0
    %3286 = vmatprep.mubr.f32.mxu0 0.0
    %3287 = vmatmul.mubr.f32.gmra.mrb[0].mxu0 %v3188
    %v3288 = vpop.f32.mrb[0].mxu0
    %v3289 = vadd.f32 0.0, %v3288
    %v3290 = vpop.f32.mrb[0].mxu0
    %3291 = vmatprep.mubr.f32.mxu0 0.0
    %3292 = vmatmul.mubr.f32.gmra.mrb[0].mxu0 %v3190
    %v3293 = vpop.f32.mrb[0].mxu0
    %v3294 = vadd.f32 0.0, %v3293
    %v3295 = vpop.f32.mrb[0].mxu0
    %3296 = vdwg.mxu0
    %v3297 = vld [vmem:[%s7] sm:$0xff]
    %v3298 = vmul.f32 %v3259, %v3297
    %v3299 = vmul.f32 %v3264, %v3297
    %v3300 = vmul.f32 %v3269, %v3297
    %v3301 = vmul.f32 %v3274, %v3297
    %v3302 = vmul.f32 %v3279, %v3297
    %v3303 = vmul.f32 %v3284, %v3297
    %v3304 = vmul.f32 %v3289, %v3297
    %v3305 = vmul.f32 %v3294, %v3297
    %v3306 = vrot.slane %v3298, 4
    %v3307 = vadd.f32 %v3298, %v3306
    %v3308 = vrot.slane %v3307, 2
    %v3309 = vadd.f32 %v3307, %v3308
    %v3310 = vrot.slane %v3309, 1
    %v3311 = vadd.f32 %v3309, %v3310
    %v3312 = vrot.slane %v3299, 4
    %v3313 = vadd.f32 %v3299, %v3312
    %v3314 = vrot.slane %v3313, 2
    %v3315 = vadd.f32 %v3313, %v3314
    %v3316 = vrot.slane %v3315, 1
    %v3317 = vadd.f32 %v3315, %v3316
    %v3318 = vrot.slane %v3300, 4
    %v3319 = vadd.f32 %v3300, %v3318
    %v3320 = vrot.slane %v3319, 2
    %v3321 = vadd.f32 %v3319, %v3320
    %v3322 = vrot.slane %v3321, 1
    %v3323 = vadd.f32 %v3321, %v3322
    %v3324 = vrot.slane %v3301, 4
    %v3325 = vadd.f32 %v3301, %v3324
    %v3326 = vrot.slane %v3325, 2
    %v3327 = vadd.f32 %v3325, %v3326
    %v3328 = vrot.slane %v3327, 1
    %v3329 = vadd.f32 %v3327, %v3328
    %v3330 = vrot.slane %v3302, 4
    %v3331 = vadd.f32 %v3302, %v3330
    %v3332 = vrot.slane %v3331, 2
    %v3333 = vadd.f32 %v3331, %v3332
    %v3334 = vrot.slane %v3333, 1
    %v3335 = vadd.f32 %v3333, %v3334
    %v3336 = vrot.slane %v3303, 4
    %v3337 = vadd.f32 %v3303, %v3336
    %v3338 = vrot.slane %v3337, 2
    %v3339 = vadd.f32 %v3337, %v3338
    %v3340 = vrot.slane %v3339, 1
    %v3341 = vadd.f32 %v3339, %v3340
    %v3342 = vrot.slane %v3304, 4
    %v3343 = vadd.f32 %v3304, %v3342
    %v3344 = vrot.slane %v3343, 2
    %v3345 = vadd.f32 %v3343, %v3344
    %v3346 = vrot.slane %v3345, 1
    %v3347 = vadd.f32 %v3345, %v3346
    %v3348 = vrot.slane %v3305, 4
    %v3349 = vadd.f32 %v3305, %v3348
    %v3350 = vrot.slane %v3349, 2
    %v3351 = vadd.f32 %v3349, %v3350
    %v3352 = vrot.slane %v3351, 1
    %v3353 = vadd.f32 %v3351, %v3352
    %v3362 = vsel %vm2590, %v3317, %v3311
    %v3363 = vsel %vm2592, %v3323, %v3362
    %v3364 = vsel %vm2594, %v3329, %v3363
    %v3365 = vsel %vm2596, %v3335, %v3364
    %v3366 = vsel %vm2598, %v3341, %v3365
    %v3367 = vsel %vm2600, %v3347, %v3366
    %v3368 = vsel %vm2602, %v3353, %v3367
    %3370 = vst [vmem:[#allocation12] sm:$0xff] %v3368
    // Predicated region
    $region58: #{tpu_custom_call.1} parent=1 // pred_check
      _
    $region59: #{tpu_custom_call.1} parent=1 // pred_check_branch
      %3372 = sbr.rel (0) target = $region61
    $region60: #{tpu_custom_call.1} parent=1 // pred_region
      %s3374 = ssub.s32 128, 128
      %3375 = vsyncadd [#allocation4], %s3374
      %s3377 = sshll.u32 [#allocation11], 4
      %s3378 = int_to_ptr.vmem [resolvable:$true] %s3377
      %3380 = dma.vmem_to_hbm [thread:$0]  %s3378, 128, %s9, [#allocation4]
    $region61: #{tpu_custom_call.1} parent=1 // pred_fallthru
      _
    // Predicated region
    $region62: #{tpu_custom_call.1} parent=1 // pred_check
      _
    $region63: #{tpu_custom_call.1} parent=1 // pred_check_branch
      %3382 = sbr.rel (0) target = $region65
    $region64: #{tpu_custom_call.1} parent=1 // pred_region
      %s3384 = ssub.s32 128, 128
      %3385 = vsyncadd [#allocation13], %s3384
      %s3387 = sshll.u32 [#allocation12], 4
      %s3388 = int_to_ptr.vmem [resolvable:$true] %s3387
      %3390 = dma.vmem_to_hbm [thread:$0]  %s3388, 128, %s10, [#allocation13]
    $region65: #{tpu_custom_call.1} parent=1 // pred_fallthru
      _
    // Predicated region
    $region66: #{tpu_custom_call.1} parent=1 // pred_check
      _
    $region67: #{tpu_custom_call.1} parent=1 // pred_check_branch
      %3392 = sbr.rel (0) target = $region69
    $region68: #{tpu_custom_call.1} parent=1 // pred_region
      %3393 = dma.done [#allocation4], 128
    $region69: #{tpu_custom_call.1} parent=1 // pred_fallthru
      _
    // Predicated region
    $region70: #{tpu_custom_call.1} parent=1 // pred_check
      _
    $region71: #{tpu_custom_call.1} parent=1 // pred_check_branch
      %3395 = sbr.rel (0) target = $region73
    $region72: #{tpu_custom_call.1} parent=1 // pred_region
      %3396 = dma.done [#allocation13], 128
    $region73: #{tpu_custom_call.1} parent=1 // pred_fallthru
      _
    %3397 = vsyncpa [#allocation3], 1
    %3398 = vsyncpa [#allocation6], 1
    %3399 = vsyncpa [#allocation9], 1
    %3400 = vsyncpa [#allocation4], 1
    %3401 = vsyncpa [#allocation13], 1

</llo_original>
